<compile_context>
chip_gen: v5e
topology: v5e:2x2
jax: 0.10.0
libtpu: 0.0.40
codegen_flags: <defaults>
</compile_context>

<pallas_src>
import math
import functools

import jax
import jax.numpy as jnp
from jax.experimental import pallas as pl
from jax.experimental.pallas import tpu as pltpu


# ----------------------------------------------------------------------------
# Fused kernel:  GroupNorm -> SiLU -> AttentionPool3d (query at pooled token)
# One grid step == S (b, t) samples.  Layout: (S, L0, C), channels on lanes.
# ----------------------------------------------------------------------------
def _readout_kernel(x_ref, gamma_ref, beta_ref, mg_ref, pos0_ref, posr_ref,
                    wqkv0_ref, bqkv0_ref, wkv_ref, bkv_ref, wct_ref, bc_ref,
                    hdown_ref, hup_ref, o_ref, *, num_groups, num_heads, eps):
    x = x_ref[...].astype(jnp.float32)            # (S, L0, C): upcast in-kernel
    S, L0, C = x.shape
    gs = C // num_groups
    inv_l0 = 1.0 / float(L0)

    # ---------------- GroupNorm(num_groups, C) — two-pass variance ----------
    sum_l = jnp.sum(x, axis=1)                    # (S, C)   sublane reduce
    if gs == 1:                                   # group == channel: no matmul
        mean = sum_l * inv_l0
    else:                                         # group-average matrix (f32)
        mean = jnp.dot(sum_l, mg_ref[...], preferred_element_type=jnp.float32)
    xc = x - mean[:, None, :]                     # (S, L0, C)
    ss = jnp.sum(xc * xc, axis=1)                 # (S, C)
    if gs == 1:
        var = ss * inv_l0
    else:
        var = jnp.dot(ss, mg_ref[...], preferred_element_type=jnp.float32)
    xn = xc * jax.lax.rsqrt(var + eps)[:, None, :]
    xn = xn * gamma_ref[...] + beta_ref[...]      # affine, (1,C) broadcast

    # ---------------- SiLU ----------------
    y = xn * jax.nn.sigmoid(xn)                   # (S, L0, C)

    # ---------------- AttentionPool3d --------------------------------------
    # token 0 = spatial mean token, tokens 1..L0 = spatial positions.
    # Only q at token 0 is needed (module reads x[:, :, 0] after c_proj).
    tok0 = jnp.sum(y, axis=1) * inv_l0 + pos0_ref[...]                  # (S, C)
    qkv0 = (jnp.dot(tok0.astype(jnp.bfloat16), wqkv0_ref[...],
                    preferred_element_type=jnp.float32)
            + bqkv0_ref[...])                                           # (S,3C)
    q0 = qkv0[:, :C]                              # scale folded into weights
    k0 = qkv0[:, C:2 * C]
    v0 = qkv0[:, 2 * C:]

    yp = (y + posr_ref[...]).reshape(S * L0, C).astype(jnp.bfloat16)
    kv = (jnp.dot(yp, wkv_ref[...], preferred_element_type=jnp.float32)
          + bkv_ref[...])                                            # (S*L0,2C)
    k_r = kv[:, :C].reshape(S, L0, C)
    v_r = kv[:, C:].reshape(S, L0, C)

    # Per-head scores: hdown (C, H) sums the ch channels of each head.
    t_r = (k_r * q0[:, None, :]).reshape(S * L0, C)
    s_r = jnp.dot(t_r, hdown_ref[...],
                  preferred_element_type=jnp.float32).reshape(S, L0, num_heads)
    s_0 = jnp.dot(k0 * q0, hdown_ref[...],
                  preferred_element_type=jnp.float32)                   # (S, H)

    # softmax over the L0+1 tokens, at width num_heads
    m = jnp.maximum(jnp.max(s_r, axis=1), s_0)                          # (S, H)
    e_0 = jnp.exp(s_0 - m)
    e_r = jnp.exp(s_r - m[:, None, :])                                  # (S,L0,H)
    denom = e_0 + jnp.sum(e_r, axis=1)
    inv = pl.reciprocal(denom, approx=True)                             # EUP

    # Broadcast per-head weights back to channel lanes (hup (H, C)).
    w_r = jnp.dot(e_r.reshape(S * L0, num_heads), hup_ref[...],
                  preferred_element_type=jnp.float32).reshape(S, L0, C)
    w_0 = jnp.dot(e_0, hup_ref[...], preferred_element_type=jnp.float32)
    inv_c = jnp.dot(inv, hup_ref[...], preferred_element_type=jnp.float32)
    attn = (w_0 * v0 + jnp.sum(w_r * v_r, axis=1)) * inv_c              # (S, C)

    # c_proj at pooled token (tiny matmul, kept f32 for accuracy).
    out = jnp.dot(attn, wct_ref[...], preferred_element_type=jnp.float32)
    o_ref[...] = out + bc_ref[...]


# ----------------------------------------------------------------------------
# One-time parameter transforms (scale folding, fusion, transposes, helpers)
# ----------------------------------------------------------------------------
def _prep_params(params, *, C, L0, num_heads, out_channels, num_groups):
    ch = C // num_heads
    scale = 1.0 / math.sqrt(math.sqrt(ch))

    wqkv = params["wqkv"].astype(jnp.float32).reshape(3 * C, C)
    bqkv = params["bqkv"].astype(jnp.float32).reshape(3 * C)
    wq, wk, wv = wqkv[:C], wqkv[C:2 * C], wqkv[2 * C:]
    bq, bk, bv = bqkv[:C], bqkv[C:2 * C], bqkv[2 * C:]

    pos_lc = params["pos"].astype(jnp.float32).T          # (L0+1, C)

    gs = C // num_groups
    if gs == 1:                                           # no group matmul
        mg = jnp.zeros((1, 1), jnp.float32)               # unused dummy
    else:
        gidx = jnp.arange(C) // gs
        mg = (gidx[:, None] == gidx[None, :]).astype(jnp.float32) / float(gs * L0)

    hidx = jnp.arange(C) // ch
    hdown = (hidx[:, None] == jnp.arange(num_heads)[None, :]).astype(jnp.float32)
    hup = hdown.T                                         # (H, C)

    # Fused Q|K|V for the pooled token; fused K|V for spatial tokens.
    # Attention scale folded into q/k weights and biases; bf16 MXU operands.
    wqkv0_t = jnp.concatenate([(wq * scale).T, (wk * scale).T, wv.T], axis=1)
    bqkv0 = jnp.concatenate([bq * scale, bk * scale, bv]).reshape(1, 3 * C)
    wkv_t = jnp.concatenate([(wk * scale).T, wv.T], axis=1)
    bkv = jnp.concatenate([bk * scale, bv]).reshape(1, 2 * C)

    return dict(
        gamma=params["gamma"].astype(jnp.float32).reshape(1, C),
        beta=params["beta"].astype(jnp.float32).reshape(1, C),
        mg=mg,                                            # (C,C) or (1,1)
        pos0=pos_lc[0:1],                                 # (1, C)
        posr=pos_lc[1:],                                  # (L0, C)
        wqkv0=wqkv0_t.astype(jnp.bfloat16),               # (C, 3C)
        bqkv0=bqkv0,                                      # (1, 3C)
        wkv=wkv_t.astype(jnp.bfloat16),                   # (C, 2C)
        bkv=bkv,                                          # (1, 2C)
        wct=params["wc"].astype(jnp.float32).T,           # (C, out_C)
        bc=params["bc"].astype(jnp.float32).reshape(1, out_channels),
        hdown=hdown,                                      # (C, H)
        hup=hup,                                          # (H, C)
    )


# ----------------------------------------------------------------------------
# Samples-per-step selection from a VMEM budget (v5e 16MiB / v6e 32 / v7x 32
# scoped defaults).  Prefers grid >= 2 so pipelining / v7x's second TensorCore
# are usable.
# ----------------------------------------------------------------------------
def _choose_block_samples(BT, L0, C, x_itemsize):
    c_pad = ((C + 127) // 128) * 128
    # 2 double-buffered input tiles + ~10 live f32 (L0, C_pad) temporaries.
    per_sample = 2 * L0 * C * x_itemsize + 10 * L0 * c_pad * 4
    budget = 20 * 1024 * 1024
    s_cap = max(8, budget // max(per_sample, 1))
    s_cap = int(min(s_cap, 256, BT))
    best = None
    for s in range(8, s_cap + 1, 8):          # multiple of 8 (out-block sublanes)
        if BT % s == 0 and BT // s >= 2:
            best = s                           # keep the largest qualifying S
    if best is None:
        best = BT                              # small / indivisible BT: one step
    return best


# ----------------------------------------------------------------------------
# Wrapper
# ----------------------------------------------------------------------------
def noisy_cuboid_encoder_readout(x_bthwc, params, *, num_heads, out_channels,
                                 eps=1e-5):
    B, T, H, W, C = x_bthwc.shape
    L0 = H * W
    BT = B * T
    num_groups = min(C, 32)
    assert C % num_groups == 0, "GroupNorm requires C % num_groups == 0"
    assert C % num_heads == 0, "AttentionPool3d requires C % num_heads == 0"

    # 'b t h w c -> (b t) (h w) c' — pure reshape; keep the NATIVE dtype
    # (bf16 in a real encoder); the kernel upcasts after the VMEM load.
    x = x_bthwc.reshape(BT, L0, C)

    p = _prep_params(params, C=C, L0=L0, num_heads=num_heads,
                     out_channels=out_channels, num_groups=num_groups)

    S = _choose_block_samples(BT, L0, C, jnp.dtype(x.dtype).itemsize)
    grid = (BT // S,)

    kernel = functools.partial(_readout_kernel, num_groups=num_groups,
                               num_heads=num_heads, eps=eps)
    rep = lambda i: (0, 0)   # shared (weight/bias/helper) blocks

    out = pl.pallas_call(
        kernel,
        out_shape=jax.ShapeDtypeStruct((BT, out_channels), jnp.float32),
        grid=grid,
        in_specs=[
            pl.BlockSpec((S, L0, C), lambda i: (i, 0, 0)),     # x
            pl.BlockSpec(p["gamma"].shape, rep),               # gn gamma
            pl.BlockSpec(p["beta"].shape, rep),                # gn beta
            pl.BlockSpec(p["mg"].shape, rep),                  # group-avg matrix
            pl.BlockSpec(p["pos0"].shape, rep),                # pos embed, token0
            pl.BlockSpec(p["posr"].shape, rep),                # pos embed, rest
            pl.BlockSpec(p["wqkv0"].shape, rep),               # fused Wqkv^T (bf16)
            pl.BlockSpec(p["bqkv0"].shape, rep),               # fused bqkv
            pl.BlockSpec(p["wkv"].shape, rep),                 # fused Wkv^T (bf16)
            pl.BlockSpec(p["bkv"].shape, rep),                 # fused bkv
            pl.BlockSpec(p["wct"].shape, rep),                 # c_proj weight^T
            pl.BlockSpec(p["bc"].shape, rep),                  # c_proj bias
            pl.BlockSpec(p["hdown"].shape, rep),               # head reduce (C,H)
            pl.BlockSpec(p["hup"].shape, rep),                 # head broadcast (H,C)
        ],
        out_specs=pl.BlockSpec((S, out_channels), lambda i: (i, 0)),
        compiler_params=pltpu.CompilerParams(
            dimension_semantics=("parallel",),
            vmem_limit_bytes=32 * 1024 * 1024),
    )(x, p["gamma"], p["beta"], p["mg"], p["pos0"], p["posr"],
      p["wqkv0"], p["bqkv0"], p["wkv"], p["bkv"], p["wct"], p["bc"],
      p["hdown"], p["hup"])

    # (b*t, out_C) -> (b, t, out_C)   (pure reshape, no transpose)
    return out.reshape(B, T, out_channels)


# ----------------------------------------------------------------------------
# Pure-JAX reference (mirrors the PyTorch GroupNorm/SiLU/AttentionPool3d math)
# ----------------------------------------------------------------------------
def readout_reference(x_bthwc, params, *, num_heads, out_channels, eps=1e-5):
    B, T, H, W, C = x_bthwc.shape
    BT, L0 = B * T, H * W
    G = min(C, 32)
    hp = jax.lax.Precision.HIGHEST

    # 'b t h w c -> (b t) c (h w)'
    x = jnp.transpose(x_bthwc.reshape(BT, L0, C), (0, 2, 1)).astype(jnp.float32)
    xg = x.reshape(BT, G, C // G, L0)
    mean = xg.mean(axis=(2, 3), keepdims=True)
    var = xg.var(axis=(2, 3), keepdims=True)
    xn = ((xg - mean) / jnp.sqrt(var + eps)).reshape(BT, C, L0)
    xn = xn * params["gamma"].reshape(1, C, 1) + params["beta"].reshape(1, C, 1)
    y = xn * jax.nn.sigmoid(xn)

    xf = jnp.concatenate([y.mean(axis=-1, keepdims=True), y], axis=-1)
    xf = xf + params["pos"][None]
    qkv = jnp.einsum("oc,bcl->bol", params["wqkv"], xf, precision=hp) \
        + params["bqkv"].reshape(1, 3 * C, 1)
    q, k, v = jnp.split(qkv, 3, axis=1)
    ch = C // num_heads
    scale = 1.0 / math.sqrt(math.sqrt(ch))
    qh = (q * scale).reshape(BT * num_heads, ch, -1)
    kh = (k * scale).reshape(BT * num_heads, ch, -1)
    vh = v.reshape(BT * num_heads, ch, -1)
    w = jnp.einsum("bct,bcs->bts", qh, kh, precision=hp)
    w = jax.nn.softmax(w, axis=-1)
    a = jnp.einsum("bts,bcs->bct", w, vh, precision=hp).reshape(BT, C, -1)
    out = jnp.einsum("oc,bcl->bol", params["wc"], a, precision=hp) \
        + params["bc"].reshape(1, out_channels, 1)
    return out[:, :, 0].reshape(B, T, out_channels)


# ----------------------------------------------------------------------------
if __name__ == "__main__":
    # Shapes consistent with the module's final memory tensor:
    # x: (B, T, H, W, C) with C = block_units[-1]; t: (B,)
    B, T, H, W, C = 2, 4, 8, 8, 32
    num_heads = 4
    out_channels = 8
    L0 = H * W
    L = L0 + 1

    key = jax.random.PRNGKey(0)
    ks = jax.random.split(key, 9)
    x = jax.random.normal(ks[0], (B, T, H, W, C), dtype=jnp.float32)
    t = jax.random.randint(ks[8], (B,), 0, 1000)  # timesteps (consumed only by
    # the unimplemented time-embedding body; see TODO(synk) above).

    params = {
        # GroupNorm affine params (deterministic synthetic init)
        "gamma": 1.0 + 0.1 * jax.random.normal(ks[1], (C,), jnp.float32),
        "beta": 0.1 * jax.random.normal(ks[2], (C,), jnp.float32),
        # AttentionPool3d: positional_embedding = randn(C, L0+1) / sqrt(C)
        "pos": jax.random.normal(ks[3], (C, L), jnp.float32) / math.sqrt(C),
        # qkv_proj: conv_nd(1, C, 3C, 1)
        "wqkv": jax.random.normal(ks[4], (3 * C, C), jnp.float32) / math.sqrt(C),
        "bqkv": 0.1 * jax.random.normal(ks[5], (3 * C,), jnp.float32),
        # c_proj: conv_nd(1, C, out_channels, 1)
        "wc": jax.random.normal(ks[6], (out_channels, C), jnp.float32) / math.sqrt(C),
        "bc": 0.1 * jax.random.normal(ks[7], (out_channels,), jnp.float32),
    }

    # Exercise the production path: bf16 activations in HBM.  The reference
    # consumes the same quantized values upcast to f32.
    x_bf16 = x.astype(jnp.bfloat16)

    out = noisy_cuboid_encoder_readout(
        x_bf16, params, num_heads=num_heads, out_channels=out_channels)
    out = jax.block_until_ready(out)
    assert out.shape == (B, T, out_channels), out.shape

    ref = readout_reference(
        x_bf16.astype(jnp.float32), params,
        num_heads=num_heads, out_channels=out_channels)
    ref = jax.block_until_ready(ref)
    assert jnp.allclose(out, ref, atol=2e-2, rtol=2e-2), (
        float(jnp.max(jnp.abs(out - ref))))

    print("KERNEL_OK")
</pallas_src>

<mosaic_0001>
module attributes {stable_mosaic.version = 11 : i64} {
  func.func @_readout_kernel(%arg0: i32, %arg1: memref<8x64x32xbf16, #tpu.memory_space<vmem>>, %arg2: memref<1x32xf32, #tpu.memory_space<vmem>>, %arg3: memref<1x32xf32, #tpu.memory_space<vmem>>, %arg4: memref<1x1xf32, #tpu.memory_space<vmem>>, %arg5: memref<1x32xf32, #tpu.memory_space<vmem>>, %arg6: memref<64x32xf32, #tpu.memory_space<vmem>>, %arg7: memref<32x96xbf16, #tpu.memory_space<vmem>>, %arg8: memref<1x96xf32, #tpu.memory_space<vmem>>, %arg9: memref<32x64xbf16, #tpu.memory_space<vmem>>, %arg10: memref<1x64xf32, #tpu.memory_space<vmem>>, %arg11: memref<32x8xf32, #tpu.memory_space<vmem>>, %arg12: memref<1x8xf32, #tpu.memory_space<vmem>>, %arg13: memref<32x4xf32, #tpu.memory_space<vmem>>, %arg14: memref<4x32xf32, #tpu.memory_space<vmem>>, %arg15: memref<8x8xf32, #tpu.memory_space<vmem>>) attributes {dimension_semantics = [#tpu.dimension_semantics<parallel>], iteration_bounds = array<i64: 1>, scalar_prefetch = 0 : i64, scratch_operands = 0 : i64, tpu.core_type = #tpu.core_type<tc>, window_params = [{transform_indices = @transform_0, window_bounds = array<i64: 8, 64, 32>}, {pipeline_mode = #tpu.pipeline_mode<synchronous>, transform_indices = @transform_1, window_bounds = array<i64: 1, 32>}, {pipeline_mode = #tpu.pipeline_mode<synchronous>, transform_indices = @transform_2, window_bounds = array<i64: 1, 32>}, {pipeline_mode = #tpu.pipeline_mode<synchronous>, transform_indices = @transform_3, window_bounds = array<i64: 1, 1>}, {pipeline_mode = #tpu.pipeline_mode<synchronous>, transform_indices = @transform_4, window_bounds = array<i64: 1, 32>}, {pipeline_mode = #tpu.pipeline_mode<synchronous>, transform_indices = @transform_5, window_bounds = array<i64: 64, 32>}, {pipeline_mode = #tpu.pipeline_mode<synchronous>, transform_indices = @transform_6, window_bounds = array<i64: 32, 96>}, {pipeline_mode = #tpu.pipeline_mode<synchronous>, transform_indices = @transform_7, window_bounds = array<i64: 1, 96>}, {pipeline_mode = #tpu.pipeline_mode<synchronous>, transform_indices = @transform_8, window_bounds = array<i64: 32, 64>}, {pipeline_mode = #tpu.pipeline_mode<synchronous>, transform_indices = @transform_9, window_bounds = array<i64: 1, 64>}, {pipeline_mode = #tpu.pipeline_mode<synchronous>, transform_indices = @transform_10, window_bounds = array<i64: 32, 8>}, {pipeline_mode = #tpu.pipeline_mode<synchronous>, transform_indices = @transform_11, window_bounds = array<i64: 1, 8>}, {pipeline_mode = #tpu.pipeline_mode<synchronous>, transform_indices = @transform_12, window_bounds = array<i64: 32, 4>}, {pipeline_mode = #tpu.pipeline_mode<synchronous>, transform_indices = @transform_13, window_bounds = array<i64: 4, 32>}, {transform_indices = @transform_14, window_bounds = array<i64: 8, 8>}]} {
    %c0 = arith.constant 0 : index
    %c0_0 = arith.constant 0 : index
    %c0_1 = arith.constant 0 : index
    %0 = vector.load %arg1[%c0, %c0_0, %c0_1] : memref<8x64x32xbf16, #tpu.memory_space<vmem>>, vector<8x64x32xbf16>
    %1 = arith.extf %0 : vector<8x64x32xbf16> to vector<8x64x32xf32>
    %cst = arith.constant dense<0.000000e+00> : vector<8x32xf32>
    %2 = vector.multi_reduction <add>, %1, %cst [1] : vector<8x64x32xf32> to vector<8x32xf32>
    %cst_2 = arith.constant 1.562500e-02 : f32
    %3 = vector.broadcast %cst_2 : f32 to vector<8x32xf32>
    %4 = arith.mulf %2, %3 : vector<8x32xf32>
    %5 = vector.shape_cast %4 : vector<8x32xf32> to vector<8x1x32xf32>
    %6 = vector.broadcast %5 : vector<8x1x32xf32> to vector<8x64x32xf32>
    %7 = arith.subf %1, %6 : vector<8x64x32xf32>
    %8 = arith.mulf %7, %7 : vector<8x64x32xf32>
    %cst_3 = arith.constant dense<0.000000e+00> : vector<8x32xf32>
    %9 = vector.multi_reduction <add>, %8, %cst_3 [1] : vector<8x64x32xf32> to vector<8x32xf32>
    %cst_4 = arith.constant 1.562500e-02 : f32
    %10 = vector.broadcast %cst_4 : f32 to vector<8x32xf32>
    %11 = arith.mulf %9, %10 : vector<8x32xf32>
    %cst_5 = arith.constant 9.99999974E-6 : f32
    %12 = vector.broadcast %cst_5 : f32 to vector<8x32xf32>
    %13 = arith.addf %11, %12 : vector<8x32xf32>
    %14 = math.rsqrt %13 : vector<8x32xf32>
    %15 = vector.shape_cast %14 : vector<8x32xf32> to vector<8x1x32xf32>
    %16 = vector.broadcast %15 : vector<8x1x32xf32> to vector<8x64x32xf32>
    %17 = arith.mulf %7, %16 : vector<8x64x32xf32>
    %c0_6 = arith.constant 0 : index
    %c0_7 = arith.constant 0 : index
    %18 = vector.load %arg2[%c0_6, %c0_7] : memref<1x32xf32, #tpu.memory_space<vmem>>, vector<1x32xf32>
    %19 = vector.shape_cast %18 : vector<1x32xf32> to vector<1x1x32xf32>
    %20 = vector.broadcast %19 : vector<1x1x32xf32> to vector<8x64x32xf32>
    %21 = arith.mulf %17, %20 : vector<8x64x32xf32>
    %c0_8 = arith.constant 0 : index
    %c0_9 = arith.constant 0 : index
    %22 = vector.load %arg3[%c0_8, %c0_9] : memref<1x32xf32, #tpu.memory_space<vmem>>, vector<1x32xf32>
    %23 = vector.shape_cast %22 : vector<1x32xf32> to vector<1x1x32xf32>
    %24 = vector.broadcast %23 : vector<1x1x32xf32> to vector<8x64x32xf32>
    %25 = arith.addf %21, %24 : vector<8x64x32xf32>
    %26 = arith.negf %25 : vector<8x64x32xf32>
    %27 = math.exp %26 : vector<8x64x32xf32>
    %cst_10 = arith.constant 1.000000e+00 : f32
    %28 = vector.broadcast %cst_10 : f32 to vector<8x64x32xf32>
    %29 = arith.addf %28, %27 : vector<8x64x32xf32>
    %30 = arith.divf %28, %29 : vector<8x64x32xf32>
    %31 = arith.mulf %25, %30 : vector<8x64x32xf32>
    %cst_11 = arith.constant dense<0.000000e+00> : vector<8x32xf32>
    %32 = vector.multi_reduction <add>, %31, %cst_11 [1] : vector<8x64x32xf32> to vector<8x32xf32>
    %cst_12 = arith.constant 1.562500e-02 : f32
    %33 = vector.broadcast %cst_12 : f32 to vector<8x32xf32>
    %34 = arith.mulf %32, %33 : vector<8x32xf32>
    %c0_13 = arith.constant 0 : index
    %c0_14 = arith.constant 0 : index
    %35 = vector.load %arg5[%c0_13, %c0_14] : memref<1x32xf32, #tpu.memory_space<vmem>>, vector<1x32xf32>
    %36 = vector.broadcast %35 : vector<1x32xf32> to vector<8x32xf32>
    %37 = arith.addf %34, %36 : vector<8x32xf32>
    %38 = arith.truncf %37 : vector<8x32xf32> to vector<8x32xbf16>
    %c0_15 = arith.constant 0 : index
    %c0_16 = arith.constant 0 : index
    %39 = vector.load %arg7[%c0_15, %c0_16] : memref<32x96xbf16, #tpu.memory_space<vmem>>, vector<32x96xbf16>
    %cst_17 = arith.constant dense<0.000000e+00> : vector<8x96xf32>
    %40 = tpu.matmul %38, %39, %cst_17 {dimension_numbers = #tpu.dot_dimension_numbers<[1], [0], [0], [1], [0, 0, 1, 1], [], []>} : vector<8x32xbf16>, vector<32x96xbf16>, vector<8x96xf32> -> vector<8x96xf32>
    %c0_18 = arith.constant 0 : index
    %c0_19 = arith.constant 0 : index
    %41 = vector.load %arg8[%c0_18, %c0_19] : memref<1x96xf32, #tpu.memory_space<vmem>>, vector<1x96xf32>
    %42 = vector.broadcast %41 : vector<1x96xf32> to vector<8x96xf32>
    %43 = arith.addf %40, %42 : vector<8x96xf32>
    %44 = vector.extract_strided_slice %43 {offsets = [0, 0], sizes = [8, 32], strides = [1, 1]} : vector<8x96xf32> to vector<8x32xf32>
    %45 = vector.extract_strided_slice %43 {offsets = [0, 32], sizes = [8, 32], strides = [1, 1]} : vector<8x96xf32> to vector<8x32xf32>
    %46 = vector.extract_strided_slice %43 {offsets = [0, 64], sizes = [8, 32], strides = [1, 1]} : vector<8x96xf32> to vector<8x32xf32>
    %c0_20 = arith.constant 0 : index
    %c0_21 = arith.constant 0 : index
    %47 = vector.load %arg6[%c0_20, %c0_21] : memref<64x32xf32, #tpu.memory_space<vmem>>, vector<64x32xf32>
    %48 = vector.shape_cast %47 : vector<64x32xf32> to vector<1x64x32xf32>
    %49 = vector.broadcast %48 : vector<1x64x32xf32> to vector<8x64x32xf32>
    %50 = arith.addf %31, %49 : vector<8x64x32xf32>
    %51 = vector.shape_cast %50 : vector<8x64x32xf32> to vector<512x32xf32>
    %52 = arith.truncf %51 : vector<512x32xf32> to vector<512x32xbf16>
    %c0_22 = arith.constant 0 : index
    %c0_23 = arith.constant 0 : index
    %53 = vector.load %arg9[%c0_22, %c0_23] : memref<32x64xbf16, #tpu.memory_space<vmem>>, vector<32x64xbf16>
    %cst_24 = arith.constant dense<0.000000e+00> : vector<512x64xf32>
    %54 = tpu.matmul %52, %53, %cst_24 {dimension_numbers = #tpu.dot_dimension_numbers<[1], [0], [0], [1], [0, 0, 1, 1], [], []>} : vector<512x32xbf16>, vector<32x64xbf16>, vector<512x64xf32> -> vector<512x64xf32>
    %c0_25 = arith.constant 0 : index
    %c0_26 = arith.constant 0 : index
    %55 = vector.load %arg10[%c0_25, %c0_26] : memref<1x64xf32, #tpu.memory_space<vmem>>, vector<1x64xf32>
    %56 = vector.broadcast %55 : vector<1x64xf32> to vector<512x64xf32>
    %57 = arith.addf %54, %56 : vector<512x64xf32>
    %58 = vector.extract_strided_slice %57 {offsets = [0, 0], sizes = [512, 32], strides = [1, 1]} : vector<512x64xf32> to vector<512x32xf32>
    %59 = vector.shape_cast %58 : vector<512x32xf32> to vector<8x64x32xf32>
    %60 = vector.extract_strided_slice %57 {offsets = [0, 32], sizes = [512, 32], strides = [1, 1]} : vector<512x64xf32> to vector<512x32xf32>
    %61 = vector.shape_cast %60 : vector<512x32xf32> to vector<8x64x32xf32>
    %62 = vector.shape_cast %44 : vector<8x32xf32> to vector<8x1x32xf32>
    %63 = vector.broadcast %62 : vector<8x1x32xf32> to vector<8x64x32xf32>
    %64 = arith.mulf %59, %63 : vector<8x64x32xf32>
    %65 = vector.shape_cast %64 : vector<8x64x32xf32> to vector<512x32xf32>
    %c0_27 = arith.constant 0 : index
    %c0_28 = arith.constant 0 : index
    %66 = vector.load %arg13[%c0_27, %c0_28] : memref<32x4xf32, #tpu.memory_space<vmem>>, vector<32x4xf32>
    %cst_29 = arith.constant dense<0.000000e+00> : vector<512x4xf32>
    %67 = tpu.matmul %65, %66, %cst_29 {dimension_numbers = #tpu.dot_dimension_numbers<[1], [0], [0], [1], [0, 0, 1, 1], [], []>} : vector<512x32xf32>, vector<32x4xf32>, vector<512x4xf32> -> vector<512x4xf32>
    %68 = vector.shape_cast %67 : vector<512x4xf32> to vector<8x64x4xf32>
    %69 = arith.mulf %45, %44 : vector<8x32xf32>
    %c0_30 = arith.constant 0 : index
    %c0_31 = arith.constant 0 : index
    %70 = vector.load %arg13[%c0_30, %c0_31] : memref<32x4xf32, #tpu.memory_space<vmem>>, vector<32x4xf32>
    %cst_32 = arith.constant dense<0.000000e+00> : vector<8x4xf32>
    %71 = tpu.matmul %69, %70, %cst_32 {dimension_numbers = #tpu.dot_dimension_numbers<[1], [0], [0], [1], [0, 0, 1, 1], [], []>} : vector<8x32xf32>, vector<32x4xf32>, vector<8x4xf32> -> vector<8x4xf32>
    %cst_33 = arith.constant dense<0xFF800000> : vector<8x4xf32>
    %72 = vector.multi_reduction <maximumf>, %68, %cst_33 [1] : vector<8x64x4xf32> to vector<8x4xf32>
    %73 = arith.maximumf %72, %71 : vector<8x4xf32>
    %74 = arith.subf %71, %73 : vector<8x4xf32>
    %75 = math.exp %74 : vector<8x4xf32>
    %76 = vector.shape_cast %73 : vector<8x4xf32> to vector<8x1x4xf32>
    %77 = vector.broadcast %76 : vector<8x1x4xf32> to vector<8x64x4xf32>
    %78 = arith.subf %68, %77 : vector<8x64x4xf32>
    %79 = math.exp %78 : vector<8x64x4xf32>
    %cst_34 = arith.constant dense<0.000000e+00> : vector<8x4xf32>
    %80 = vector.multi_reduction <add>, %79, %cst_34 [1] : vector<8x64x4xf32> to vector<8x4xf32>
    %81 = arith.addf %75, %80 : vector<8x4xf32>
    %82 = tpu.reciprocal %81 {approx = true} : vector<8x4xf32> -> vector<8x4xf32>
    %83 = vector.shape_cast %79 : vector<8x64x4xf32> to vector<512x4xf32>
    %c0_35 = arith.constant 0 : index
    %c0_36 = arith.constant 0 : index
    %84 = vector.load %arg14[%c0_35, %c0_36] : memref<4x32xf32, #tpu.memory_space<vmem>>, vector<4x32xf32>
    %cst_37 = arith.constant dense<0.000000e+00> : vector<512x32xf32>
    %85 = tpu.matmul %83, %84, %cst_37 {dimension_numbers = #tpu.dot_dimension_numbers<[1], [0], [0], [1], [0, 0, 1, 1], [], []>} : vector<512x4xf32>, vector<4x32xf32>, vector<512x32xf32> -> vector<512x32xf32>
    %86 = vector.shape_cast %85 : vector<512x32xf32> to vector<8x64x32xf32>
    %c0_38 = arith.constant 0 : index
    %c0_39 = arith.constant 0 : index
    %87 = vector.load %arg14[%c0_38, %c0_39] : memref<4x32xf32, #tpu.memory_space<vmem>>, vector<4x32xf32>
    %cst_40 = arith.constant dense<0.000000e+00> : vector<8x32xf32>
    %88 = tpu.matmul %75, %87, %cst_40 {dimension_numbers = #tpu.dot_dimension_numbers<[1], [0], [0], [1], [0, 0, 1, 1], [], []>} : vector<8x4xf32>, vector<4x32xf32>, vector<8x32xf32> -> vector<8x32xf32>
    %c0_41 = arith.constant 0 : index
    %c0_42 = arith.constant 0 : index
    %89 = vector.load %arg14[%c0_41, %c0_42] : memref<4x32xf32, #tpu.memory_space<vmem>>, vector<4x32xf32>
    %cst_43 = arith.constant dense<0.000000e+00> : vector<8x32xf32>
    %90 = tpu.matmul %82, %89, %cst_43 {dimension_numbers = #tpu.dot_dimension_numbers<[1], [0], [0], [1], [0, 0, 1, 1], [], []>} : vector<8x4xf32>, vector<4x32xf32>, vector<8x32xf32> -> vector<8x32xf32>
    %91 = arith.mulf %88, %46 : vector<8x32xf32>
    %92 = arith.mulf %86, %61 : vector<8x64x32xf32>
    %cst_44 = arith.constant dense<0.000000e+00> : vector<8x32xf32>
    %93 = vector.multi_reduction <add>, %92, %cst_44 [1] : vector<8x64x32xf32> to vector<8x32xf32>
    %94 = arith.addf %91, %93 : vector<8x32xf32>
    %95 = arith.mulf %94, %90 : vector<8x32xf32>
    %c0_45 = arith.constant 0 : index
    %c0_46 = arith.constant 0 : index
    %96 = vector.load %arg11[%c0_45, %c0_46] : memref<32x8xf32, #tpu.memory_space<vmem>>, vector<32x8xf32>
    %cst_47 = arith.constant dense<0.000000e+00> : vector<8x8xf32>
    %97 = tpu.matmul %95, %96, %cst_47 {dimension_numbers = #tpu.dot_dimension_numbers<[1], [0], [0], [1], [0, 0, 1, 1], [], []>} : vector<8x32xf32>, vector<32x8xf32>, vector<8x8xf32> -> vector<8x8xf32>
    %c0_48 = arith.constant 0 : index
    %c0_49 = arith.constant 0 : index
    %98 = vector.load %arg12[%c0_48, %c0_49] : memref<1x8xf32, #tpu.memory_space<vmem>>, vector<1x8xf32>
    %99 = vector.broadcast %98 : vector<1x8xf32> to vector<8x8xf32>
    %100 = arith.addf %97, %99 : vector<8x8xf32>
    %c0_50 = arith.constant 0 : index
    %c0_51 = arith.constant 0 : index
    %101 = vector.load %arg15[%c0_50, %c0_51] : memref<8x8xf32, #tpu.memory_space<vmem>>, vector<8x8xf32>
    tpu.vector_store %arg15[%c0_50, %c0_51], %100 {strides = array<i32>} : memref<8x8xf32, #tpu.memory_space<vmem>>, vector<8x8xf32>,
    return
  }
  func.func @transform_0(%arg0: i32) -> (i32, i32, i32) {
    %c0_i32 = arith.constant 0 : i32
    %c0_i32_0 = arith.constant 0 : i32
    %c0_i32_1 = arith.constant 0 : i32
    return %arg0, %c0_i32, %c0_i32_0 : i32, i32, i32
  }
  func.func @transform_1(%arg0: i32) -> (i32, i32) {
    %c0_i32 = arith.constant 0 : i32
    %c0_i32_0 = arith.constant 0 : i32
    %c0_i32_1 = arith.constant 0 : i32
    return %c0_i32, %c0_i32_0 : i32, i32
  }
  func.func @transform_2(%arg0: i32) -> (i32, i32) {
    %c0_i32 = arith.constant 0 : i32
    %c0_i32_0 = arith.constant 0 : i32
    %c0_i32_1 = arith.constant 0 : i32
    return %c0_i32, %c0_i32_0 : i32, i32
  }
  func.func @transform_3(%arg0: i32) -> (i32, i32) {
    %c0_i32 = arith.constant 0 : i32
    %c0_i32_0 = arith.constant 0 : i32
    %c0_i32_1 = arith.constant 0 : i32
    return %c0_i32, %c0_i32_0 : i32, i32
  }
  func.func @transform_4(%arg0: i32) -> (i32, i32) {
    %c0_i32 = arith.constant 0 : i32
    %c0_i32_0 = arith.constant 0 : i32
    %c0_i32_1 = arith.constant 0 : i32
    return %c0_i32, %c0_i32_0 : i32, i32
  }
  func.func @transform_5(%arg0: i32) -> (i32, i32) {
    %c0_i32 = arith.constant 0 : i32
    %c0_i32_0 = arith.constant 0 : i32
    %c0_i32_1 = arith.constant 0 : i32
    return %c0_i32, %c0_i32_0 : i32, i32
  }
  func.func @transform_6(%arg0: i32) -> (i32, i32) {
    %c0_i32 = arith.constant 0 : i32
    %c0_i32_0 = arith.constant 0 : i32
    %c0_i32_1 = arith.constant 0 : i32
    return %c0_i32, %c0_i32_0 : i32, i32
  }
  func.func @transform_7(%arg0: i32) -> (i32, i32) {
    %c0_i32 = arith.constant 0 : i32
    %c0_i32_0 = arith.constant 0 : i32
    %c0_i32_1 = arith.constant 0 : i32
    return %c0_i32, %c0_i32_0 : i32, i32
  }
  func.func @transform_8(%arg0: i32) -> (i32, i32) {
    %c0_i32 = arith.constant 0 : i32
    %c0_i32_0 = arith.constant 0 : i32
    %c0_i32_1 = arith.constant 0 : i32
    return %c0_i32, %c0_i32_0 : i32, i32
  }
  func.func @transform_9(%arg0: i32) -> (i32, i32) {
    %c0_i32 = arith.constant 0 : i32
    %c0_i32_0 = arith.constant 0 : i32
    %c0_i32_1 = arith.constant 0 : i32
    return %c0_i32, %c0_i32_0 : i32, i32
  }
  func.func @transform_10(%arg0: i32) -> (i32, i32) {
    %c0_i32 = arith.constant 0 : i32
    %c0_i32_0 = arith.constant 0 : i32
    %c0_i32_1 = arith.constant 0 : i32
    return %c0_i32, %c0_i32_0 : i32, i32
  }
  func.func @transform_11(%arg0: i32) -> (i32, i32) {
    %c0_i32 = arith.constant 0 : i32
    %c0_i32_0 = arith.constant 0 : i32
    %c0_i32_1 = arith.constant 0 : i32
    return %c0_i32, %c0_i32_0 : i32, i32
  }
  func.func @transform_12(%arg0: i32) -> (i32, i32) {
    %c0_i32 = arith.constant 0 : i32
    %c0_i32_0 = arith.constant 0 : i32
    %c0_i32_1 = arith.constant 0 : i32
    return %c0_i32, %c0_i32_0 : i32, i32
  }
  func.func @transform_13(%arg0: i32) -> (i32, i32) {
    %c0_i32 = arith.constant 0 : i32
    %c0_i32_0 = arith.constant 0 : i32
    %c0_i32_1 = arith.constant 0 : i32
    return %c0_i32, %c0_i32_0 : i32, i32
  }
  func.func @transform_14(%arg0: i32) -> (i32, i32) {
    %c0_i32 = arith.constant 0 : i32
    %c0_i32_0 = arith.constant 0 : i32
    return %arg0, %c0_i32 : i32, i32
  }
}

</mosaic_0001>

<llo_original>
// kernel: tpu_custom_call.1
$region0: #{tpu_custom_call.1}
  #allocation0 [shape = 'u32[]', space=smem, size = 0x4, offset = 0x4, fixed_abs, tag = 'smem constant byte address 0x4 - core index']
  #allocation1 [shape = 'u32[72,128]{1,0:T(1,128)}', space=vmem, size = 0x9000, scoped, tag = 'internal scratch']
  #allocation2 [shape = 'f32[1,1]{1,0:T(1,128)S(1)}', space=vmem, size = 0x200, scoped, tag = 'scoped memory for tpu_custom_call.1']
  %s0 = inlined_call_operand.vmem [shape: bf16[8,64,32], index: 0, kind: input, shape index: {}]
  %s1 = inlined_call_operand.vmem [shape: f32[1,32], index: 1, kind: input, shape index: {}]
  %s2 = inlined_call_operand.vmem [shape: f32[1,32], index: 2, kind: input, shape index: {}]
  %s3 = inlined_call_operand.<no memory space> [shape: f32[1,1], index: 3, kind: input, shape index: {}]
  %s4 = inlined_call_operand.vmem [shape: f32[1,32], index: 4, kind: input, shape index: {}]
  %s5 = inlined_call_operand.vmem [shape: f32[64,32], index: 5, kind: input, shape index: {}]
  %s6 = inlined_call_operand.vmem [shape: bf16[32,96], index: 6, kind: input, shape index: {}]
  %s7 = inlined_call_operand.vmem [shape: f32[1,96], index: 7, kind: input, shape index: {}]
  %s8 = inlined_call_operand.vmem [shape: bf16[32,64], index: 8, kind: input, shape index: {}]
  %s9 = inlined_call_operand.vmem [shape: f32[1,64], index: 9, kind: input, shape index: {}]
  %s10 = inlined_call_operand.vmem [shape: f32[32,8], index: 10, kind: input, shape index: {}]
  %s11 = inlined_call_operand.vmem [shape: f32[1,8], index: 11, kind: input, shape index: {}]
  %s12 = inlined_call_operand.vmem [shape: f32[32,4], index: 12, kind: input, shape index: {}]
  %s13 = inlined_call_operand.vmem [shape: f32[4,32], index: 13, kind: input, shape index: {}]
  %s14 = inlined_call_operand.hbm [shape: f32[8,8], index: 14, kind: output, shape index: {}]
  %s15 = sld [smem:[#allocation0]]
  $region66: #{tpu_custom_call.1} parent=0
    _
  %s17 = ssub.s32 1, %s15
  %s18 = scalar_select 0, %s17, %s15
  %v19 = vstv %s3
  %20 = vst [vmem:[#allocation2] sm:$0x1] %v19
  $region1: #{tpu_custom_call.1} parent=0
    #allocation3 [shape = 'u8[4096]{0}', space=vmem, size = 0x1000, scoped, tag = 'output window, operand 0, single buffered']
    #allocation4 [shape = 's32[1]{0}', space=sflag, size = 0x4, scoped, tag = 'scoped memory for tpu_custom_call.1']
    %21 = vsyncpa [#allocation4], 0
    // Predicated region
    $region2: #{tpu_custom_call.1} parent=1 // pred_check
      _
    $region3: #{tpu_custom_call.1} parent=1 // pred_check_branch
      %23 = sbr.rel (0) target = $region5
    $region4: #{tpu_custom_call.1} parent=1 // pred_region
      _
    $region5: #{tpu_custom_call.1} parent=1 // pred_fallthru
      _
    // Predicated region
    $region6: #{tpu_custom_call.1} parent=1 // pred_check
      _
    $region7: #{tpu_custom_call.1} parent=1 // pred_check_branch
      %25 = sbr.rel (0) target = $region9
    $region8: #{tpu_custom_call.1} parent=1 // pred_region
      _
    $region9: #{tpu_custom_call.1} parent=1 // pred_fallthru
      _
    // Predicated region
    $region10: #{tpu_custom_call.1} parent=1 // pred_check
      _
    $region11: #{tpu_custom_call.1} parent=1 // pred_check_branch
      %27 = sbr.rel (0) target = $region13
    $region12: #{tpu_custom_call.1} parent=1 // pred_region
      _
    $region13: #{tpu_custom_call.1} parent=1 // pred_fallthru
      _
    // Predicated region
    $region14: #{tpu_custom_call.1} parent=1 // pred_check
      _
    $region15: #{tpu_custom_call.1} parent=1 // pred_check_branch
      %29 = sbr.rel (0) target = $region17
    $region16: #{tpu_custom_call.1} parent=1 // pred_region
      _
    $region17: #{tpu_custom_call.1} parent=1 // pred_fallthru
      _
    // Predicated region
    $region18: #{tpu_custom_call.1} parent=1 // pred_check
      _
    $region19: #{tpu_custom_call.1} parent=1 // pred_check_branch
      %31 = sbr.rel (0) target = $region21
    $region20: #{tpu_custom_call.1} parent=1 // pred_region
      _
    $region21: #{tpu_custom_call.1} parent=1 // pred_fallthru
      _
    // Predicated region
    $region22: #{tpu_custom_call.1} parent=1 // pred_check
      _
    $region23: #{tpu_custom_call.1} parent=1 // pred_check_branch
      %33 = sbr.rel (0) target = $region25
    $region24: #{tpu_custom_call.1} parent=1 // pred_region
      _
    $region25: #{tpu_custom_call.1} parent=1 // pred_fallthru
      _
    // Predicated region
    $region26: #{tpu_custom_call.1} parent=1 // pred_check
      _
    $region27: #{tpu_custom_call.1} parent=1 // pred_check_branch
      %35 = sbr.rel (0) target = $region29
    $region28: #{tpu_custom_call.1} parent=1 // pred_region
      _
    $region29: #{tpu_custom_call.1} parent=1 // pred_fallthru
      _
    // Predicated region
    $region30: #{tpu_custom_call.1} parent=1 // pred_check
      _
    $region31: #{tpu_custom_call.1} parent=1 // pred_check_branch
      %37 = sbr.rel (0) target = $region33
    $region32: #{tpu_custom_call.1} parent=1 // pred_region
      _
    $region33: #{tpu_custom_call.1} parent=1 // pred_fallthru
      _
    // Predicated region
    $region34: #{tpu_custom_call.1} parent=1 // pred_check
      _
    $region35: #{tpu_custom_call.1} parent=1 // pred_check_branch
      %39 = sbr.rel (0) target = $region37
    $region36: #{tpu_custom_call.1} parent=1 // pred_region
      _
    $region37: #{tpu_custom_call.1} parent=1 // pred_fallthru
      _
    // Predicated region
    $region38: #{tpu_custom_call.1} parent=1 // pred_check
      _
    $region39: #{tpu_custom_call.1} parent=1 // pred_check_branch
      %41 = sbr.rel (0) target = $region41
    $region40: #{tpu_custom_call.1} parent=1 // pred_region
      _
    $region41: #{tpu_custom_call.1} parent=1 // pred_fallthru
      _
    // Predicated region
    $region42: #{tpu_custom_call.1} parent=1 // pred_check
      _
    $region43: #{tpu_custom_call.1} parent=1 // pred_check_branch
      %43 = sbr.rel (0) target = $region45
    $region44: #{tpu_custom_call.1} parent=1 // pred_region
      _
    $region45: #{tpu_custom_call.1} parent=1 // pred_fallthru
      _
    // Predicated region
    $region46: #{tpu_custom_call.1} parent=1 // pred_check
      _
    $region47: #{tpu_custom_call.1} parent=1 // pred_check_branch
      %45 = sbr.rel (0) target = $region49
    $region48: #{tpu_custom_call.1} parent=1 // pred_region
      _
    $region49: #{tpu_custom_call.1} parent=1 // pred_fallthru
      _
    // Predicated region
    $region50: #{tpu_custom_call.1} parent=1 // pred_check
      _
    $region51: #{tpu_custom_call.1} parent=1 // pred_check_branch
      %47 = sbr.rel (0) target = $region53
    $region52: #{tpu_custom_call.1} parent=1 // pred_region
      _
    $region53: #{tpu_custom_call.1} parent=1 // pred_fallthru
      _
    // Predicated region
    $region54: #{tpu_custom_call.1} parent=1 // pred_check
      _
    $region55: #{tpu_custom_call.1} parent=1 // pred_check_branch
      %49 = sbr.rel (0) target = $region57
    $region56: #{tpu_custom_call.1} parent=1 // pred_region
      _
    $region57: #{tpu_custom_call.1} parent=1 // pred_fallthru
      _
    %v51 = vld [vmem:[%s0] sm:$0xf]
    %v52 = vld [vmem:[%s0 + $0x4] sm:$0xf]
    %v53 = vld [vmem:[%s0 + $0x8] sm:$0xf]
    %v54 = vld [vmem:[%s0 + $0xc] sm:$0xf]
    %v55 = vld [vmem:[%s0 + $0x10] sm:$0xf]
    %v56 = vld [vmem:[%s0 + $0x14] sm:$0xf]
    %v57 = vld [vmem:[%s0 + $0x18] sm:$0xf]
    %v58 = vld [vmem:[%s0 + $0x1c] sm:$0xf]
    %v59 = vld [vmem:[%s0 + $0x20] sm:$0xf]
    %v60 = vld [vmem:[%s0 + $0x24] sm:$0xf]
    %v61 = vld [vmem:[%s0 + $0x28] sm:$0xf]
    %v62 = vld [vmem:[%s0 + $0x2c] sm:$0xf]
    %v63 = vld [vmem:[%s0 + $0x30] sm:$0xf]
    %v64 = vld [vmem:[%s0 + $0x34] sm:$0xf]
    %v65 = vld [vmem:[%s0 + $0x38] sm:$0xf]
    %v66 = vld [vmem:[%s0 + $0x3c] sm:$0xf]
    %v67 = vld [vmem:[%s0 + $0x40] sm:$0xf]
    %v68 = vld [vmem:[%s0 + $0x44] sm:$0xf]
    %v69 = vld [vmem:[%s0 + $0x48] sm:$0xf]
    %v70 = vld [vmem:[%s0 + $0x4c] sm:$0xf]
    %v71 = vld [vmem:[%s0 + $0x50] sm:$0xf]
    %v72 = vld [vmem:[%s0 + $0x54] sm:$0xf]
    %v73 = vld [vmem:[%s0 + $0x58] sm:$0xf]
    %v74 = vld [vmem:[%s0 + $0x5c] sm:$0xf]
    %v75 = vld [vmem:[%s0 + $0x60] sm:$0xf]
    %v76 = vld [vmem:[%s0 + $0x64] sm:$0xf]
    %v77 = vld [vmem:[%s0 + $0x68] sm:$0xf]
    %v78 = vld [vmem:[%s0 + $0x6c] sm:$0xf]
    %v79 = vld [vmem:[%s0 + $0x70] sm:$0xf]
    %v80 = vld [vmem:[%s0 + $0x74] sm:$0xf]
    %v81 = vld [vmem:[%s0 + $0x78] sm:$0xf]
    %v82 = vld [vmem:[%s0 + $0x7c] sm:$0xf]
    %v83 = vld [vmem:[%s0 + $0x80] sm:$0xf]
    %v84 = vld [vmem:[%s0 + $0x84] sm:$0xf]
    %v85 = vld [vmem:[%s0 + $0x88] sm:$0xf]
    %v86 = vld [vmem:[%s0 + $0x8c] sm:$0xf]
    %v87 = vld [vmem:[%s0 + $0x90] sm:$0xf]
    %v88 = vld [vmem:[%s0 + $0x94] sm:$0xf]
    %v89 = vld [vmem:[%s0 + $0x98] sm:$0xf]
    %v90 = vld [vmem:[%s0 + $0x9c] sm:$0xf]
    %v91 = vld [vmem:[%s0 + $0xa0] sm:$0xf]
    %v92 = vld [vmem:[%s0 + $0xa4] sm:$0xf]
    %v93 = vld [vmem:[%s0 + $0xa8] sm:$0xf]
    %v94 = vld [vmem:[%s0 + $0xac] sm:$0xf]
    %v95 = vld [vmem:[%s0 + $0xb0] sm:$0xf]
    %v96 = vld [vmem:[%s0 + $0xb4] sm:$0xf]
    %v97 = vld [vmem:[%s0 + $0xb8] sm:$0xf]
    %v98 = vld [vmem:[%s0 + $0xbc] sm:$0xf]
    %v99 = vld [vmem:[%s0 + $0xc0] sm:$0xf]
    %v100 = vld [vmem:[%s0 + $0xc4] sm:$0xf]
    %v101 = vld [vmem:[%s0 + $0xc8] sm:$0xf]
    %v102 = vld [vmem:[%s0 + $0xcc] sm:$0xf]
    %v103 = vld [vmem:[%s0 + $0xd0] sm:$0xf]
    %v104 = vld [vmem:[%s0 + $0xd4] sm:$0xf]
    %v105 = vld [vmem:[%s0 + $0xd8] sm:$0xf]
    %v106 = vld [vmem:[%s0 + $0xdc] sm:$0xf]
    %v107 = vld [vmem:[%s0 + $0xe0] sm:$0xf]
    %v108 = vld [vmem:[%s0 + $0xe4] sm:$0xf]
    %v109 = vld [vmem:[%s0 + $0xe8] sm:$0xf]
    %v110 = vld [vmem:[%s0 + $0xec] sm:$0xf]
    %v111 = vld [vmem:[%s0 + $0xf0] sm:$0xf]
    %v112 = vld [vmem:[%s0 + $0xf4] sm:$0xf]
    %v113 = vld [vmem:[%s0 + $0xf8] sm:$0xf]
    %v114 = vld [vmem:[%s0 + $0xfc] sm:$0xf]
    %v115 = vunpack.c.l.bf16 %v51
    %v116 = vunpack.c.l.bf16 %v52
    %v117 = vunpack.c.l.bf16 %v53
    %v118 = vunpack.c.l.bf16 %v54
    %v119 = vunpack.c.l.bf16 %v55
    %v120 = vunpack.c.l.bf16 %v56
    %v121 = vunpack.c.l.bf16 %v57
    %v122 = vunpack.c.l.bf16 %v58
    %v123 = vunpack.c.l.bf16 %v59
    %v124 = vunpack.c.l.bf16 %v60
    %v125 = vunpack.c.l.bf16 %v61
    %v126 = vunpack.c.l.bf16 %v62
    %v127 = vunpack.c.l.bf16 %v63
    %v128 = vunpack.c.l.bf16 %v64
    %v129 = vunpack.c.l.bf16 %v65
    %v130 = vunpack.c.l.bf16 %v66
    %v131 = vunpack.c.l.bf16 %v67
    %v132 = vunpack.c.l.bf16 %v68
    %v133 = vunpack.c.l.bf16 %v69
    %v134 = vunpack.c.l.bf16 %v70
    %v135 = vunpack.c.l.bf16 %v71
    %v136 = vunpack.c.l.bf16 %v72
    %v137 = vunpack.c.l.bf16 %v73
    %v138 = vunpack.c.l.bf16 %v74
    %v139 = vunpack.c.l.bf16 %v75
    %v140 = vunpack.c.l.bf16 %v76
    %v141 = vunpack.c.l.bf16 %v77
    %v142 = vunpack.c.l.bf16 %v78
    %v143 = vunpack.c.l.bf16 %v79
    %v144 = vunpack.c.l.bf16 %v80
    %v145 = vunpack.c.l.bf16 %v81
    %v146 = vunpack.c.l.bf16 %v82
    %v147 = vunpack.c.l.bf16 %v83
    %v148 = vunpack.c.l.bf16 %v84
    %v149 = vunpack.c.l.bf16 %v85
    %v150 = vunpack.c.l.bf16 %v86
    %v151 = vunpack.c.l.bf16 %v87
    %v152 = vunpack.c.l.bf16 %v88
    %v153 = vunpack.c.l.bf16 %v89
    %v154 = vunpack.c.l.bf16 %v90
    %v155 = vunpack.c.l.bf16 %v91
    %v156 = vunpack.c.l.bf16 %v92
    %v157 = vunpack.c.l.bf16 %v93
    %v158 = vunpack.c.l.bf16 %v94
    %v159 = vunpack.c.l.bf16 %v95
    %v160 = vunpack.c.l.bf16 %v96
    %v161 = vunpack.c.l.bf16 %v97
    %v162 = vunpack.c.l.bf16 %v98
    %v163 = vunpack.c.l.bf16 %v99
    %v164 = vunpack.c.l.bf16 %v100
    %v165 = vunpack.c.l.bf16 %v101
    %v166 = vunpack.c.l.bf16 %v102
    %v167 = vunpack.c.l.bf16 %v103
    %v168 = vunpack.c.l.bf16 %v104
    %v169 = vunpack.c.l.bf16 %v105
    %v170 = vunpack.c.l.bf16 %v106
    %v171 = vunpack.c.l.bf16 %v107
    %v172 = vunpack.c.l.bf16 %v108
    %v173 = vunpack.c.l.bf16 %v109
    %v174 = vunpack.c.l.bf16 %v110
    %v175 = vunpack.c.l.bf16 %v111
    %v176 = vunpack.c.l.bf16 %v112
    %v177 = vunpack.c.l.bf16 %v113
    %v178 = vunpack.c.l.bf16 %v114
    %vm179 = vcmask 261120
    %v180 = vsel %vm179, %v115, 0.0
    %v181 = vsel %vm179, %v116, 0.0
    %v182 = vadd.f32 %v180, %v181
    %v183 = vsel %vm179, %v117, 0.0
    %v184 = vadd.f32 %v182, %v183
    %v185 = vsel %vm179, %v118, 0.0
    %v186 = vadd.f32 %v184, %v185
    %v187 = vsel %vm179, %v119, 0.0
    %v188 = vadd.f32 %v186, %v187
    %v189 = vsel %vm179, %v120, 0.0
    %v190 = vadd.f32 %v188, %v189
    %v191 = vsel %vm179, %v121, 0.0
    %v192 = vadd.f32 %v190, %v191
    %v193 = vsel %vm179, %v122, 0.0
    %v194 = vadd.f32 %v192, %v193
    %v195 = vrot.slane %v194, 4
    %v196 = vadd.f32 %v194, %v195
    %v197 = vrot.slane %v196, 2
    %v198 = vadd.f32 %v196, %v197
    %v199 = vrot.slane %v198, 1
    %v200 = vadd.f32 %v198, %v199
    %v201 = vsel %vm179, %v123, 0.0
    %v202 = vsel %vm179, %v124, 0.0
    %v203 = vadd.f32 %v201, %v202
    %v204 = vsel %vm179, %v125, 0.0
    %v205 = vadd.f32 %v203, %v204
    %v206 = vsel %vm179, %v126, 0.0
    %v207 = vadd.f32 %v205, %v206
    %v208 = vsel %vm179, %v127, 0.0
    %v209 = vadd.f32 %v207, %v208
    %v210 = vsel %vm179, %v128, 0.0
    %v211 = vadd.f32 %v209, %v210
    %v212 = vsel %vm179, %v129, 0.0
    %v213 = vadd.f32 %v211, %v212
    %v214 = vsel %vm179, %v130, 0.0
    %v215 = vadd.f32 %v213, %v214
    %v216 = vrot.slane %v215, 4
    %v217 = vadd.f32 %v215, %v216
    %v218 = vrot.slane %v217, 2
    %v219 = vadd.f32 %v217, %v218
    %v220 = vrot.slane %v219, 1
    %v221 = vadd.f32 %v219, %v220
    %v222 = vsel %vm179, %v131, 0.0
    %v223 = vsel %vm179, %v132, 0.0
    %v224 = vadd.f32 %v222, %v223
    %v225 = vsel %vm179, %v133, 0.0
    %v226 = vadd.f32 %v224, %v225
    %v227 = vsel %vm179, %v134, 0.0
    %v228 = vadd.f32 %v226, %v227
    %v229 = vsel %vm179, %v135, 0.0
    %v230 = vadd.f32 %v228, %v229
    %v231 = vsel %vm179, %v136, 0.0
    %v232 = vadd.f32 %v230, %v231
    %v233 = vsel %vm179, %v137, 0.0
    %v234 = vadd.f32 %v232, %v233
    %v235 = vsel %vm179, %v138, 0.0
    %v236 = vadd.f32 %v234, %v235
    %v237 = vrot.slane %v236, 4
    %v238 = vadd.f32 %v236, %v237
    %v239 = vrot.slane %v238, 2
    %v240 = vadd.f32 %v238, %v239
    %v241 = vrot.slane %v240, 1
    %v242 = vadd.f32 %v240, %v241
    %v243 = vsel %vm179, %v139, 0.0
    %v244 = vsel %vm179, %v140, 0.0
    %v245 = vadd.f32 %v243, %v244
    %v246 = vsel %vm179, %v141, 0.0
    %v247 = vadd.f32 %v245, %v246
    %v248 = vsel %vm179, %v142, 0.0
    %v249 = vadd.f32 %v247, %v248
    %v250 = vsel %vm179, %v143, 0.0
    %v251 = vadd.f32 %v249, %v250
    %v252 = vsel %vm179, %v144, 0.0
    %v253 = vadd.f32 %v251, %v252
    %v254 = vsel %vm179, %v145, 0.0
    %v255 = vadd.f32 %v253, %v254
    %v256 = vsel %vm179, %v146, 0.0
    %v257 = vadd.f32 %v255, %v256
    %v258 = vrot.slane %v257, 4
    %v259 = vadd.f32 %v257, %v258
    %v260 = vrot.slane %v259, 2
    %v261 = vadd.f32 %v259, %v260
    %v262 = vrot.slane %v261, 1
    %v263 = vadd.f32 %v261, %v262
    %v264 = vsel %vm179, %v147, 0.0
    %v265 = vsel %vm179, %v148, 0.0
    %v266 = vadd.f32 %v264, %v265
    %v267 = vsel %vm179, %v149, 0.0
    %v268 = vadd.f32 %v266, %v267
    %v269 = vsel %vm179, %v150, 0.0
    %v270 = vadd.f32 %v268, %v269
    %v271 = vsel %vm179, %v151, 0.0
    %v272 = vadd.f32 %v270, %v271
    %v273 = vsel %vm179, %v152, 0.0
    %v274 = vadd.f32 %v272, %v273
    %v275 = vsel %vm179, %v153, 0.0
    %v276 = vadd.f32 %v274, %v275
    %v277 = vsel %vm179, %v154, 0.0
    %v278 = vadd.f32 %v276, %v277
    %v279 = vrot.slane %v278, 4
    %v280 = vadd.f32 %v278, %v279
    %v281 = vrot.slane %v280, 2
    %v282 = vadd.f32 %v280, %v281
    %v283 = vrot.slane %v282, 1
    %v284 = vadd.f32 %v282, %v283
    %v285 = vsel %vm179, %v155, 0.0
    %v286 = vsel %vm179, %v156, 0.0
    %v287 = vadd.f32 %v285, %v286
    %v288 = vsel %vm179, %v157, 0.0
    %v289 = vadd.f32 %v287, %v288
    %v290 = vsel %vm179, %v158, 0.0
    %v291 = vadd.f32 %v289, %v290
    %v292 = vsel %vm179, %v159, 0.0
    %v293 = vadd.f32 %v291, %v292
    %v294 = vsel %vm179, %v160, 0.0
    %v295 = vadd.f32 %v293, %v294
    %v296 = vsel %vm179, %v161, 0.0
    %v297 = vadd.f32 %v295, %v296
    %v298 = vsel %vm179, %v162, 0.0
    %v299 = vadd.f32 %v297, %v298
    %v300 = vrot.slane %v299, 4
    %v301 = vadd.f32 %v299, %v300
    %v302 = vrot.slane %v301, 2
    %v303 = vadd.f32 %v301, %v302
    %v304 = vrot.slane %v303, 1
    %v305 = vadd.f32 %v303, %v304
    %v306 = vsel %vm179, %v163, 0.0
    %v307 = vsel %vm179, %v164, 0.0
    %v308 = vadd.f32 %v306, %v307
    %v309 = vsel %vm179, %v165, 0.0
    %v310 = vadd.f32 %v308, %v309
    %v311 = vsel %vm179, %v166, 0.0
    %v312 = vadd.f32 %v310, %v311
    %v313 = vsel %vm179, %v167, 0.0
    %v314 = vadd.f32 %v312, %v313
    %v315 = vsel %vm179, %v168, 0.0
    %v316 = vadd.f32 %v314, %v315
    %v317 = vsel %vm179, %v169, 0.0
    %v318 = vadd.f32 %v316, %v317
    %v319 = vsel %vm179, %v170, 0.0
    %v320 = vadd.f32 %v318, %v319
    %v321 = vrot.slane %v320, 4
    %v322 = vadd.f32 %v320, %v321
    %v323 = vrot.slane %v322, 2
    %v324 = vadd.f32 %v322, %v323
    %v325 = vrot.slane %v324, 1
    %v326 = vadd.f32 %v324, %v325
    %v327 = vsel %vm179, %v171, 0.0
    %v328 = vsel %vm179, %v172, 0.0
    %v329 = vadd.f32 %v327, %v328
    %v330 = vsel %vm179, %v173, 0.0
    %v331 = vadd.f32 %v329, %v330
    %v332 = vsel %vm179, %v174, 0.0
    %v333 = vadd.f32 %v331, %v332
    %v334 = vsel %vm179, %v175, 0.0
    %v335 = vadd.f32 %v333, %v334
    %v336 = vsel %vm179, %v176, 0.0
    %v337 = vadd.f32 %v335, %v336
    %v338 = vsel %vm179, %v177, 0.0
    %v339 = vadd.f32 %v337, %v338
    %v340 = vsel %vm179, %v178, 0.0
    %v341 = vadd.f32 %v339, %v340
    %v342 = vrot.slane %v341, 4
    %v343 = vadd.f32 %v341, %v342
    %v344 = vrot.slane %v343, 2
    %v345 = vadd.f32 %v343, %v344
    %v346 = vrot.slane %v345, 1
    %v347 = vadd.f32 %v345, %v346
    %v348 = vmul.f32 %v200, 0.015625
    %v349 = vmul.f32 %v221, 0.015625
    %v350 = vmul.f32 %v242, 0.015625
    %v351 = vmul.f32 %v263, 0.015625
    %v352 = vmul.f32 %v284, 0.015625
    %v353 = vmul.f32 %v305, 0.015625
    %v354 = vmul.f32 %v326, 0.015625
    %v355 = vmul.f32 %v347, 0.015625
    %v356 = vsub.f32 %v115, %v348
    %v357 = vsub.f32 %v116, %v348
    %v358 = vsub.f32 %v117, %v348
    %v359 = vsub.f32 %v118, %v348
    %v360 = vsub.f32 %v119, %v348
    %v361 = vsub.f32 %v120, %v348
    %v362 = vsub.f32 %v121, %v348
    %v363 = vsub.f32 %v122, %v348
    %v364 = vsub.f32 %v123, %v349
    %v365 = vsub.f32 %v124, %v349
    %v366 = vsub.f32 %v125, %v349
    %v367 = vsub.f32 %v126, %v349
    %v368 = vsub.f32 %v127, %v349
    %v369 = vsub.f32 %v128, %v349
    %v370 = vsub.f32 %v129, %v349
    %v371 = vsub.f32 %v130, %v349
    %v372 = vsub.f32 %v131, %v350
    %v373 = vsub.f32 %v132, %v350
    %v374 = vsub.f32 %v133, %v350
    %v375 = vsub.f32 %v134, %v350
    %v376 = vsub.f32 %v135, %v350
    %v377 = vsub.f32 %v136, %v350
    %v378 = vsub.f32 %v137, %v350
    %v379 = vsub.f32 %v138, %v350
    %v380 = vsub.f32 %v139, %v351
    %v381 = vsub.f32 %v140, %v351
    %v382 = vsub.f32 %v141, %v351
    %v383 = vsub.f32 %v142, %v351
    %v384 = vsub.f32 %v143, %v351
    %v385 = vsub.f32 %v144, %v351
    %v386 = vsub.f32 %v145, %v351
    %v387 = vsub.f32 %v146, %v351
    %v388 = vsub.f32 %v147, %v352
    %v389 = vsub.f32 %v148, %v352
    %v390 = vsub.f32 %v149, %v352
    %v391 = vsub.f32 %v150, %v352
    %v392 = vsub.f32 %v151, %v352
    %v393 = vsub.f32 %v152, %v352
    %v394 = vsub.f32 %v153, %v352
    %v395 = vsub.f32 %v154, %v352
    %v396 = vsub.f32 %v155, %v353
    %v397 = vsub.f32 %v156, %v353
    %v398 = vsub.f32 %v157, %v353
    %v399 = vsub.f32 %v158, %v353
    %v400 = vsub.f32 %v159, %v353
    %v401 = vsub.f32 %v160, %v353
    %v402 = vsub.f32 %v161, %v353
    %v403 = vsub.f32 %v162, %v353
    %v404 = vsub.f32 %v163, %v354
    %v405 = vsub.f32 %v164, %v354
    %v406 = vsub.f32 %v165, %v354
    %v407 = vsub.f32 %v166, %v354
    %v408 = vsub.f32 %v167, %v354
    %v409 = vsub.f32 %v168, %v354
    %v410 = vsub.f32 %v169, %v354
    %v411 = vsub.f32 %v170, %v354
    %v412 = vsub.f32 %v171, %v355
    %v413 = vsub.f32 %v172, %v355
    %v414 = vsub.f32 %v173, %v355
    %v415 = vsub.f32 %v174, %v355
    %v416 = vsub.f32 %v175, %v355
    %v417 = vsub.f32 %v176, %v355
    %v418 = vsub.f32 %v177, %v355
    %v419 = vsub.f32 %v178, %v355
    %v420 = vmul.f32 %v356, %v356
    %v421 = vmul.f32 %v357, %v357
    %v422 = vmul.f32 %v358, %v358
    %v423 = vmul.f32 %v359, %v359
    %v424 = vmul.f32 %v360, %v360
    %v425 = vmul.f32 %v361, %v361
    %v426 = vmul.f32 %v362, %v362
    %v427 = vmul.f32 %v363, %v363
    %v428 = vmul.f32 %v364, %v364
    %v429 = vmul.f32 %v365, %v365
    %v430 = vmul.f32 %v366, %v366
    %v431 = vmul.f32 %v367, %v367
    %v432 = vmul.f32 %v368, %v368
    %v433 = vmul.f32 %v369, %v369
    %v434 = vmul.f32 %v370, %v370
    %v435 = vmul.f32 %v371, %v371
    %v436 = vmul.f32 %v372, %v372
    %v437 = vmul.f32 %v373, %v373
    %v438 = vmul.f32 %v374, %v374
    %v439 = vmul.f32 %v375, %v375
    %v440 = vmul.f32 %v376, %v376
    %v441 = vmul.f32 %v377, %v377
    %v442 = vmul.f32 %v378, %v378
    %v443 = vmul.f32 %v379, %v379
    %v444 = vmul.f32 %v380, %v380
    %v445 = vmul.f32 %v381, %v381
    %v446 = vmul.f32 %v382, %v382
    %v447 = vmul.f32 %v383, %v383
    %v448 = vmul.f32 %v384, %v384
    %v449 = vmul.f32 %v385, %v385
    %v450 = vmul.f32 %v386, %v386
    %v451 = vmul.f32 %v387, %v387
    %v452 = vmul.f32 %v388, %v388
    %v453 = vmul.f32 %v389, %v389
    %v454 = vmul.f32 %v390, %v390
    %v455 = vmul.f32 %v391, %v391
    %v456 = vmul.f32 %v392, %v392
    %v457 = vmul.f32 %v393, %v393
    %v458 = vmul.f32 %v394, %v394
    %v459 = vmul.f32 %v395, %v395
    %v460 = vmul.f32 %v396, %v396
    %v461 = vmul.f32 %v397, %v397
    %v462 = vmul.f32 %v398, %v398
    %v463 = vmul.f32 %v399, %v399
    %v464 = vmul.f32 %v400, %v400
    %v465 = vmul.f32 %v401, %v401
    %v466 = vmul.f32 %v402, %v402
    %v467 = vmul.f32 %v403, %v403
    %v468 = vmul.f32 %v404, %v404
    %v469 = vmul.f32 %v405, %v405
    %v470 = vmul.f32 %v406, %v406
    %v471 = vmul.f32 %v407, %v407
    %v472 = vmul.f32 %v408, %v408
    %v473 = vmul.f32 %v409, %v409
    %v474 = vmul.f32 %v410, %v410
    %v475 = vmul.f32 %v411, %v411
    %v476 = vmul.f32 %v412, %v412
    %v477 = vmul.f32 %v413, %v413
    %v478 = vmul.f32 %v414, %v414
    %v479 = vmul.f32 %v415, %v415
    %v480 = vmul.f32 %v416, %v416
    %v481 = vmul.f32 %v417, %v417
    %v482 = vmul.f32 %v418, %v418
    %v483 = vmul.f32 %v419, %v419
    %v484 = vsel %vm179, %v420, 0.0
    %v485 = vsel %vm179, %v421, 0.0
    %v486 = vadd.f32 %v484, %v485
    %v487 = vsel %vm179, %v422, 0.0
    %v488 = vadd.f32 %v486, %v487
    %v489 = vsel %vm179, %v423, 0.0
    %v490 = vadd.f32 %v488, %v489
    %v491 = vsel %vm179, %v424, 0.0
    %v492 = vadd.f32 %v490, %v491
    %v493 = vsel %vm179, %v425, 0.0
    %v494 = vadd.f32 %v492, %v493
    %v495 = vsel %vm179, %v426, 0.0
    %v496 = vadd.f32 %v494, %v495
    %v497 = vsel %vm179, %v427, 0.0
    %v498 = vadd.f32 %v496, %v497
    %v499 = vrot.slane %v498, 4
    %v500 = vadd.f32 %v498, %v499
    %v501 = vrot.slane %v500, 2
    %v502 = vadd.f32 %v500, %v501
    %v503 = vrot.slane %v502, 1
    %v504 = vadd.f32 %v502, %v503
    %v505 = vsel %vm179, %v428, 0.0
    %v506 = vsel %vm179, %v429, 0.0
    %v507 = vadd.f32 %v505, %v506
    %v508 = vsel %vm179, %v430, 0.0
    %v509 = vadd.f32 %v507, %v508
    %v510 = vsel %vm179, %v431, 0.0
    %v511 = vadd.f32 %v509, %v510
    %v512 = vsel %vm179, %v432, 0.0
    %v513 = vadd.f32 %v511, %v512
    %v514 = vsel %vm179, %v433, 0.0
    %v515 = vadd.f32 %v513, %v514
    %v516 = vsel %vm179, %v434, 0.0
    %v517 = vadd.f32 %v515, %v516
    %v518 = vsel %vm179, %v435, 0.0
    %v519 = vadd.f32 %v517, %v518
    %v520 = vrot.slane %v519, 4
    %v521 = vadd.f32 %v519, %v520
    %v522 = vrot.slane %v521, 2
    %v523 = vadd.f32 %v521, %v522
    %v524 = vrot.slane %v523, 1
    %v525 = vadd.f32 %v523, %v524
    %v526 = vsel %vm179, %v436, 0.0
    %v527 = vsel %vm179, %v437, 0.0
    %v528 = vadd.f32 %v526, %v527
    %v529 = vsel %vm179, %v438, 0.0
    %v530 = vadd.f32 %v528, %v529
    %v531 = vsel %vm179, %v439, 0.0
    %v532 = vadd.f32 %v530, %v531
    %v533 = vsel %vm179, %v440, 0.0
    %v534 = vadd.f32 %v532, %v533
    %v535 = vsel %vm179, %v441, 0.0
    %v536 = vadd.f32 %v534, %v535
    %v537 = vsel %vm179, %v442, 0.0
    %v538 = vadd.f32 %v536, %v537
    %v539 = vsel %vm179, %v443, 0.0
    %v540 = vadd.f32 %v538, %v539
    %v541 = vrot.slane %v540, 4
    %v542 = vadd.f32 %v540, %v541
    %v543 = vrot.slane %v542, 2
    %v544 = vadd.f32 %v542, %v543
    %v545 = vrot.slane %v544, 1
    %v546 = vadd.f32 %v544, %v545
    %v547 = vsel %vm179, %v444, 0.0
    %v548 = vsel %vm179, %v445, 0.0
    %v549 = vadd.f32 %v547, %v548
    %v550 = vsel %vm179, %v446, 0.0
    %v551 = vadd.f32 %v549, %v550
    %v552 = vsel %vm179, %v447, 0.0
    %v553 = vadd.f32 %v551, %v552
    %v554 = vsel %vm179, %v448, 0.0
    %v555 = vadd.f32 %v553, %v554
    %v556 = vsel %vm179, %v449, 0.0
    %v557 = vadd.f32 %v555, %v556
    %v558 = vsel %vm179, %v450, 0.0
    %v559 = vadd.f32 %v557, %v558
    %v560 = vsel %vm179, %v451, 0.0
    %v561 = vadd.f32 %v559, %v560
    %v562 = vrot.slane %v561, 4
    %v563 = vadd.f32 %v561, %v562
    %v564 = vrot.slane %v563, 2
    %v565 = vadd.f32 %v563, %v564
    %v566 = vrot.slane %v565, 1
    %v567 = vadd.f32 %v565, %v566
    %v568 = vsel %vm179, %v452, 0.0
    %v569 = vsel %vm179, %v453, 0.0
    %v570 = vadd.f32 %v568, %v569
    %v571 = vsel %vm179, %v454, 0.0
    %v572 = vadd.f32 %v570, %v571
    %v573 = vsel %vm179, %v455, 0.0
    %v574 = vadd.f32 %v572, %v573
    %v575 = vsel %vm179, %v456, 0.0
    %v576 = vadd.f32 %v574, %v575
    %v577 = vsel %vm179, %v457, 0.0
    %v578 = vadd.f32 %v576, %v577
    %v579 = vsel %vm179, %v458, 0.0
    %v580 = vadd.f32 %v578, %v579
    %v581 = vsel %vm179, %v459, 0.0
    %v582 = vadd.f32 %v580, %v581
    %v583 = vrot.slane %v582, 4
    %v584 = vadd.f32 %v582, %v583
    %v585 = vrot.slane %v584, 2
    %v586 = vadd.f32 %v584, %v585
    %v587 = vrot.slane %v586, 1
    %v588 = vadd.f32 %v586, %v587
    %v589 = vsel %vm179, %v460, 0.0
    %v590 = vsel %vm179, %v461, 0.0
    %v591 = vadd.f32 %v589, %v590
    %v592 = vsel %vm179, %v462, 0.0
    %v593 = vadd.f32 %v591, %v592
    %v594 = vsel %vm179, %v463, 0.0
    %v595 = vadd.f32 %v593, %v594
    %v596 = vsel %vm179, %v464, 0.0
    %v597 = vadd.f32 %v595, %v596
    %v598 = vsel %vm179, %v465, 0.0
    %v599 = vadd.f32 %v597, %v598
    %v600 = vsel %vm179, %v466, 0.0
    %v601 = vadd.f32 %v599, %v600
    %v602 = vsel %vm179, %v467, 0.0
    %v603 = vadd.f32 %v601, %v602
    %v604 = vrot.slane %v603, 4
    %v605 = vadd.f32 %v603, %v604
    %v606 = vrot.slane %v605, 2
    %v607 = vadd.f32 %v605, %v606
    %v608 = vrot.slane %v607, 1
    %v609 = vadd.f32 %v607, %v608
    %v610 = vsel %vm179, %v468, 0.0
    %v611 = vsel %vm179, %v469, 0.0
    %v612 = vadd.f32 %v610, %v611
    %v613 = vsel %vm179, %v470, 0.0
    %v614 = vadd.f32 %v612, %v613
    %v615 = vsel %vm179, %v471, 0.0
    %v616 = vadd.f32 %v614, %v615
    %v617 = vsel %vm179, %v472, 0.0
    %v618 = vadd.f32 %v616, %v617
    %v619 = vsel %vm179, %v473, 0.0
    %v620 = vadd.f32 %v618, %v619
    %v621 = vsel %vm179, %v474, 0.0
    %v622 = vadd.f32 %v620, %v621
    %v623 = vsel %vm179, %v475, 0.0
    %v624 = vadd.f32 %v622, %v623
    %v625 = vrot.slane %v624, 4
    %v626 = vadd.f32 %v624, %v625
    %v627 = vrot.slane %v626, 2
    %v628 = vadd.f32 %v626, %v627
    %v629 = vrot.slane %v628, 1
    %v630 = vadd.f32 %v628, %v629
    %v631 = vsel %vm179, %v476, 0.0
    %v632 = vsel %vm179, %v477, 0.0
    %v633 = vadd.f32 %v631, %v632
    %v634 = vsel %vm179, %v478, 0.0
    %v635 = vadd.f32 %v633, %v634
    %v636 = vsel %vm179, %v479, 0.0
    %v637 = vadd.f32 %v635, %v636
    %v638 = vsel %vm179, %v480, 0.0
    %v639 = vadd.f32 %v637, %v638
    %v640 = vsel %vm179, %v481, 0.0
    %v641 = vadd.f32 %v639, %v640
    %v642 = vsel %vm179, %v482, 0.0
    %v643 = vadd.f32 %v641, %v642
    %v644 = vsel %vm179, %v483, 0.0
    %v645 = vadd.f32 %v643, %v644
    %v646 = vrot.slane %v645, 4
    %v647 = vadd.f32 %v645, %v646
    %v648 = vrot.slane %v647, 2
    %v649 = vadd.f32 %v647, %v648
    %v650 = vrot.slane %v649, 1
    %v651 = vadd.f32 %v649, %v650
    %v652 = vmul.f32 %v504, 0.015625
    %v653 = vmul.f32 %v525, 0.015625
    %v654 = vmul.f32 %v546, 0.015625
    %v655 = vmul.f32 %v567, 0.015625
    %v656 = vmul.f32 %v588, 0.015625
    %v657 = vmul.f32 %v609, 0.015625
    %v658 = vmul.f32 %v630, 0.015625
    %v659 = vmul.f32 %v651, 0.015625
    %v660 = vadd.f32 %v652, 1e-05
    %v661 = vadd.f32 %v653, 1e-05
    %v662 = vadd.f32 %v654, 1e-05
    %v663 = vadd.f32 %v655, 1e-05
    %v664 = vadd.f32 %v656, 1e-05
    %v665 = vadd.f32 %v657, 1e-05
    %v666 = vadd.f32 %v658, 1e-05
    %v667 = vadd.f32 %v659, 1e-05
    %v668 = vrsqrt.pop %v660
    %v669 = vmul.f32 %v668, %v660
    %v670 = vmul.f32 %v669, %v668
    %v671 = vmul.f32 0.5, %v670
    %v672 = vsub.f32 1.5, %v671
    %v673 = vmul.f32 %v668, %v672
    %vm674 = vweird.f32 %v660
    %vm675 = vweird.f32 %v668
    %vm676 = vmor %vm674, %vm675
    %v677 = vsel %vm676, %v668, %v673
    %v678 = vrsqrt.pop %v661
    %v679 = vmul.f32 %v678, %v661
    %v680 = vmul.f32 %v679, %v678
    %v681 = vmul.f32 0.5, %v680
    %v682 = vsub.f32 1.5, %v681
    %v683 = vmul.f32 %v678, %v682
    %vm684 = vweird.f32 %v661
    %vm685 = vweird.f32 %v678
    %vm686 = vmor %vm684, %vm685
    %v687 = vsel %vm686, %v678, %v683
    %v688 = vrsqrt.pop %v662
    %v689 = vmul.f32 %v688, %v662
    %v690 = vmul.f32 %v689, %v688
    %v691 = vmul.f32 0.5, %v690
    %v692 = vsub.f32 1.5, %v691
    %v693 = vmul.f32 %v688, %v692
    %vm694 = vweird.f32 %v662
    %vm695 = vweird.f32 %v688
    %vm696 = vmor %vm694, %vm695
    %v697 = vsel %vm696, %v688, %v693
    %v698 = vrsqrt.pop %v663
    %v699 = vmul.f32 %v698, %v663
    %v700 = vmul.f32 %v699, %v698
    %v701 = vmul.f32 0.5, %v700
    %v702 = vsub.f32 1.5, %v701
    %v703 = vmul.f32 %v698, %v702
    %vm704 = vweird.f32 %v663
    %vm705 = vweird.f32 %v698
    %vm706 = vmor %vm704, %vm705
    %v707 = vsel %vm706, %v698, %v703
    %v708 = vrsqrt.pop %v664
    %v709 = vmul.f32 %v708, %v664
    %v710 = vmul.f32 %v709, %v708
    %v711 = vmul.f32 0.5, %v710
    %v712 = vsub.f32 1.5, %v711
    %v713 = vmul.f32 %v708, %v712
    %vm714 = vweird.f32 %v664
    %vm715 = vweird.f32 %v708
    %vm716 = vmor %vm714, %vm715
    %v717 = vsel %vm716, %v708, %v713
    %v718 = vrsqrt.pop %v665
    %v719 = vmul.f32 %v718, %v665
    %v720 = vmul.f32 %v719, %v718
    %v721 = vmul.f32 0.5, %v720
    %v722 = vsub.f32 1.5, %v721
    %v723 = vmul.f32 %v718, %v722
    %vm724 = vweird.f32 %v665
    %vm725 = vweird.f32 %v718
    %vm726 = vmor %vm724, %vm725
    %v727 = vsel %vm726, %v718, %v723
    %v728 = vrsqrt.pop %v666
    %v729 = vmul.f32 %v728, %v666
    %v730 = vmul.f32 %v729, %v728
    %v731 = vmul.f32 0.5, %v730
    %v732 = vsub.f32 1.5, %v731
    %v733 = vmul.f32 %v728, %v732
    %vm734 = vweird.f32 %v666
    %vm735 = vweird.f32 %v728
    %vm736 = vmor %vm734, %vm735
    %v737 = vsel %vm736, %v728, %v733
    %v738 = vrsqrt.pop %v667
    %v739 = vmul.f32 %v738, %v667
    %v740 = vmul.f32 %v739, %v738
    %v741 = vmul.f32 0.5, %v740
    %v742 = vsub.f32 1.5, %v741
    %v743 = vmul.f32 %v738, %v742
    %vm744 = vweird.f32 %v667
    %vm745 = vweird.f32 %v738
    %vm746 = vmor %vm744, %vm745
    %v747 = vsel %vm746, %v738, %v743
    %v748 = vmul.f32 %v356, %v677
    %v749 = vmul.f32 %v357, %v677
    %v750 = vmul.f32 %v358, %v677
    %v751 = vmul.f32 %v359, %v677
    %v752 = vmul.f32 %v360, %v677
    %v753 = vmul.f32 %v361, %v677
    %v754 = vmul.f32 %v362, %v677
    %v755 = vmul.f32 %v363, %v677
    %v756 = vmul.f32 %v364, %v687
    %v757 = vmul.f32 %v365, %v687
    %v758 = vmul.f32 %v366, %v687
    %v759 = vmul.f32 %v367, %v687
    %v760 = vmul.f32 %v368, %v687
    %v761 = vmul.f32 %v369, %v687
    %v762 = vmul.f32 %v370, %v687
    %v763 = vmul.f32 %v371, %v687
    %v764 = vmul.f32 %v372, %v697
    %v765 = vmul.f32 %v373, %v697
    %v766 = vmul.f32 %v374, %v697
    %v767 = vmul.f32 %v375, %v697
    %v768 = vmul.f32 %v376, %v697
    %v769 = vmul.f32 %v377, %v697
    %v770 = vmul.f32 %v378, %v697
    %v771 = vmul.f32 %v379, %v697
    %v772 = vmul.f32 %v380, %v707
    %v773 = vmul.f32 %v381, %v707
    %v774 = vmul.f32 %v382, %v707
    %v775 = vmul.f32 %v383, %v707
    %v776 = vmul.f32 %v384, %v707
    %v777 = vmul.f32 %v385, %v707
    %v778 = vmul.f32 %v386, %v707
    %v779 = vmul.f32 %v387, %v707
    %v780 = vmul.f32 %v388, %v717
    %v781 = vmul.f32 %v389, %v717
    %v782 = vmul.f32 %v390, %v717
    %v783 = vmul.f32 %v391, %v717
    %v784 = vmul.f32 %v392, %v717
    %v785 = vmul.f32 %v393, %v717
    %v786 = vmul.f32 %v394, %v717
    %v787 = vmul.f32 %v395, %v717
    %v788 = vmul.f32 %v396, %v727
    %v789 = vmul.f32 %v397, %v727
    %v790 = vmul.f32 %v398, %v727
    %v791 = vmul.f32 %v399, %v727
    %v792 = vmul.f32 %v400, %v727
    %v793 = vmul.f32 %v401, %v727
    %v794 = vmul.f32 %v402, %v727
    %v795 = vmul.f32 %v403, %v727
    %v796 = vmul.f32 %v404, %v737
    %v797 = vmul.f32 %v405, %v737
    %v798 = vmul.f32 %v406, %v737
    %v799 = vmul.f32 %v407, %v737
    %v800 = vmul.f32 %v408, %v737
    %v801 = vmul.f32 %v409, %v737
    %v802 = vmul.f32 %v410, %v737
    %v803 = vmul.f32 %v411, %v737
    %v804 = vmul.f32 %v412, %v747
    %v805 = vmul.f32 %v413, %v747
    %v806 = vmul.f32 %v414, %v747
    %v807 = vmul.f32 %v415, %v747
    %v808 = vmul.f32 %v416, %v747
    %v809 = vmul.f32 %v417, %v747
    %v810 = vmul.f32 %v418, %v747
    %v811 = vmul.f32 %v419, %v747
    %v812 = vld [vmem:[%s1] sm:$0x1]
    %v814 = vperm.slane %v812, 0
    %v816 = vmul.f32 %v748, %v814
    %v817 = vmul.f32 %v749, %v814
    %v818 = vmul.f32 %v750, %v814
    %v819 = vmul.f32 %v751, %v814
    %v820 = vmul.f32 %v752, %v814
    %v821 = vmul.f32 %v753, %v814
    %v822 = vmul.f32 %v754, %v814
    %v823 = vmul.f32 %v755, %v814
    %v824 = vmul.f32 %v756, %v814
    %v825 = vmul.f32 %v757, %v814
    %v826 = vmul.f32 %v758, %v814
    %v827 = vmul.f32 %v759, %v814
    %v828 = vmul.f32 %v760, %v814
    %v829 = vmul.f32 %v761, %v814
    %v830 = vmul.f32 %v762, %v814
    %v831 = vmul.f32 %v763, %v814
    %v832 = vmul.f32 %v764, %v814
    %v833 = vmul.f32 %v765, %v814
    %v834 = vmul.f32 %v766, %v814
    %v835 = vmul.f32 %v767, %v814
    %v836 = vmul.f32 %v768, %v814
    %v837 = vmul.f32 %v769, %v814
    %v838 = vmul.f32 %v770, %v814
    %v839 = vmul.f32 %v771, %v814
    %v840 = vmul.f32 %v772, %v814
    %v841 = vmul.f32 %v773, %v814
    %v842 = vmul.f32 %v774, %v814
    %v843 = vmul.f32 %v775, %v814
    %v844 = vmul.f32 %v776, %v814
    %v845 = vmul.f32 %v777, %v814
    %v846 = vmul.f32 %v778, %v814
    %v847 = vmul.f32 %v779, %v814
    %v848 = vmul.f32 %v780, %v814
    %v849 = vmul.f32 %v781, %v814
    %v850 = vmul.f32 %v782, %v814
    %v851 = vmul.f32 %v783, %v814
    %v852 = vmul.f32 %v784, %v814
    %v853 = vmul.f32 %v785, %v814
    %v854 = vmul.f32 %v786, %v814
    %v855 = vmul.f32 %v787, %v814
    %v856 = vmul.f32 %v788, %v814
    %v857 = vmul.f32 %v789, %v814
    %v858 = vmul.f32 %v790, %v814
    %v859 = vmul.f32 %v791, %v814
    %v860 = vmul.f32 %v792, %v814
    %v861 = vmul.f32 %v793, %v814
    %v862 = vmul.f32 %v794, %v814
    %v863 = vmul.f32 %v795, %v814
    %v864 = vmul.f32 %v796, %v814
    %v865 = vmul.f32 %v797, %v814
    %v866 = vmul.f32 %v798, %v814
    %v867 = vmul.f32 %v799, %v814
    %v868 = vmul.f32 %v800, %v814
    %v869 = vmul.f32 %v801, %v814
    %v870 = vmul.f32 %v802, %v814
    %v871 = vmul.f32 %v803, %v814
    %v872 = vmul.f32 %v804, %v814
    %v873 = vmul.f32 %v805, %v814
    %v874 = vmul.f32 %v806, %v814
    %v875 = vmul.f32 %v807, %v814
    %v876 = vmul.f32 %v808, %v814
    %v877 = vmul.f32 %v809, %v814
    %v878 = vmul.f32 %v810, %v814
    %v879 = vmul.f32 %v811, %v814
    %v880 = vld [vmem:[%s2] sm:$0x1]
    %v882 = vperm.slane %v880, 0
    %v884 = vadd.f32 %v816, %v882
    %v885 = vadd.f32 %v817, %v882
    %v886 = vadd.f32 %v818, %v882
    %v887 = vadd.f32 %v819, %v882
    %v888 = vadd.f32 %v820, %v882
    %v889 = vadd.f32 %v821, %v882
    %v890 = vadd.f32 %v822, %v882
    %v891 = vadd.f32 %v823, %v882
    %v892 = vadd.f32 %v824, %v882
    %v893 = vadd.f32 %v825, %v882
    %v894 = vadd.f32 %v826, %v882
    %v895 = vadd.f32 %v827, %v882
    %v896 = vadd.f32 %v828, %v882
    %v897 = vadd.f32 %v829, %v882
    %v898 = vadd.f32 %v830, %v882
    %v899 = vadd.f32 %v831, %v882
    %v900 = vadd.f32 %v832, %v882
    %v901 = vadd.f32 %v833, %v882
    %v902 = vadd.f32 %v834, %v882
    %v903 = vadd.f32 %v835, %v882
    %v904 = vadd.f32 %v836, %v882
    %v905 = vadd.f32 %v837, %v882
    %v906 = vadd.f32 %v838, %v882
    %v907 = vadd.f32 %v839, %v882
    %v908 = vadd.f32 %v840, %v882
    %v909 = vadd.f32 %v841, %v882
    %v910 = vadd.f32 %v842, %v882
    %v911 = vadd.f32 %v843, %v882
    %v912 = vadd.f32 %v844, %v882
    %v913 = vadd.f32 %v845, %v882
    %v914 = vadd.f32 %v846, %v882
    %v915 = vadd.f32 %v847, %v882
    %v916 = vadd.f32 %v848, %v882
    %v917 = vadd.f32 %v849, %v882
    %v918 = vadd.f32 %v850, %v882
    %v919 = vadd.f32 %v851, %v882
    %v920 = vadd.f32 %v852, %v882
    %v921 = vadd.f32 %v853, %v882
    %v922 = vadd.f32 %v854, %v882
    %v923 = vadd.f32 %v855, %v882
    %v924 = vadd.f32 %v856, %v882
    %v925 = vadd.f32 %v857, %v882
    %v926 = vadd.f32 %v858, %v882
    %v927 = vadd.f32 %v859, %v882
    %v928 = vadd.f32 %v860, %v882
    %v929 = vadd.f32 %v861, %v882
    %v930 = vadd.f32 %v862, %v882
    %v931 = vadd.f32 %v863, %v882
    %v932 = vadd.f32 %v864, %v882
    %v933 = vadd.f32 %v865, %v882
    %v934 = vadd.f32 %v866, %v882
    %v935 = vadd.f32 %v867, %v882
    %v936 = vadd.f32 %v868, %v882
    %v937 = vadd.f32 %v869, %v882
    %v938 = vadd.f32 %v870, %v882
    %v939 = vadd.f32 %v871, %v882
    %v940 = vadd.f32 %v872, %v882
    %v941 = vadd.f32 %v873, %v882
    %v942 = vadd.f32 %v874, %v882
    %v943 = vadd.f32 %v875, %v882
    %v944 = vadd.f32 %v876, %v882
    %v945 = vadd.f32 %v877, %v882
    %v946 = vadd.f32 %v878, %v882
    %v947 = vadd.f32 %v879, %v882
    %v948 = vxor.u32 %v884, 2147483648
    %v949 = vxor.u32 %v885, 2147483648
    %v950 = vxor.u32 %v886, 2147483648
    %v951 = vxor.u32 %v887, 2147483648
    %v952 = vxor.u32 %v888, 2147483648
    %v953 = vxor.u32 %v889, 2147483648
    %v954 = vxor.u32 %v890, 2147483648
    %v955 = vxor.u32 %v891, 2147483648
    %v956 = vxor.u32 %v892, 2147483648
    %v957 = vxor.u32 %v893, 2147483648
    %v958 = vxor.u32 %v894, 2147483648
    %v959 = vxor.u32 %v895, 2147483648
    %v960 = vxor.u32 %v896, 2147483648
    %v961 = vxor.u32 %v897, 2147483648
    %v962 = vxor.u32 %v898, 2147483648
    %v963 = vxor.u32 %v899, 2147483648
    %v964 = vxor.u32 %v900, 2147483648
    %v965 = vxor.u32 %v901, 2147483648
    %v966 = vxor.u32 %v902, 2147483648
    %v967 = vxor.u32 %v903, 2147483648
    %v968 = vxor.u32 %v904, 2147483648
    %v969 = vxor.u32 %v905, 2147483648
    %v970 = vxor.u32 %v906, 2147483648
    %v971 = vxor.u32 %v907, 2147483648
    %v972 = vxor.u32 %v908, 2147483648
    %v973 = vxor.u32 %v909, 2147483648
    %v974 = vxor.u32 %v910, 2147483648
    %v975 = vxor.u32 %v911, 2147483648
    %v976 = vxor.u32 %v912, 2147483648
    %v977 = vxor.u32 %v913, 2147483648
    %v978 = vxor.u32 %v914, 2147483648
    %v979 = vxor.u32 %v915, 2147483648
    %v980 = vxor.u32 %v916, 2147483648
    %v981 = vxor.u32 %v917, 2147483648
    %v982 = vxor.u32 %v918, 2147483648
    %v983 = vxor.u32 %v919, 2147483648
    %v984 = vxor.u32 %v920, 2147483648
    %v985 = vxor.u32 %v921, 2147483648
    %v986 = vxor.u32 %v922, 2147483648
    %v987 = vxor.u32 %v923, 2147483648
    %v988 = vxor.u32 %v924, 2147483648
    %v989 = vxor.u32 %v925, 2147483648
    %v990 = vxor.u32 %v926, 2147483648
    %v991 = vxor.u32 %v927, 2147483648
    %v992 = vxor.u32 %v928, 2147483648
    %v993 = vxor.u32 %v929, 2147483648
    %v994 = vxor.u32 %v930, 2147483648
    %v995 = vxor.u32 %v931, 2147483648
    %v996 = vxor.u32 %v932, 2147483648
    %v997 = vxor.u32 %v933, 2147483648
    %v998 = vxor.u32 %v934, 2147483648
    %v999 = vxor.u32 %v935, 2147483648
    %v1000 = vxor.u32 %v936, 2147483648
    %v1001 = vxor.u32 %v937, 2147483648
    %v1002 = vxor.u32 %v938, 2147483648
    %v1003 = vxor.u32 %v939, 2147483648
    %v1004 = vxor.u32 %v940, 2147483648
    %v1005 = vxor.u32 %v941, 2147483648
    %v1006 = vxor.u32 %v942, 2147483648
    %v1007 = vxor.u32 %v943, 2147483648
    %v1008 = vxor.u32 %v944, 2147483648
    %v1009 = vxor.u32 %v945, 2147483648
    %v1010 = vxor.u32 %v946, 2147483648
    %v1011 = vxor.u32 %v947, 2147483648
    %v1012 = vmul.f32 %v948, 1.442695
    %v1013 = vpow.pop %v1012
    %v1014 = vmul.f32 %v949, 1.442695
    %v1015 = vpow.pop %v1014
    %v1016 = vmul.f32 %v950, 1.442695
    %v1017 = vpow.pop %v1016
    %v1018 = vmul.f32 %v951, 1.442695
    %v1019 = vpow.pop %v1018
    %v1020 = vmul.f32 %v952, 1.442695
    %v1021 = vpow.pop %v1020
    %v1022 = vmul.f32 %v953, 1.442695
    %v1023 = vpow.pop %v1022
    %v1024 = vmul.f32 %v954, 1.442695
    %v1025 = vpow.pop %v1024
    %v1026 = vmul.f32 %v955, 1.442695
    %v1027 = vpow.pop %v1026
    %v1028 = vmul.f32 %v956, 1.442695
    %v1029 = vpow.pop %v1028
    %v1030 = vmul.f32 %v957, 1.442695
    %v1031 = vpow.pop %v1030
    %v1032 = vmul.f32 %v958, 1.442695
    %v1033 = vpow.pop %v1032
    %v1034 = vmul.f32 %v959, 1.442695
    %v1035 = vpow.pop %v1034
    %v1036 = vmul.f32 %v960, 1.442695
    %v1037 = vpow.pop %v1036
    %v1038 = vmul.f32 %v961, 1.442695
    %v1039 = vpow.pop %v1038
    %v1040 = vmul.f32 %v962, 1.442695
    %v1041 = vpow.pop %v1040
    %v1042 = vmul.f32 %v963, 1.442695
    %v1043 = vpow.pop %v1042
    %v1044 = vmul.f32 %v964, 1.442695
    %v1045 = vpow.pop %v1044
    %v1046 = vmul.f32 %v965, 1.442695
    %v1047 = vpow.pop %v1046
    %v1048 = vmul.f32 %v966, 1.442695
    %v1049 = vpow.pop %v1048
    %v1050 = vmul.f32 %v967, 1.442695
    %v1051 = vpow.pop %v1050
    %v1052 = vmul.f32 %v968, 1.442695
    %v1053 = vpow.pop %v1052
    %v1054 = vmul.f32 %v969, 1.442695
    %v1055 = vpow.pop %v1054
    %v1056 = vmul.f32 %v970, 1.442695
    %v1057 = vpow.pop %v1056
    %v1058 = vmul.f32 %v971, 1.442695
    %v1059 = vpow.pop %v1058
    %v1060 = vmul.f32 %v972, 1.442695
    %v1061 = vpow.pop %v1060
    %v1062 = vmul.f32 %v973, 1.442695
    %v1063 = vpow.pop %v1062
    %v1064 = vmul.f32 %v974, 1.442695
    %v1065 = vpow.pop %v1064
    %v1066 = vmul.f32 %v975, 1.442695
    %v1067 = vpow.pop %v1066
    %v1068 = vmul.f32 %v976, 1.442695
    %v1069 = vpow.pop %v1068
    %v1070 = vmul.f32 %v977, 1.442695
    %v1071 = vpow.pop %v1070
    %v1072 = vmul.f32 %v978, 1.442695
    %v1073 = vpow.pop %v1072
    %v1074 = vmul.f32 %v979, 1.442695
    %v1075 = vpow.pop %v1074
    %v1076 = vmul.f32 %v980, 1.442695
    %v1077 = vpow.pop %v1076
    %v1078 = vmul.f32 %v981, 1.442695
    %v1079 = vpow.pop %v1078
    %v1080 = vmul.f32 %v982, 1.442695
    %v1081 = vpow.pop %v1080
    %v1082 = vmul.f32 %v983, 1.442695
    %v1083 = vpow.pop %v1082
    %v1084 = vmul.f32 %v984, 1.442695
    %v1085 = vpow.pop %v1084
    %v1086 = vmul.f32 %v985, 1.442695
    %v1087 = vpow.pop %v1086
    %v1088 = vmul.f32 %v986, 1.442695
    %v1089 = vpow.pop %v1088
    %v1090 = vmul.f32 %v987, 1.442695
    %v1091 = vpow.pop %v1090
    %v1092 = vmul.f32 %v988, 1.442695
    %v1093 = vpow.pop %v1092
    %v1094 = vmul.f32 %v989, 1.442695
    %v1095 = vpow.pop %v1094
    %v1096 = vmul.f32 %v990, 1.442695
    %v1097 = vpow.pop %v1096
    %v1098 = vmul.f32 %v991, 1.442695
    %v1099 = vpow.pop %v1098
    %v1100 = vmul.f32 %v992, 1.442695
    %v1101 = vpow.pop %v1100
    %v1102 = vmul.f32 %v993, 1.442695
    %v1103 = vpow.pop %v1102
    %v1104 = vmul.f32 %v994, 1.442695
    %v1105 = vpow.pop %v1104
    %v1106 = vmul.f32 %v995, 1.442695
    %v1107 = vpow.pop %v1106
    %v1108 = vmul.f32 %v996, 1.442695
    %v1109 = vpow.pop %v1108
    %v1110 = vmul.f32 %v997, 1.442695
    %v1111 = vpow.pop %v1110
    %v1112 = vmul.f32 %v998, 1.442695
    %v1113 = vpow.pop %v1112
    %v1114 = vmul.f32 %v999, 1.442695
    %v1115 = vpow.pop %v1114
    %v1116 = vmul.f32 %v1000, 1.442695
    %v1117 = vpow.pop %v1116
    %v1118 = vmul.f32 %v1001, 1.442695
    %v1119 = vpow.pop %v1118
    %v1120 = vmul.f32 %v1002, 1.442695
    %v1121 = vpow.pop %v1120
    %v1122 = vmul.f32 %v1003, 1.442695
    %v1123 = vpow.pop %v1122
    %v1124 = vmul.f32 %v1004, 1.442695
    %v1125 = vpow.pop %v1124
    %v1126 = vmul.f32 %v1005, 1.442695
    %v1127 = vpow.pop %v1126
    %v1128 = vmul.f32 %v1006, 1.442695
    %v1129 = vpow.pop %v1128
    %v1130 = vmul.f32 %v1007, 1.442695
    %v1131 = vpow.pop %v1130
    %v1132 = vmul.f32 %v1008, 1.442695
    %v1133 = vpow.pop %v1132
    %v1134 = vmul.f32 %v1009, 1.442695
    %v1135 = vpow.pop %v1134
    %v1136 = vmul.f32 %v1010, 1.442695
    %v1137 = vpow.pop %v1136
    %v1138 = vmul.f32 %v1011, 1.442695
    %v1139 = vpow.pop %v1138
    %v1140 = vadd.f32 %v1013, 1.0
    %v1141 = vadd.f32 %v1015, 1.0
    %v1142 = vadd.f32 %v1017, 1.0
    %v1143 = vadd.f32 %v1019, 1.0
    %v1144 = vadd.f32 %v1021, 1.0
    %v1145 = vadd.f32 %v1023, 1.0
    %v1146 = vadd.f32 %v1025, 1.0
    %v1147 = vadd.f32 %v1027, 1.0
    %v1148 = vadd.f32 %v1029, 1.0
    %v1149 = vadd.f32 %v1031, 1.0
    %v1150 = vadd.f32 %v1033, 1.0
    %v1151 = vadd.f32 %v1035, 1.0
    %v1152 = vadd.f32 %v1037, 1.0
    %v1153 = vadd.f32 %v1039, 1.0
    %v1154 = vadd.f32 %v1041, 1.0
    %v1155 = vadd.f32 %v1043, 1.0
    %v1156 = vadd.f32 %v1045, 1.0
    %v1157 = vadd.f32 %v1047, 1.0
    %v1158 = vadd.f32 %v1049, 1.0
    %v1159 = vadd.f32 %v1051, 1.0
    %v1160 = vadd.f32 %v1053, 1.0
    %v1161 = vadd.f32 %v1055, 1.0
    %v1162 = vadd.f32 %v1057, 1.0
    %v1163 = vadd.f32 %v1059, 1.0
    %v1164 = vadd.f32 %v1061, 1.0
    %v1165 = vadd.f32 %v1063, 1.0
    %v1166 = vadd.f32 %v1065, 1.0
    %v1167 = vadd.f32 %v1067, 1.0
    %v1168 = vadd.f32 %v1069, 1.0
    %v1169 = vadd.f32 %v1071, 1.0
    %v1170 = vadd.f32 %v1073, 1.0
    %v1171 = vadd.f32 %v1075, 1.0
    %v1172 = vadd.f32 %v1077, 1.0
    %v1173 = vadd.f32 %v1079, 1.0
    %v1174 = vadd.f32 %v1081, 1.0
    %v1175 = vadd.f32 %v1083, 1.0
    %v1176 = vadd.f32 %v1085, 1.0
    %v1177 = vadd.f32 %v1087, 1.0
    %v1178 = vadd.f32 %v1089, 1.0
    %v1179 = vadd.f32 %v1091, 1.0
    %v1180 = vadd.f32 %v1093, 1.0
    %v1181 = vadd.f32 %v1095, 1.0
    %v1182 = vadd.f32 %v1097, 1.0
    %v1183 = vadd.f32 %v1099, 1.0
    %v1184 = vadd.f32 %v1101, 1.0
    %v1185 = vadd.f32 %v1103, 1.0
    %v1186 = vadd.f32 %v1105, 1.0
    %v1187 = vadd.f32 %v1107, 1.0
    %v1188 = vadd.f32 %v1109, 1.0
    %v1189 = vadd.f32 %v1111, 1.0
    %v1190 = vadd.f32 %v1113, 1.0
    %v1191 = vadd.f32 %v1115, 1.0
    %v1192 = vadd.f32 %v1117, 1.0
    %v1193 = vadd.f32 %v1119, 1.0
    %v1194 = vadd.f32 %v1121, 1.0
    %v1195 = vadd.f32 %v1123, 1.0
    %v1196 = vadd.f32 %v1125, 1.0
    %v1197 = vadd.f32 %v1127, 1.0
    %v1198 = vadd.f32 %v1129, 1.0
    %v1199 = vadd.f32 %v1131, 1.0
    %v1200 = vadd.f32 %v1133, 1.0
    %v1201 = vadd.f32 %v1135, 1.0
    %v1202 = vadd.f32 %v1137, 1.0
    %v1203 = vadd.f32 %v1139, 1.0
    %v1204 = vrcp.pop %v1140
    %v1205 = vmul.f32 %v1140, %v1204
    %v1206 = vsub.f32 1.0, %v1205
    %v1207 = vmul.f32 %v1204, %v1206
    %v1208 = vadd.f32 %v1204, %v1207
    %vm1209 = vweird.f32 %v1140
    %vm1210 = vweird.f32 %v1204
    %vm1211 = vmor %vm1209, %vm1210
    %v1212 = vsel %vm1211, %v1204, %v1208
    %v1213 = vand.u32 2147483647, %v1140
    %vm1214 = vcmp.eq.f32.partialorder %v1213, 8.507059e+37
    %v1215 = vand.u32 %v1140, 2147483648
    %v1216 = vor.u32 1.1754944e-38, %v1215
    %v1217 = vsel %vm1214, %v1216, %v1212
    %v1218 = vmul.f32 1.0, %v1217
    %v1219 = vrcp.pop %v1141
    %v1220 = vmul.f32 %v1141, %v1219
    %v1221 = vsub.f32 1.0, %v1220
    %v1222 = vmul.f32 %v1219, %v1221
    %v1223 = vadd.f32 %v1219, %v1222
    %vm1224 = vweird.f32 %v1141
    %vm1225 = vweird.f32 %v1219
    %vm1226 = vmor %vm1224, %vm1225
    %v1227 = vsel %vm1226, %v1219, %v1223
    %v1228 = vand.u32 2147483647, %v1141
    %vm1229 = vcmp.eq.f32.partialorder %v1228, 8.507059e+37
    %v1230 = vand.u32 %v1141, 2147483648
    %v1231 = vor.u32 1.1754944e-38, %v1230
    %v1232 = vsel %vm1229, %v1231, %v1227
    %v1233 = vmul.f32 1.0, %v1232
    %v1234 = vrcp.pop %v1142
    %v1235 = vmul.f32 %v1142, %v1234
    %v1236 = vsub.f32 1.0, %v1235
    %v1237 = vmul.f32 %v1234, %v1236
    %v1238 = vadd.f32 %v1234, %v1237
    %vm1239 = vweird.f32 %v1142
    %vm1240 = vweird.f32 %v1234
    %vm1241 = vmor %vm1239, %vm1240
    %v1242 = vsel %vm1241, %v1234, %v1238
    %v1243 = vand.u32 2147483647, %v1142
    %vm1244 = vcmp.eq.f32.partialorder %v1243, 8.507059e+37
    %v1245 = vand.u32 %v1142, 2147483648
    %v1246 = vor.u32 1.1754944e-38, %v1245
    %v1247 = vsel %vm1244, %v1246, %v1242
    %v1248 = vmul.f32 1.0, %v1247
    %v1249 = vrcp.pop %v1143
    %v1250 = vmul.f32 %v1143, %v1249
    %v1251 = vsub.f32 1.0, %v1250
    %v1252 = vmul.f32 %v1249, %v1251
    %v1253 = vadd.f32 %v1249, %v1252
    %vm1254 = vweird.f32 %v1143
    %vm1255 = vweird.f32 %v1249
    %vm1256 = vmor %vm1254, %vm1255
    %v1257 = vsel %vm1256, %v1249, %v1253
    %v1258 = vand.u32 2147483647, %v1143
    %vm1259 = vcmp.eq.f32.partialorder %v1258, 8.507059e+37
    %v1260 = vand.u32 %v1143, 2147483648
    %v1261 = vor.u32 1.1754944e-38, %v1260
    %v1262 = vsel %vm1259, %v1261, %v1257
    %v1263 = vmul.f32 1.0, %v1262
    %v1264 = vrcp.pop %v1144
    %v1265 = vmul.f32 %v1144, %v1264
    %v1266 = vsub.f32 1.0, %v1265
    %v1267 = vmul.f32 %v1264, %v1266
    %v1268 = vadd.f32 %v1264, %v1267
    %vm1269 = vweird.f32 %v1144
    %vm1270 = vweird.f32 %v1264
    %vm1271 = vmor %vm1269, %vm1270
    %v1272 = vsel %vm1271, %v1264, %v1268
    %v1273 = vand.u32 2147483647, %v1144
    %vm1274 = vcmp.eq.f32.partialorder %v1273, 8.507059e+37
    %v1275 = vand.u32 %v1144, 2147483648
    %v1276 = vor.u32 1.1754944e-38, %v1275
    %v1277 = vsel %vm1274, %v1276, %v1272
    %v1278 = vmul.f32 1.0, %v1277
    %v1279 = vrcp.pop %v1145
    %v1280 = vmul.f32 %v1145, %v1279
    %v1281 = vsub.f32 1.0, %v1280
    %v1282 = vmul.f32 %v1279, %v1281
    %v1283 = vadd.f32 %v1279, %v1282
    %vm1284 = vweird.f32 %v1145
    %vm1285 = vweird.f32 %v1279
    %vm1286 = vmor %vm1284, %vm1285
    %v1287 = vsel %vm1286, %v1279, %v1283
    %v1288 = vand.u32 2147483647, %v1145
    %vm1289 = vcmp.eq.f32.partialorder %v1288, 8.507059e+37
    %v1290 = vand.u32 %v1145, 2147483648
    %v1291 = vor.u32 1.1754944e-38, %v1290
    %v1292 = vsel %vm1289, %v1291, %v1287
    %v1293 = vmul.f32 1.0, %v1292
    %v1294 = vrcp.pop %v1146
    %v1295 = vmul.f32 %v1146, %v1294
    %v1296 = vsub.f32 1.0, %v1295
    %v1297 = vmul.f32 %v1294, %v1296
    %v1298 = vadd.f32 %v1294, %v1297
    %vm1299 = vweird.f32 %v1146
    %vm1300 = vweird.f32 %v1294
    %vm1301 = vmor %vm1299, %vm1300
    %v1302 = vsel %vm1301, %v1294, %v1298
    %v1303 = vand.u32 2147483647, %v1146
    %vm1304 = vcmp.eq.f32.partialorder %v1303, 8.507059e+37
    %v1305 = vand.u32 %v1146, 2147483648
    %v1306 = vor.u32 1.1754944e-38, %v1305
    %v1307 = vsel %vm1304, %v1306, %v1302
    %v1308 = vmul.f32 1.0, %v1307
    %v1309 = vrcp.pop %v1147
    %v1310 = vmul.f32 %v1147, %v1309
    %v1311 = vsub.f32 1.0, %v1310
    %v1312 = vmul.f32 %v1309, %v1311
    %v1313 = vadd.f32 %v1309, %v1312
    %vm1314 = vweird.f32 %v1147
    %vm1315 = vweird.f32 %v1309
    %vm1316 = vmor %vm1314, %vm1315
    %v1317 = vsel %vm1316, %v1309, %v1313
    %v1318 = vand.u32 2147483647, %v1147
    %vm1319 = vcmp.eq.f32.partialorder %v1318, 8.507059e+37
    %v1320 = vand.u32 %v1147, 2147483648
    %v1321 = vor.u32 1.1754944e-38, %v1320
    %v1322 = vsel %vm1319, %v1321, %v1317
    %v1323 = vmul.f32 1.0, %v1322
    %v1324 = vrcp.pop %v1148
    %v1325 = vmul.f32 %v1148, %v1324
    %v1326 = vsub.f32 1.0, %v1325
    %v1327 = vmul.f32 %v1324, %v1326
    %v1328 = vadd.f32 %v1324, %v1327
    %vm1329 = vweird.f32 %v1148
    %vm1330 = vweird.f32 %v1324
    %vm1331 = vmor %vm1329, %vm1330
    %v1332 = vsel %vm1331, %v1324, %v1328
    %v1333 = vand.u32 2147483647, %v1148
    %vm1334 = vcmp.eq.f32.partialorder %v1333, 8.507059e+37
    %v1335 = vand.u32 %v1148, 2147483648
    %v1336 = vor.u32 1.1754944e-38, %v1335
    %v1337 = vsel %vm1334, %v1336, %v1332
    %v1338 = vmul.f32 1.0, %v1337
    %v1339 = vrcp.pop %v1149
    %v1340 = vmul.f32 %v1149, %v1339
    %v1341 = vsub.f32 1.0, %v1340
    %v1342 = vmul.f32 %v1339, %v1341
    %v1343 = vadd.f32 %v1339, %v1342
    %vm1344 = vweird.f32 %v1149
    %vm1345 = vweird.f32 %v1339
    %vm1346 = vmor %vm1344, %vm1345
    %v1347 = vsel %vm1346, %v1339, %v1343
    %v1348 = vand.u32 2147483647, %v1149
    %vm1349 = vcmp.eq.f32.partialorder %v1348, 8.507059e+37
    %v1350 = vand.u32 %v1149, 2147483648
    %v1351 = vor.u32 1.1754944e-38, %v1350
    %v1352 = vsel %vm1349, %v1351, %v1347
    %v1353 = vmul.f32 1.0, %v1352
    %v1354 = vrcp.pop %v1150
    %v1355 = vmul.f32 %v1150, %v1354
    %v1356 = vsub.f32 1.0, %v1355
    %v1357 = vmul.f32 %v1354, %v1356
    %v1358 = vadd.f32 %v1354, %v1357
    %vm1359 = vweird.f32 %v1150
    %vm1360 = vweird.f32 %v1354
    %vm1361 = vmor %vm1359, %vm1360
    %v1362 = vsel %vm1361, %v1354, %v1358
    %v1363 = vand.u32 2147483647, %v1150
    %vm1364 = vcmp.eq.f32.partialorder %v1363, 8.507059e+37
    %v1365 = vand.u32 %v1150, 2147483648
    %v1366 = vor.u32 1.1754944e-38, %v1365
    %v1367 = vsel %vm1364, %v1366, %v1362
    %v1368 = vmul.f32 1.0, %v1367
    %v1369 = vrcp.pop %v1151
    %v1370 = vmul.f32 %v1151, %v1369
    %v1371 = vsub.f32 1.0, %v1370
    %v1372 = vmul.f32 %v1369, %v1371
    %v1373 = vadd.f32 %v1369, %v1372
    %vm1374 = vweird.f32 %v1151
    %vm1375 = vweird.f32 %v1369
    %vm1376 = vmor %vm1374, %vm1375
    %v1377 = vsel %vm1376, %v1369, %v1373
    %v1378 = vand.u32 2147483647, %v1151
    %vm1379 = vcmp.eq.f32.partialorder %v1378, 8.507059e+37
    %v1380 = vand.u32 %v1151, 2147483648
    %v1381 = vor.u32 1.1754944e-38, %v1380
    %v1382 = vsel %vm1379, %v1381, %v1377
    %v1383 = vmul.f32 1.0, %v1382
    %v1384 = vrcp.pop %v1152
    %v1385 = vmul.f32 %v1152, %v1384
    %v1386 = vsub.f32 1.0, %v1385
    %v1387 = vmul.f32 %v1384, %v1386
    %v1388 = vadd.f32 %v1384, %v1387
    %vm1389 = vweird.f32 %v1152
    %vm1390 = vweird.f32 %v1384
    %vm1391 = vmor %vm1389, %vm1390
    %v1392 = vsel %vm1391, %v1384, %v1388
    %v1393 = vand.u32 2147483647, %v1152
    %vm1394 = vcmp.eq.f32.partialorder %v1393, 8.507059e+37
    %v1395 = vand.u32 %v1152, 2147483648
    %v1396 = vor.u32 1.1754944e-38, %v1395
    %v1397 = vsel %vm1394, %v1396, %v1392
    %v1398 = vmul.f32 1.0, %v1397
    %v1399 = vrcp.pop %v1153
    %v1400 = vmul.f32 %v1153, %v1399
    %v1401 = vsub.f32 1.0, %v1400
    %v1402 = vmul.f32 %v1399, %v1401
    %v1403 = vadd.f32 %v1399, %v1402
    %vm1404 = vweird.f32 %v1153
    %vm1405 = vweird.f32 %v1399
    %vm1406 = vmor %vm1404, %vm1405
    %v1407 = vsel %vm1406, %v1399, %v1403
    %v1408 = vand.u32 2147483647, %v1153
    %vm1409 = vcmp.eq.f32.partialorder %v1408, 8.507059e+37
    %v1410 = vand.u32 %v1153, 2147483648
    %v1411 = vor.u32 1.1754944e-38, %v1410
    %v1412 = vsel %vm1409, %v1411, %v1407
    %v1413 = vmul.f32 1.0, %v1412
    %v1414 = vrcp.pop %v1154
    %v1415 = vmul.f32 %v1154, %v1414
    %v1416 = vsub.f32 1.0, %v1415
    %v1417 = vmul.f32 %v1414, %v1416
    %v1418 = vadd.f32 %v1414, %v1417
    %vm1419 = vweird.f32 %v1154
    %vm1420 = vweird.f32 %v1414
    %vm1421 = vmor %vm1419, %vm1420
    %v1422 = vsel %vm1421, %v1414, %v1418
    %v1423 = vand.u32 2147483647, %v1154
    %vm1424 = vcmp.eq.f32.partialorder %v1423, 8.507059e+37
    %v1425 = vand.u32 %v1154, 2147483648
    %v1426 = vor.u32 1.1754944e-38, %v1425
    %v1427 = vsel %vm1424, %v1426, %v1422
    %v1428 = vmul.f32 1.0, %v1427
    %v1429 = vrcp.pop %v1155
    %v1430 = vmul.f32 %v1155, %v1429
    %v1431 = vsub.f32 1.0, %v1430
    %v1432 = vmul.f32 %v1429, %v1431
    %v1433 = vadd.f32 %v1429, %v1432
    %vm1434 = vweird.f32 %v1155
    %vm1435 = vweird.f32 %v1429
    %vm1436 = vmor %vm1434, %vm1435
    %v1437 = vsel %vm1436, %v1429, %v1433
    %v1438 = vand.u32 2147483647, %v1155
    %vm1439 = vcmp.eq.f32.partialorder %v1438, 8.507059e+37
    %v1440 = vand.u32 %v1155, 2147483648
    %v1441 = vor.u32 1.1754944e-38, %v1440
    %v1442 = vsel %vm1439, %v1441, %v1437
    %v1443 = vmul.f32 1.0, %v1442
    %v1444 = vrcp.pop %v1156
    %v1445 = vmul.f32 %v1156, %v1444
    %v1446 = vsub.f32 1.0, %v1445
    %v1447 = vmul.f32 %v1444, %v1446
    %v1448 = vadd.f32 %v1444, %v1447
    %vm1449 = vweird.f32 %v1156
    %vm1450 = vweird.f32 %v1444
    %vm1451 = vmor %vm1449, %vm1450
    %v1452 = vsel %vm1451, %v1444, %v1448
    %v1453 = vand.u32 2147483647, %v1156
    %vm1454 = vcmp.eq.f32.partialorder %v1453, 8.507059e+37
    %v1455 = vand.u32 %v1156, 2147483648
    %v1456 = vor.u32 1.1754944e-38, %v1455
    %v1457 = vsel %vm1454, %v1456, %v1452
    %v1458 = vmul.f32 1.0, %v1457
    %v1459 = vrcp.pop %v1157
    %v1460 = vmul.f32 %v1157, %v1459
    %v1461 = vsub.f32 1.0, %v1460
    %v1462 = vmul.f32 %v1459, %v1461
    %v1463 = vadd.f32 %v1459, %v1462
    %vm1464 = vweird.f32 %v1157
    %vm1465 = vweird.f32 %v1459
    %vm1466 = vmor %vm1464, %vm1465
    %v1467 = vsel %vm1466, %v1459, %v1463
    %v1468 = vand.u32 2147483647, %v1157
    %vm1469 = vcmp.eq.f32.partialorder %v1468, 8.507059e+37
    %v1470 = vand.u32 %v1157, 2147483648
    %v1471 = vor.u32 1.1754944e-38, %v1470
    %v1472 = vsel %vm1469, %v1471, %v1467
    %v1473 = vmul.f32 1.0, %v1472
    %v1474 = vrcp.pop %v1158
    %v1475 = vmul.f32 %v1158, %v1474
    %v1476 = vsub.f32 1.0, %v1475
    %v1477 = vmul.f32 %v1474, %v1476
    %v1478 = vadd.f32 %v1474, %v1477
    %vm1479 = vweird.f32 %v1158
    %vm1480 = vweird.f32 %v1474
    %vm1481 = vmor %vm1479, %vm1480
    %v1482 = vsel %vm1481, %v1474, %v1478
    %v1483 = vand.u32 2147483647, %v1158
    %vm1484 = vcmp.eq.f32.partialorder %v1483, 8.507059e+37
    %v1485 = vand.u32 %v1158, 2147483648
    %v1486 = vor.u32 1.1754944e-38, %v1485
    %v1487 = vsel %vm1484, %v1486, %v1482
    %v1488 = vmul.f32 1.0, %v1487
    %v1489 = vrcp.pop %v1159
    %v1490 = vmul.f32 %v1159, %v1489
    %v1491 = vsub.f32 1.0, %v1490
    %v1492 = vmul.f32 %v1489, %v1491
    %v1493 = vadd.f32 %v1489, %v1492
    %vm1494 = vweird.f32 %v1159
    %vm1495 = vweird.f32 %v1489
    %vm1496 = vmor %vm1494, %vm1495
    %v1497 = vsel %vm1496, %v1489, %v1493
    %v1498 = vand.u32 2147483647, %v1159
    %vm1499 = vcmp.eq.f32.partialorder %v1498, 8.507059e+37
    %v1500 = vand.u32 %v1159, 2147483648
    %v1501 = vor.u32 1.1754944e-38, %v1500
    %v1502 = vsel %vm1499, %v1501, %v1497
    %v1503 = vmul.f32 1.0, %v1502
    %v1504 = vrcp.pop %v1160
    %v1505 = vmul.f32 %v1160, %v1504
    %v1506 = vsub.f32 1.0, %v1505
    %v1507 = vmul.f32 %v1504, %v1506
    %v1508 = vadd.f32 %v1504, %v1507
    %vm1509 = vweird.f32 %v1160
    %vm1510 = vweird.f32 %v1504
    %vm1511 = vmor %vm1509, %vm1510
    %v1512 = vsel %vm1511, %v1504, %v1508
    %v1513 = vand.u32 2147483647, %v1160
    %vm1514 = vcmp.eq.f32.partialorder %v1513, 8.507059e+37
    %v1515 = vand.u32 %v1160, 2147483648
    %v1516 = vor.u32 1.1754944e-38, %v1515
    %v1517 = vsel %vm1514, %v1516, %v1512
    %v1518 = vmul.f32 1.0, %v1517
    %v1519 = vrcp.pop %v1161
    %v1520 = vmul.f32 %v1161, %v1519
    %v1521 = vsub.f32 1.0, %v1520
    %v1522 = vmul.f32 %v1519, %v1521
    %v1523 = vadd.f32 %v1519, %v1522
    %vm1524 = vweird.f32 %v1161
    %vm1525 = vweird.f32 %v1519
    %vm1526 = vmor %vm1524, %vm1525
    %v1527 = vsel %vm1526, %v1519, %v1523
    %v1528 = vand.u32 2147483647, %v1161
    %vm1529 = vcmp.eq.f32.partialorder %v1528, 8.507059e+37
    %v1530 = vand.u32 %v1161, 2147483648
    %v1531 = vor.u32 1.1754944e-38, %v1530
    %v1532 = vsel %vm1529, %v1531, %v1527
    %v1533 = vmul.f32 1.0, %v1532
    %v1534 = vrcp.pop %v1162
    %v1535 = vmul.f32 %v1162, %v1534
    %v1536 = vsub.f32 1.0, %v1535
    %v1537 = vmul.f32 %v1534, %v1536
    %v1538 = vadd.f32 %v1534, %v1537
    %vm1539 = vweird.f32 %v1162
    %vm1540 = vweird.f32 %v1534
    %vm1541 = vmor %vm1539, %vm1540
    %v1542 = vsel %vm1541, %v1534, %v1538
    %v1543 = vand.u32 2147483647, %v1162
    %vm1544 = vcmp.eq.f32.partialorder %v1543, 8.507059e+37
    %v1545 = vand.u32 %v1162, 2147483648
    %v1546 = vor.u32 1.1754944e-38, %v1545
    %v1547 = vsel %vm1544, %v1546, %v1542
    %v1548 = vmul.f32 1.0, %v1547
    %v1549 = vrcp.pop %v1163
    %v1550 = vmul.f32 %v1163, %v1549
    %v1551 = vsub.f32 1.0, %v1550
    %v1552 = vmul.f32 %v1549, %v1551
    %v1553 = vadd.f32 %v1549, %v1552
    %vm1554 = vweird.f32 %v1163
    %vm1555 = vweird.f32 %v1549
    %vm1556 = vmor %vm1554, %vm1555
    %v1557 = vsel %vm1556, %v1549, %v1553
    %v1558 = vand.u32 2147483647, %v1163
    %vm1559 = vcmp.eq.f32.partialorder %v1558, 8.507059e+37
    %v1560 = vand.u32 %v1163, 2147483648
    %v1561 = vor.u32 1.1754944e-38, %v1560
    %v1562 = vsel %vm1559, %v1561, %v1557
    %v1563 = vmul.f32 1.0, %v1562
    %v1564 = vrcp.pop %v1164
    %v1565 = vmul.f32 %v1164, %v1564
    %v1566 = vsub.f32 1.0, %v1565
    %v1567 = vmul.f32 %v1564, %v1566
    %v1568 = vadd.f32 %v1564, %v1567
    %vm1569 = vweird.f32 %v1164
    %vm1570 = vweird.f32 %v1564
    %vm1571 = vmor %vm1569, %vm1570
    %v1572 = vsel %vm1571, %v1564, %v1568
    %v1573 = vand.u32 2147483647, %v1164
    %vm1574 = vcmp.eq.f32.partialorder %v1573, 8.507059e+37
    %v1575 = vand.u32 %v1164, 2147483648
    %v1576 = vor.u32 1.1754944e-38, %v1575
    %v1577 = vsel %vm1574, %v1576, %v1572
    %v1578 = vmul.f32 1.0, %v1577
    %v1579 = vrcp.pop %v1165
    %v1580 = vmul.f32 %v1165, %v1579
    %v1581 = vsub.f32 1.0, %v1580
    %v1582 = vmul.f32 %v1579, %v1581
    %v1583 = vadd.f32 %v1579, %v1582
    %vm1584 = vweird.f32 %v1165
    %vm1585 = vweird.f32 %v1579
    %vm1586 = vmor %vm1584, %vm1585
    %v1587 = vsel %vm1586, %v1579, %v1583
    %v1588 = vand.u32 2147483647, %v1165
    %vm1589 = vcmp.eq.f32.partialorder %v1588, 8.507059e+37
    %v1590 = vand.u32 %v1165, 2147483648
    %v1591 = vor.u32 1.1754944e-38, %v1590
    %v1592 = vsel %vm1589, %v1591, %v1587
    %v1593 = vmul.f32 1.0, %v1592
    %v1594 = vrcp.pop %v1166
    %v1595 = vmul.f32 %v1166, %v1594
    %v1596 = vsub.f32 1.0, %v1595
    %v1597 = vmul.f32 %v1594, %v1596
    %v1598 = vadd.f32 %v1594, %v1597
    %vm1599 = vweird.f32 %v1166
    %vm1600 = vweird.f32 %v1594
    %vm1601 = vmor %vm1599, %vm1600
    %v1602 = vsel %vm1601, %v1594, %v1598
    %v1603 = vand.u32 2147483647, %v1166
    %vm1604 = vcmp.eq.f32.partialorder %v1603, 8.507059e+37
    %v1605 = vand.u32 %v1166, 2147483648
    %v1606 = vor.u32 1.1754944e-38, %v1605
    %v1607 = vsel %vm1604, %v1606, %v1602
    %v1608 = vmul.f32 1.0, %v1607
    %v1609 = vrcp.pop %v1167
    %v1610 = vmul.f32 %v1167, %v1609
    %v1611 = vsub.f32 1.0, %v1610
    %v1612 = vmul.f32 %v1609, %v1611
    %v1613 = vadd.f32 %v1609, %v1612
    %vm1614 = vweird.f32 %v1167
    %vm1615 = vweird.f32 %v1609
    %vm1616 = vmor %vm1614, %vm1615
    %v1617 = vsel %vm1616, %v1609, %v1613
    %v1618 = vand.u32 2147483647, %v1167
    %vm1619 = vcmp.eq.f32.partialorder %v1618, 8.507059e+37
    %v1620 = vand.u32 %v1167, 2147483648
    %v1621 = vor.u32 1.1754944e-38, %v1620
    %v1622 = vsel %vm1619, %v1621, %v1617
    %v1623 = vmul.f32 1.0, %v1622
    %v1624 = vrcp.pop %v1168
    %v1625 = vmul.f32 %v1168, %v1624
    %v1626 = vsub.f32 1.0, %v1625
    %v1627 = vmul.f32 %v1624, %v1626
    %v1628 = vadd.f32 %v1624, %v1627
    %vm1629 = vweird.f32 %v1168
    %vm1630 = vweird.f32 %v1624
    %vm1631 = vmor %vm1629, %vm1630
    %v1632 = vsel %vm1631, %v1624, %v1628
    %v1633 = vand.u32 2147483647, %v1168
    %vm1634 = vcmp.eq.f32.partialorder %v1633, 8.507059e+37
    %v1635 = vand.u32 %v1168, 2147483648
    %v1636 = vor.u32 1.1754944e-38, %v1635
    %v1637 = vsel %vm1634, %v1636, %v1632
    %v1638 = vmul.f32 1.0, %v1637
    %v1639 = vrcp.pop %v1169
    %v1640 = vmul.f32 %v1169, %v1639
    %v1641 = vsub.f32 1.0, %v1640
    %v1642 = vmul.f32 %v1639, %v1641
    %v1643 = vadd.f32 %v1639, %v1642
    %vm1644 = vweird.f32 %v1169
    %vm1645 = vweird.f32 %v1639
    %vm1646 = vmor %vm1644, %vm1645
    %v1647 = vsel %vm1646, %v1639, %v1643
    %v1648 = vand.u32 2147483647, %v1169
    %vm1649 = vcmp.eq.f32.partialorder %v1648, 8.507059e+37
    %v1650 = vand.u32 %v1169, 2147483648
    %v1651 = vor.u32 1.1754944e-38, %v1650
    %v1652 = vsel %vm1649, %v1651, %v1647
    %v1653 = vmul.f32 1.0, %v1652
    %v1654 = vrcp.pop %v1170
    %v1655 = vmul.f32 %v1170, %v1654
    %v1656 = vsub.f32 1.0, %v1655
    %v1657 = vmul.f32 %v1654, %v1656
    %v1658 = vadd.f32 %v1654, %v1657
    %vm1659 = vweird.f32 %v1170
    %vm1660 = vweird.f32 %v1654
    %vm1661 = vmor %vm1659, %vm1660
    %v1662 = vsel %vm1661, %v1654, %v1658
    %v1663 = vand.u32 2147483647, %v1170
    %vm1664 = vcmp.eq.f32.partialorder %v1663, 8.507059e+37
    %v1665 = vand.u32 %v1170, 2147483648
    %v1666 = vor.u32 1.1754944e-38, %v1665
    %v1667 = vsel %vm1664, %v1666, %v1662
    %v1668 = vmul.f32 1.0, %v1667
    %v1669 = vrcp.pop %v1171
    %v1670 = vmul.f32 %v1171, %v1669
    %v1671 = vsub.f32 1.0, %v1670
    %v1672 = vmul.f32 %v1669, %v1671
    %v1673 = vadd.f32 %v1669, %v1672
    %vm1674 = vweird.f32 %v1171
    %vm1675 = vweird.f32 %v1669
    %vm1676 = vmor %vm1674, %vm1675
    %v1677 = vsel %vm1676, %v1669, %v1673
    %v1678 = vand.u32 2147483647, %v1171
    %vm1679 = vcmp.eq.f32.partialorder %v1678, 8.507059e+37
    %v1680 = vand.u32 %v1171, 2147483648
    %v1681 = vor.u32 1.1754944e-38, %v1680
    %v1682 = vsel %vm1679, %v1681, %v1677
    %v1683 = vmul.f32 1.0, %v1682
    %v1684 = vrcp.pop %v1172
    %v1685 = vmul.f32 %v1172, %v1684
    %v1686 = vsub.f32 1.0, %v1685
    %v1687 = vmul.f32 %v1684, %v1686
    %v1688 = vadd.f32 %v1684, %v1687
    %vm1689 = vweird.f32 %v1172
    %vm1690 = vweird.f32 %v1684
    %vm1691 = vmor %vm1689, %vm1690
    %v1692 = vsel %vm1691, %v1684, %v1688
    %v1693 = vand.u32 2147483647, %v1172
    %vm1694 = vcmp.eq.f32.partialorder %v1693, 8.507059e+37
    %v1695 = vand.u32 %v1172, 2147483648
    %v1696 = vor.u32 1.1754944e-38, %v1695
    %v1697 = vsel %vm1694, %v1696, %v1692
    %v1698 = vmul.f32 1.0, %v1697
    %v1699 = vrcp.pop %v1173
    %v1700 = vmul.f32 %v1173, %v1699
    %v1701 = vsub.f32 1.0, %v1700
    %v1702 = vmul.f32 %v1699, %v1701
    %v1703 = vadd.f32 %v1699, %v1702
    %vm1704 = vweird.f32 %v1173
    %vm1705 = vweird.f32 %v1699
    %vm1706 = vmor %vm1704, %vm1705
    %v1707 = vsel %vm1706, %v1699, %v1703
    %v1708 = vand.u32 2147483647, %v1173
    %vm1709 = vcmp.eq.f32.partialorder %v1708, 8.507059e+37
    %v1710 = vand.u32 %v1173, 2147483648
    %v1711 = vor.u32 1.1754944e-38, %v1710
    %v1712 = vsel %vm1709, %v1711, %v1707
    %v1713 = vmul.f32 1.0, %v1712
    %v1714 = vrcp.pop %v1174
    %v1715 = vmul.f32 %v1174, %v1714
    %v1716 = vsub.f32 1.0, %v1715
    %v1717 = vmul.f32 %v1714, %v1716
    %v1718 = vadd.f32 %v1714, %v1717
    %vm1719 = vweird.f32 %v1174
    %vm1720 = vweird.f32 %v1714
    %vm1721 = vmor %vm1719, %vm1720
    %v1722 = vsel %vm1721, %v1714, %v1718
    %v1723 = vand.u32 2147483647, %v1174
    %vm1724 = vcmp.eq.f32.partialorder %v1723, 8.507059e+37
    %v1725 = vand.u32 %v1174, 2147483648
    %v1726 = vor.u32 1.1754944e-38, %v1725
    %v1727 = vsel %vm1724, %v1726, %v1722
    %v1728 = vmul.f32 1.0, %v1727
    %v1729 = vrcp.pop %v1175
    %v1730 = vmul.f32 %v1175, %v1729
    %v1731 = vsub.f32 1.0, %v1730
    %v1732 = vmul.f32 %v1729, %v1731
    %v1733 = vadd.f32 %v1729, %v1732
    %vm1734 = vweird.f32 %v1175
    %vm1735 = vweird.f32 %v1729
    %vm1736 = vmor %vm1734, %vm1735
    %v1737 = vsel %vm1736, %v1729, %v1733
    %v1738 = vand.u32 2147483647, %v1175
    %vm1739 = vcmp.eq.f32.partialorder %v1738, 8.507059e+37
    %v1740 = vand.u32 %v1175, 2147483648
    %v1741 = vor.u32 1.1754944e-38, %v1740
    %v1742 = vsel %vm1739, %v1741, %v1737
    %v1743 = vmul.f32 1.0, %v1742
    %v1744 = vrcp.pop %v1176
    %v1745 = vmul.f32 %v1176, %v1744
    %v1746 = vsub.f32 1.0, %v1745
    %v1747 = vmul.f32 %v1744, %v1746
    %v1748 = vadd.f32 %v1744, %v1747
    %vm1749 = vweird.f32 %v1176
    %vm1750 = vweird.f32 %v1744
    %vm1751 = vmor %vm1749, %vm1750
    %v1752 = vsel %vm1751, %v1744, %v1748
    %v1753 = vand.u32 2147483647, %v1176
    %vm1754 = vcmp.eq.f32.partialorder %v1753, 8.507059e+37
    %v1755 = vand.u32 %v1176, 2147483648
    %v1756 = vor.u32 1.1754944e-38, %v1755
    %v1757 = vsel %vm1754, %v1756, %v1752
    %v1758 = vmul.f32 1.0, %v1757
    %v1759 = vrcp.pop %v1177
    %v1760 = vmul.f32 %v1177, %v1759
    %v1761 = vsub.f32 1.0, %v1760
    %v1762 = vmul.f32 %v1759, %v1761
    %v1763 = vadd.f32 %v1759, %v1762
    %vm1764 = vweird.f32 %v1177
    %vm1765 = vweird.f32 %v1759
    %vm1766 = vmor %vm1764, %vm1765
    %v1767 = vsel %vm1766, %v1759, %v1763
    %v1768 = vand.u32 2147483647, %v1177
    %vm1769 = vcmp.eq.f32.partialorder %v1768, 8.507059e+37
    %v1770 = vand.u32 %v1177, 2147483648
    %v1771 = vor.u32 1.1754944e-38, %v1770
    %v1772 = vsel %vm1769, %v1771, %v1767
    %v1773 = vmul.f32 1.0, %v1772
    %v1774 = vrcp.pop %v1178
    %v1775 = vmul.f32 %v1178, %v1774
    %v1776 = vsub.f32 1.0, %v1775
    %v1777 = vmul.f32 %v1774, %v1776
    %v1778 = vadd.f32 %v1774, %v1777
    %vm1779 = vweird.f32 %v1178
    %vm1780 = vweird.f32 %v1774
    %vm1781 = vmor %vm1779, %vm1780
    %v1782 = vsel %vm1781, %v1774, %v1778
    %v1783 = vand.u32 2147483647, %v1178
    %vm1784 = vcmp.eq.f32.partialorder %v1783, 8.507059e+37
    %v1785 = vand.u32 %v1178, 2147483648
    %v1786 = vor.u32 1.1754944e-38, %v1785
    %v1787 = vsel %vm1784, %v1786, %v1782
    %v1788 = vmul.f32 1.0, %v1787
    %v1789 = vrcp.pop %v1179
    %v1790 = vmul.f32 %v1179, %v1789
    %v1791 = vsub.f32 1.0, %v1790
    %v1792 = vmul.f32 %v1789, %v1791
    %v1793 = vadd.f32 %v1789, %v1792
    %vm1794 = vweird.f32 %v1179
    %vm1795 = vweird.f32 %v1789
    %vm1796 = vmor %vm1794, %vm1795
    %v1797 = vsel %vm1796, %v1789, %v1793
    %v1798 = vand.u32 2147483647, %v1179
    %vm1799 = vcmp.eq.f32.partialorder %v1798, 8.507059e+37
    %v1800 = vand.u32 %v1179, 2147483648
    %v1801 = vor.u32 1.1754944e-38, %v1800
    %v1802 = vsel %vm1799, %v1801, %v1797
    %v1803 = vmul.f32 1.0, %v1802
    %v1804 = vrcp.pop %v1180
    %v1805 = vmul.f32 %v1180, %v1804
    %v1806 = vsub.f32 1.0, %v1805
    %v1807 = vmul.f32 %v1804, %v1806
    %v1808 = vadd.f32 %v1804, %v1807
    %vm1809 = vweird.f32 %v1180
    %vm1810 = vweird.f32 %v1804
    %vm1811 = vmor %vm1809, %vm1810
    %v1812 = vsel %vm1811, %v1804, %v1808
    %v1813 = vand.u32 2147483647, %v1180
    %vm1814 = vcmp.eq.f32.partialorder %v1813, 8.507059e+37
    %v1815 = vand.u32 %v1180, 2147483648
    %v1816 = vor.u32 1.1754944e-38, %v1815
    %v1817 = vsel %vm1814, %v1816, %v1812
    %v1818 = vmul.f32 1.0, %v1817
    %v1819 = vrcp.pop %v1181
    %v1820 = vmul.f32 %v1181, %v1819
    %v1821 = vsub.f32 1.0, %v1820
    %v1822 = vmul.f32 %v1819, %v1821
    %v1823 = vadd.f32 %v1819, %v1822
    %vm1824 = vweird.f32 %v1181
    %vm1825 = vweird.f32 %v1819
    %vm1826 = vmor %vm1824, %vm1825
    %v1827 = vsel %vm1826, %v1819, %v1823
    %v1828 = vand.u32 2147483647, %v1181
    %vm1829 = vcmp.eq.f32.partialorder %v1828, 8.507059e+37
    %v1830 = vand.u32 %v1181, 2147483648
    %v1831 = vor.u32 1.1754944e-38, %v1830
    %v1832 = vsel %vm1829, %v1831, %v1827
    %v1833 = vmul.f32 1.0, %v1832
    %v1834 = vrcp.pop %v1182
    %v1835 = vmul.f32 %v1182, %v1834
    %v1836 = vsub.f32 1.0, %v1835
    %v1837 = vmul.f32 %v1834, %v1836
    %v1838 = vadd.f32 %v1834, %v1837
    %vm1839 = vweird.f32 %v1182
    %vm1840 = vweird.f32 %v1834
    %vm1841 = vmor %vm1839, %vm1840
    %v1842 = vsel %vm1841, %v1834, %v1838
    %v1843 = vand.u32 2147483647, %v1182
    %vm1844 = vcmp.eq.f32.partialorder %v1843, 8.507059e+37
    %v1845 = vand.u32 %v1182, 2147483648
    %v1846 = vor.u32 1.1754944e-38, %v1845
    %v1847 = vsel %vm1844, %v1846, %v1842
    %v1848 = vmul.f32 1.0, %v1847
    %v1849 = vrcp.pop %v1183
    %v1850 = vmul.f32 %v1183, %v1849
    %v1851 = vsub.f32 1.0, %v1850
    %v1852 = vmul.f32 %v1849, %v1851
    %v1853 = vadd.f32 %v1849, %v1852
    %vm1854 = vweird.f32 %v1183
    %vm1855 = vweird.f32 %v1849
    %vm1856 = vmor %vm1854, %vm1855
    %v1857 = vsel %vm1856, %v1849, %v1853
    %v1858 = vand.u32 2147483647, %v1183
    %vm1859 = vcmp.eq.f32.partialorder %v1858, 8.507059e+37
    %v1860 = vand.u32 %v1183, 2147483648
    %v1861 = vor.u32 1.1754944e-38, %v1860
    %v1862 = vsel %vm1859, %v1861, %v1857
    %v1863 = vmul.f32 1.0, %v1862
    %v1864 = vrcp.pop %v1184
    %v1865 = vmul.f32 %v1184, %v1864
    %v1866 = vsub.f32 1.0, %v1865
    %v1867 = vmul.f32 %v1864, %v1866
    %v1868 = vadd.f32 %v1864, %v1867
    %vm1869 = vweird.f32 %v1184
    %vm1870 = vweird.f32 %v1864
    %vm1871 = vmor %vm1869, %vm1870
    %v1872 = vsel %vm1871, %v1864, %v1868
    %v1873 = vand.u32 2147483647, %v1184
    %vm1874 = vcmp.eq.f32.partialorder %v1873, 8.507059e+37
    %v1875 = vand.u32 %v1184, 2147483648
    %v1876 = vor.u32 1.1754944e-38, %v1875
    %v1877 = vsel %vm1874, %v1876, %v1872
    %v1878 = vmul.f32 1.0, %v1877
    %v1879 = vrcp.pop %v1185
    %v1880 = vmul.f32 %v1185, %v1879
    %v1881 = vsub.f32 1.0, %v1880
    %v1882 = vmul.f32 %v1879, %v1881
    %v1883 = vadd.f32 %v1879, %v1882
    %vm1884 = vweird.f32 %v1185
    %vm1885 = vweird.f32 %v1879
    %vm1886 = vmor %vm1884, %vm1885
    %v1887 = vsel %vm1886, %v1879, %v1883
    %v1888 = vand.u32 2147483647, %v1185
    %vm1889 = vcmp.eq.f32.partialorder %v1888, 8.507059e+37
    %v1890 = vand.u32 %v1185, 2147483648
    %v1891 = vor.u32 1.1754944e-38, %v1890
    %v1892 = vsel %vm1889, %v1891, %v1887
    %v1893 = vmul.f32 1.0, %v1892
    %v1894 = vrcp.pop %v1186
    %v1895 = vmul.f32 %v1186, %v1894
    %v1896 = vsub.f32 1.0, %v1895
    %v1897 = vmul.f32 %v1894, %v1896
    %v1898 = vadd.f32 %v1894, %v1897
    %vm1899 = vweird.f32 %v1186
    %vm1900 = vweird.f32 %v1894
    %vm1901 = vmor %vm1899, %vm1900
    %v1902 = vsel %vm1901, %v1894, %v1898
    %v1903 = vand.u32 2147483647, %v1186
    %vm1904 = vcmp.eq.f32.partialorder %v1903, 8.507059e+37
    %v1905 = vand.u32 %v1186, 2147483648
    %v1906 = vor.u32 1.1754944e-38, %v1905
    %v1907 = vsel %vm1904, %v1906, %v1902
    %v1908 = vmul.f32 1.0, %v1907
    %v1909 = vrcp.pop %v1187
    %v1910 = vmul.f32 %v1187, %v1909
    %v1911 = vsub.f32 1.0, %v1910
    %v1912 = vmul.f32 %v1909, %v1911
    %v1913 = vadd.f32 %v1909, %v1912
    %vm1914 = vweird.f32 %v1187
    %vm1915 = vweird.f32 %v1909
    %vm1916 = vmor %vm1914, %vm1915
    %v1917 = vsel %vm1916, %v1909, %v1913
    %v1918 = vand.u32 2147483647, %v1187
    %vm1919 = vcmp.eq.f32.partialorder %v1918, 8.507059e+37
    %v1920 = vand.u32 %v1187, 2147483648
    %v1921 = vor.u32 1.1754944e-38, %v1920
    %v1922 = vsel %vm1919, %v1921, %v1917
    %v1923 = vmul.f32 1.0, %v1922
    %v1924 = vrcp.pop %v1188
    %v1925 = vmul.f32 %v1188, %v1924
    %v1926 = vsub.f32 1.0, %v1925
    %v1927 = vmul.f32 %v1924, %v1926
    %v1928 = vadd.f32 %v1924, %v1927
    %vm1929 = vweird.f32 %v1188
    %vm1930 = vweird.f32 %v1924
    %vm1931 = vmor %vm1929, %vm1930
    %v1932 = vsel %vm1931, %v1924, %v1928
    %v1933 = vand.u32 2147483647, %v1188
    %vm1934 = vcmp.eq.f32.partialorder %v1933, 8.507059e+37
    %v1935 = vand.u32 %v1188, 2147483648
    %v1936 = vor.u32 1.1754944e-38, %v1935
    %v1937 = vsel %vm1934, %v1936, %v1932
    %v1938 = vmul.f32 1.0, %v1937
    %v1939 = vrcp.pop %v1189
    %v1940 = vmul.f32 %v1189, %v1939
    %v1941 = vsub.f32 1.0, %v1940
    %v1942 = vmul.f32 %v1939, %v1941
    %v1943 = vadd.f32 %v1939, %v1942
    %vm1944 = vweird.f32 %v1189
    %vm1945 = vweird.f32 %v1939
    %vm1946 = vmor %vm1944, %vm1945
    %v1947 = vsel %vm1946, %v1939, %v1943
    %v1948 = vand.u32 2147483647, %v1189
    %vm1949 = vcmp.eq.f32.partialorder %v1948, 8.507059e+37
    %v1950 = vand.u32 %v1189, 2147483648
    %v1951 = vor.u32 1.1754944e-38, %v1950
    %v1952 = vsel %vm1949, %v1951, %v1947
    %v1953 = vmul.f32 1.0, %v1952
    %v1954 = vrcp.pop %v1190
    %v1955 = vmul.f32 %v1190, %v1954
    %v1956 = vsub.f32 1.0, %v1955
    %v1957 = vmul.f32 %v1954, %v1956
    %v1958 = vadd.f32 %v1954, %v1957
    %vm1959 = vweird.f32 %v1190
    %vm1960 = vweird.f32 %v1954
    %vm1961 = vmor %vm1959, %vm1960
    %v1962 = vsel %vm1961, %v1954, %v1958
    %v1963 = vand.u32 2147483647, %v1190
    %vm1964 = vcmp.eq.f32.partialorder %v1963, 8.507059e+37
    %v1965 = vand.u32 %v1190, 2147483648
    %v1966 = vor.u32 1.1754944e-38, %v1965
    %v1967 = vsel %vm1964, %v1966, %v1962
    %v1968 = vmul.f32 1.0, %v1967
    %v1969 = vrcp.pop %v1191
    %v1970 = vmul.f32 %v1191, %v1969
    %v1971 = vsub.f32 1.0, %v1970
    %v1972 = vmul.f32 %v1969, %v1971
    %v1973 = vadd.f32 %v1969, %v1972
    %vm1974 = vweird.f32 %v1191
    %vm1975 = vweird.f32 %v1969
    %vm1976 = vmor %vm1974, %vm1975
    %v1977 = vsel %vm1976, %v1969, %v1973
    %v1978 = vand.u32 2147483647, %v1191
    %vm1979 = vcmp.eq.f32.partialorder %v1978, 8.507059e+37
    %v1980 = vand.u32 %v1191, 2147483648
    %v1981 = vor.u32 1.1754944e-38, %v1980
    %v1982 = vsel %vm1979, %v1981, %v1977
    %v1983 = vmul.f32 1.0, %v1982
    %v1984 = vrcp.pop %v1192
    %v1985 = vmul.f32 %v1192, %v1984
    %v1986 = vsub.f32 1.0, %v1985
    %v1987 = vmul.f32 %v1984, %v1986
    %v1988 = vadd.f32 %v1984, %v1987
    %vm1989 = vweird.f32 %v1192
    %vm1990 = vweird.f32 %v1984
    %vm1991 = vmor %vm1989, %vm1990
    %v1992 = vsel %vm1991, %v1984, %v1988
    %v1993 = vand.u32 2147483647, %v1192
    %vm1994 = vcmp.eq.f32.partialorder %v1993, 8.507059e+37
    %v1995 = vand.u32 %v1192, 2147483648
    %v1996 = vor.u32 1.1754944e-38, %v1995
    %v1997 = vsel %vm1994, %v1996, %v1992
    %v1998 = vmul.f32 1.0, %v1997
    %v1999 = vrcp.pop %v1193
    %v2000 = vmul.f32 %v1193, %v1999
    %v2001 = vsub.f32 1.0, %v2000
    %v2002 = vmul.f32 %v1999, %v2001
    %v2003 = vadd.f32 %v1999, %v2002
    %vm2004 = vweird.f32 %v1193
    %vm2005 = vweird.f32 %v1999
    %vm2006 = vmor %vm2004, %vm2005
    %v2007 = vsel %vm2006, %v1999, %v2003
    %v2008 = vand.u32 2147483647, %v1193
    %vm2009 = vcmp.eq.f32.partialorder %v2008, 8.507059e+37
    %v2010 = vand.u32 %v1193, 2147483648
    %v2011 = vor.u32 1.1754944e-38, %v2010
    %v2012 = vsel %vm2009, %v2011, %v2007
    %v2013 = vmul.f32 1.0, %v2012
    %v2014 = vrcp.pop %v1194
    %v2015 = vmul.f32 %v1194, %v2014
    %v2016 = vsub.f32 1.0, %v2015
    %v2017 = vmul.f32 %v2014, %v2016
    %v2018 = vadd.f32 %v2014, %v2017
    %vm2019 = vweird.f32 %v1194
    %vm2020 = vweird.f32 %v2014
    %vm2021 = vmor %vm2019, %vm2020
    %v2022 = vsel %vm2021, %v2014, %v2018
    %v2023 = vand.u32 2147483647, %v1194
    %vm2024 = vcmp.eq.f32.partialorder %v2023, 8.507059e+37
    %v2025 = vand.u32 %v1194, 2147483648
    %v2026 = vor.u32 1.1754944e-38, %v2025
    %v2027 = vsel %vm2024, %v2026, %v2022
    %v2028 = vmul.f32 1.0, %v2027
    %v2029 = vrcp.pop %v1195
    %v2030 = vmul.f32 %v1195, %v2029
    %v2031 = vsub.f32 1.0, %v2030
    %v2032 = vmul.f32 %v2029, %v2031
    %v2033 = vadd.f32 %v2029, %v2032
    %vm2034 = vweird.f32 %v1195
    %vm2035 = vweird.f32 %v2029
    %vm2036 = vmor %vm2034, %vm2035
    %v2037 = vsel %vm2036, %v2029, %v2033
    %v2038 = vand.u32 2147483647, %v1195
    %vm2039 = vcmp.eq.f32.partialorder %v2038, 8.507059e+37
    %v2040 = vand.u32 %v1195, 2147483648
    %v2041 = vor.u32 1.1754944e-38, %v2040
    %v2042 = vsel %vm2039, %v2041, %v2037
    %v2043 = vmul.f32 1.0, %v2042
    %v2044 = vrcp.pop %v1196
    %v2045 = vmul.f32 %v1196, %v2044
    %v2046 = vsub.f32 1.0, %v2045
    %v2047 = vmul.f32 %v2044, %v2046
    %v2048 = vadd.f32 %v2044, %v2047
    %vm2049 = vweird.f32 %v1196
    %vm2050 = vweird.f32 %v2044
    %vm2051 = vmor %vm2049, %vm2050
    %v2052 = vsel %vm2051, %v2044, %v2048
    %v2053 = vand.u32 2147483647, %v1196
    %vm2054 = vcmp.eq.f32.partialorder %v2053, 8.507059e+37
    %v2055 = vand.u32 %v1196, 2147483648
    %v2056 = vor.u32 1.1754944e-38, %v2055
    %v2057 = vsel %vm2054, %v2056, %v2052
    %v2058 = vmul.f32 1.0, %v2057
    %v2059 = vrcp.pop %v1197
    %v2060 = vmul.f32 %v1197, %v2059
    %v2061 = vsub.f32 1.0, %v2060
    %v2062 = vmul.f32 %v2059, %v2061
    %v2063 = vadd.f32 %v2059, %v2062
    %vm2064 = vweird.f32 %v1197
    %vm2065 = vweird.f32 %v2059
    %vm2066 = vmor %vm2064, %vm2065
    %v2067 = vsel %vm2066, %v2059, %v2063
    %v2068 = vand.u32 2147483647, %v1197
    %vm2069 = vcmp.eq.f32.partialorder %v2068, 8.507059e+37
    %v2070 = vand.u32 %v1197, 2147483648
    %v2071 = vor.u32 1.1754944e-38, %v2070
    %v2072 = vsel %vm2069, %v2071, %v2067
    %v2073 = vmul.f32 1.0, %v2072
    %v2074 = vrcp.pop %v1198
    %v2075 = vmul.f32 %v1198, %v2074
    %v2076 = vsub.f32 1.0, %v2075
    %v2077 = vmul.f32 %v2074, %v2076
    %v2078 = vadd.f32 %v2074, %v2077
    %vm2079 = vweird.f32 %v1198
    %vm2080 = vweird.f32 %v2074
    %vm2081 = vmor %vm2079, %vm2080
    %v2082 = vsel %vm2081, %v2074, %v2078
    %v2083 = vand.u32 2147483647, %v1198
    %vm2084 = vcmp.eq.f32.partialorder %v2083, 8.507059e+37
    %v2085 = vand.u32 %v1198, 2147483648
    %v2086 = vor.u32 1.1754944e-38, %v2085
    %v2087 = vsel %vm2084, %v2086, %v2082
    %v2088 = vmul.f32 1.0, %v2087
    %v2089 = vrcp.pop %v1199
    %v2090 = vmul.f32 %v1199, %v2089
    %v2091 = vsub.f32 1.0, %v2090
    %v2092 = vmul.f32 %v2089, %v2091
    %v2093 = vadd.f32 %v2089, %v2092
    %vm2094 = vweird.f32 %v1199
    %vm2095 = vweird.f32 %v2089
    %vm2096 = vmor %vm2094, %vm2095
    %v2097 = vsel %vm2096, %v2089, %v2093
    %v2098 = vand.u32 2147483647, %v1199
    %vm2099 = vcmp.eq.f32.partialorder %v2098, 8.507059e+37
    %v2100 = vand.u32 %v1199, 2147483648
    %v2101 = vor.u32 1.1754944e-38, %v2100
    %v2102 = vsel %vm2099, %v2101, %v2097
    %v2103 = vmul.f32 1.0, %v2102
    %v2104 = vrcp.pop %v1200
    %v2105 = vmul.f32 %v1200, %v2104
    %v2106 = vsub.f32 1.0, %v2105
    %v2107 = vmul.f32 %v2104, %v2106
    %v2108 = vadd.f32 %v2104, %v2107
    %vm2109 = vweird.f32 %v1200
    %vm2110 = vweird.f32 %v2104
    %vm2111 = vmor %vm2109, %vm2110
    %v2112 = vsel %vm2111, %v2104, %v2108
    %v2113 = vand.u32 2147483647, %v1200
    %vm2114 = vcmp.eq.f32.partialorder %v2113, 8.507059e+37
    %v2115 = vand.u32 %v1200, 2147483648
    %v2116 = vor.u32 1.1754944e-38, %v2115
    %v2117 = vsel %vm2114, %v2116, %v2112
    %v2118 = vmul.f32 1.0, %v2117
    %v2119 = vrcp.pop %v1201
    %v2120 = vmul.f32 %v1201, %v2119
    %v2121 = vsub.f32 1.0, %v2120
    %v2122 = vmul.f32 %v2119, %v2121
    %v2123 = vadd.f32 %v2119, %v2122
    %vm2124 = vweird.f32 %v1201
    %vm2125 = vweird.f32 %v2119
    %vm2126 = vmor %vm2124, %vm2125
    %v2127 = vsel %vm2126, %v2119, %v2123
    %v2128 = vand.u32 2147483647, %v1201
    %vm2129 = vcmp.eq.f32.partialorder %v2128, 8.507059e+37
    %v2130 = vand.u32 %v1201, 2147483648
    %v2131 = vor.u32 1.1754944e-38, %v2130
    %v2132 = vsel %vm2129, %v2131, %v2127
    %v2133 = vmul.f32 1.0, %v2132
    %v2134 = vrcp.pop %v1202
    %v2135 = vmul.f32 %v1202, %v2134
    %v2136 = vsub.f32 1.0, %v2135
    %v2137 = vmul.f32 %v2134, %v2136
    %v2138 = vadd.f32 %v2134, %v2137
    %vm2139 = vweird.f32 %v1202
    %vm2140 = vweird.f32 %v2134
    %vm2141 = vmor %vm2139, %vm2140
    %v2142 = vsel %vm2141, %v2134, %v2138
    %v2143 = vand.u32 2147483647, %v1202
    %vm2144 = vcmp.eq.f32.partialorder %v2143, 8.507059e+37
    %v2145 = vand.u32 %v1202, 2147483648
    %v2146 = vor.u32 1.1754944e-38, %v2145
    %v2147 = vsel %vm2144, %v2146, %v2142
    %v2148 = vmul.f32 1.0, %v2147
    %v2149 = vrcp.pop %v1203
    %v2150 = vmul.f32 %v1203, %v2149
    %v2151 = vsub.f32 1.0, %v2150
    %v2152 = vmul.f32 %v2149, %v2151
    %v2153 = vadd.f32 %v2149, %v2152
    %vm2154 = vweird.f32 %v1203
    %vm2155 = vweird.f32 %v2149
    %vm2156 = vmor %vm2154, %vm2155
    %v2157 = vsel %vm2156, %v2149, %v2153
    %v2158 = vand.u32 2147483647, %v1203
    %vm2159 = vcmp.eq.f32.partialorder %v2158, 8.507059e+37
    %v2160 = vand.u32 %v1203, 2147483648
    %v2161 = vor.u32 1.1754944e-38, %v2160
    %v2162 = vsel %vm2159, %v2161, %v2157
    %v2163 = vmul.f32 1.0, %v2162
    %v2164 = vmul.f32 %v884, %v1218
    %v2165 = vmul.f32 %v885, %v1233
    %v2166 = vmul.f32 %v886, %v1248
    %v2167 = vmul.f32 %v887, %v1263
    %v2168 = vmul.f32 %v888, %v1278
    %v2169 = vmul.f32 %v889, %v1293
    %v2170 = vmul.f32 %v890, %v1308
    %v2171 = vmul.f32 %v891, %v1323
    %v2172 = vmul.f32 %v892, %v1338
    %v2173 = vmul.f32 %v893, %v1353
    %v2174 = vmul.f32 %v894, %v1368
    %v2175 = vmul.f32 %v895, %v1383
    %v2176 = vmul.f32 %v896, %v1398
    %v2177 = vmul.f32 %v897, %v1413
    %v2178 = vmul.f32 %v898, %v1428
    %v2179 = vmul.f32 %v899, %v1443
    %v2180 = vmul.f32 %v900, %v1458
    %v2181 = vmul.f32 %v901, %v1473
    %v2182 = vmul.f32 %v902, %v1488
    %v2183 = vmul.f32 %v903, %v1503
    %v2184 = vmul.f32 %v904, %v1518
    %v2185 = vmul.f32 %v905, %v1533
    %v2186 = vmul.f32 %v906, %v1548
    %v2187 = vmul.f32 %v907, %v1563
    %v2188 = vmul.f32 %v908, %v1578
    %v2189 = vmul.f32 %v909, %v1593
    %v2190 = vmul.f32 %v910, %v1608
    %v2191 = vmul.f32 %v911, %v1623
    %v2192 = vmul.f32 %v912, %v1638
    %v2193 = vmul.f32 %v913, %v1653
    %v2194 = vmul.f32 %v914, %v1668
    %v2195 = vmul.f32 %v915, %v1683
    %v2196 = vmul.f32 %v916, %v1698
    %v2197 = vmul.f32 %v917, %v1713
    %v2198 = vmul.f32 %v918, %v1728
    %v2199 = vmul.f32 %v919, %v1743
    %v2200 = vmul.f32 %v920, %v1758
    %v2201 = vmul.f32 %v921, %v1773
    %v2202 = vmul.f32 %v922, %v1788
    %v2203 = vmul.f32 %v923, %v1803
    %v2204 = vmul.f32 %v924, %v1818
    %v2205 = vmul.f32 %v925, %v1833
    %v2206 = vmul.f32 %v926, %v1848
    %v2207 = vmul.f32 %v927, %v1863
    %v2208 = vmul.f32 %v928, %v1878
    %v2209 = vmul.f32 %v929, %v1893
    %v2210 = vmul.f32 %v930, %v1908
    %v2211 = vmul.f32 %v931, %v1923
    %v2212 = vmul.f32 %v932, %v1938
    %v2213 = vmul.f32 %v933, %v1953
    %v2214 = vmul.f32 %v934, %v1968
    %v2215 = vmul.f32 %v935, %v1983
    %v2216 = vmul.f32 %v936, %v1998
    %v2217 = vmul.f32 %v937, %v2013
    %v2218 = vmul.f32 %v938, %v2028
    %v2219 = vmul.f32 %v939, %v2043
    %v2220 = vmul.f32 %v940, %v2058
    %v2221 = vmul.f32 %v941, %v2073
    %v2222 = vmul.f32 %v942, %v2088
    %v2223 = vmul.f32 %v943, %v2103
    %v2224 = vmul.f32 %v944, %v2118
    %v2225 = vmul.f32 %v945, %v2133
    %v2226 = vmul.f32 %v946, %v2148
    %v2227 = vmul.f32 %v947, %v2163
    %v2228 = vsel %vm179, %v2164, 0.0
    %v2229 = vsel %vm179, %v2165, 0.0
    %v2230 = vadd.f32 %v2228, %v2229
    %v2231 = vsel %vm179, %v2166, 0.0
    %v2232 = vadd.f32 %v2230, %v2231
    %v2233 = vsel %vm179, %v2167, 0.0
    %v2234 = vadd.f32 %v2232, %v2233
    %v2235 = vsel %vm179, %v2168, 0.0
    %v2236 = vadd.f32 %v2234, %v2235
    %v2237 = vsel %vm179, %v2169, 0.0
    %v2238 = vadd.f32 %v2236, %v2237
    %v2239 = vsel %vm179, %v2170, 0.0
    %v2240 = vadd.f32 %v2238, %v2239
    %v2241 = vsel %vm179, %v2171, 0.0
    %v2242 = vadd.f32 %v2240, %v2241
    %v2243 = vrot.slane %v2242, 4
    %v2244 = vadd.f32 %v2242, %v2243
    %v2245 = vrot.slane %v2244, 2
    %v2246 = vadd.f32 %v2244, %v2245
    %v2247 = vrot.slane %v2246, 1
    %v2248 = vadd.f32 %v2246, %v2247
    %v2249 = vsel %vm179, %v2172, 0.0
    %v2250 = vsel %vm179, %v2173, 0.0
    %v2251 = vadd.f32 %v2249, %v2250
    %v2252 = vsel %vm179, %v2174, 0.0
    %v2253 = vadd.f32 %v2251, %v2252
    %v2254 = vsel %vm179, %v2175, 0.0
    %v2255 = vadd.f32 %v2253, %v2254
    %v2256 = vsel %vm179, %v2176, 0.0
    %v2257 = vadd.f32 %v2255, %v2256
    %v2258 = vsel %vm179, %v2177, 0.0
    %v2259 = vadd.f32 %v2257, %v2258
    %v2260 = vsel %vm179, %v2178, 0.0
    %v2261 = vadd.f32 %v2259, %v2260
    %v2262 = vsel %vm179, %v2179, 0.0
    %v2263 = vadd.f32 %v2261, %v2262
    %v2264 = vrot.slane %v2263, 4
    %v2265 = vadd.f32 %v2263, %v2264
    %v2266 = vrot.slane %v2265, 2
    %v2267 = vadd.f32 %v2265, %v2266
    %v2268 = vrot.slane %v2267, 1
    %v2269 = vadd.f32 %v2267, %v2268
    %v2270 = vsel %vm179, %v2180, 0.0
    %v2271 = vsel %vm179, %v2181, 0.0
    %v2272 = vadd.f32 %v2270, %v2271
    %v2273 = vsel %vm179, %v2182, 0.0
    %v2274 = vadd.f32 %v2272, %v2273
    %v2275 = vsel %vm179, %v2183, 0.0
    %v2276 = vadd.f32 %v2274, %v2275
    %v2277 = vsel %vm179, %v2184, 0.0
    %v2278 = vadd.f32 %v2276, %v2277
    %v2279 = vsel %vm179, %v2185, 0.0
    %v2280 = vadd.f32 %v2278, %v2279
    %v2281 = vsel %vm179, %v2186, 0.0
    %v2282 = vadd.f32 %v2280, %v2281
    %v2283 = vsel %vm179, %v2187, 0.0
    %v2284 = vadd.f32 %v2282, %v2283
    %v2285 = vrot.slane %v2284, 4
    %v2286 = vadd.f32 %v2284, %v2285
    %v2287 = vrot.slane %v2286, 2
    %v2288 = vadd.f32 %v2286, %v2287
    %v2289 = vrot.slane %v2288, 1
    %v2290 = vadd.f32 %v2288, %v2289
    %v2291 = vsel %vm179, %v2188, 0.0
    %v2292 = vsel %vm179, %v2189, 0.0
    %v2293 = vadd.f32 %v2291, %v2292
    %v2294 = vsel %vm179, %v2190, 0.0
    %v2295 = vadd.f32 %v2293, %v2294
    %v2296 = vsel %vm179, %v2191, 0.0
    %v2297 = vadd.f32 %v2295, %v2296
    %v2298 = vsel %vm179, %v2192, 0.0
    %v2299 = vadd.f32 %v2297, %v2298
    %v2300 = vsel %vm179, %v2193, 0.0
    %v2301 = vadd.f32 %v2299, %v2300
    %v2302 = vsel %vm179, %v2194, 0.0
    %v2303 = vadd.f32 %v2301, %v2302
    %v2304 = vsel %vm179, %v2195, 0.0
    %v2305 = vadd.f32 %v2303, %v2304
    %v2306 = vrot.slane %v2305, 4
    %v2307 = vadd.f32 %v2305, %v2306
    %v2308 = vrot.slane %v2307, 2
    %v2309 = vadd.f32 %v2307, %v2308
    %v2310 = vrot.slane %v2309, 1
    %v2311 = vadd.f32 %v2309, %v2310
    %v2312 = vsel %vm179, %v2196, 0.0
    %v2313 = vsel %vm179, %v2197, 0.0
    %v2314 = vadd.f32 %v2312, %v2313
    %v2315 = vsel %vm179, %v2198, 0.0
    %v2316 = vadd.f32 %v2314, %v2315
    %v2317 = vsel %vm179, %v2199, 0.0
    %v2318 = vadd.f32 %v2316, %v2317
    %v2319 = vsel %vm179, %v2200, 0.0
    %v2320 = vadd.f32 %v2318, %v2319
    %v2321 = vsel %vm179, %v2201, 0.0
    %v2322 = vadd.f32 %v2320, %v2321
    %v2323 = vsel %vm179, %v2202, 0.0
    %v2324 = vadd.f32 %v2322, %v2323
    %v2325 = vsel %vm179, %v2203, 0.0
    %v2326 = vadd.f32 %v2324, %v2325
    %v2327 = vrot.slane %v2326, 4
    %v2328 = vadd.f32 %v2326, %v2327
    %v2329 = vrot.slane %v2328, 2
    %v2330 = vadd.f32 %v2328, %v2329
    %v2331 = vrot.slane %v2330, 1
    %v2332 = vadd.f32 %v2330, %v2331
    %v2333 = vsel %vm179, %v2204, 0.0
    %v2334 = vsel %vm179, %v2205, 0.0
    %v2335 = vadd.f32 %v2333, %v2334
    %v2336 = vsel %vm179, %v2206, 0.0
    %v2337 = vadd.f32 %v2335, %v2336
    %v2338 = vsel %vm179, %v2207, 0.0
    %v2339 = vadd.f32 %v2337, %v2338
    %v2340 = vsel %vm179, %v2208, 0.0
    %v2341 = vadd.f32 %v2339, %v2340
    %v2342 = vsel %vm179, %v2209, 0.0
    %v2343 = vadd.f32 %v2341, %v2342
    %v2344 = vsel %vm179, %v2210, 0.0
    %v2345 = vadd.f32 %v2343, %v2344
    %v2346 = vsel %vm179, %v2211, 0.0
    %v2347 = vadd.f32 %v2345, %v2346
    %v2348 = vrot.slane %v2347, 4
    %v2349 = vadd.f32 %v2347, %v2348
    %v2350 = vrot.slane %v2349, 2
    %v2351 = vadd.f32 %v2349, %v2350
    %v2352 = vrot.slane %v2351, 1
    %v2353 = vadd.f32 %v2351, %v2352
    %v2354 = vsel %vm179, %v2212, 0.0
    %v2355 = vsel %vm179, %v2213, 0.0
    %v2356 = vadd.f32 %v2354, %v2355
    %v2357 = vsel %vm179, %v2214, 0.0
    %v2358 = vadd.f32 %v2356, %v2357
    %v2359 = vsel %vm179, %v2215, 0.0
    %v2360 = vadd.f32 %v2358, %v2359
    %v2361 = vsel %vm179, %v2216, 0.0
    %v2362 = vadd.f32 %v2360, %v2361
    %v2363 = vsel %vm179, %v2217, 0.0
    %v2364 = vadd.f32 %v2362, %v2363
    %v2365 = vsel %vm179, %v2218, 0.0
    %v2366 = vadd.f32 %v2364, %v2365
    %v2367 = vsel %vm179, %v2219, 0.0
    %v2368 = vadd.f32 %v2366, %v2367
    %v2369 = vrot.slane %v2368, 4
    %v2370 = vadd.f32 %v2368, %v2369
    %v2371 = vrot.slane %v2370, 2
    %v2372 = vadd.f32 %v2370, %v2371
    %v2373 = vrot.slane %v2372, 1
    %v2374 = vadd.f32 %v2372, %v2373
    %v2375 = vsel %vm179, %v2220, 0.0
    %v2376 = vsel %vm179, %v2221, 0.0
    %v2377 = vadd.f32 %v2375, %v2376
    %v2378 = vsel %vm179, %v2222, 0.0
    %v2379 = vadd.f32 %v2377, %v2378
    %v2380 = vsel %vm179, %v2223, 0.0
    %v2381 = vadd.f32 %v2379, %v2380
    %v2382 = vsel %vm179, %v2224, 0.0
    %v2383 = vadd.f32 %v2381, %v2382
    %v2384 = vsel %vm179, %v2225, 0.0
    %v2385 = vadd.f32 %v2383, %v2384
    %v2386 = vsel %vm179, %v2226, 0.0
    %v2387 = vadd.f32 %v2385, %v2386
    %v2388 = vsel %vm179, %v2227, 0.0
    %v2389 = vadd.f32 %v2387, %v2388
    %v2390 = vrot.slane %v2389, 4
    %v2391 = vadd.f32 %v2389, %v2390
    %v2392 = vrot.slane %v2391, 2
    %v2393 = vadd.f32 %v2391, %v2392
    %v2394 = vrot.slane %v2393, 1
    %v2395 = vadd.f32 %v2393, %v2394
    %v2396 = vmul.f32 %v2248, 0.015625
    %v2397 = vmul.f32 %v2269, 0.015625
    %v2398 = vmul.f32 %v2290, 0.015625
    %v2399 = vmul.f32 %v2311, 0.015625
    %v2400 = vmul.f32 %v2332, 0.015625
    %v2401 = vmul.f32 %v2353, 0.015625
    %v2402 = vmul.f32 %v2374, 0.015625
    %v2403 = vmul.f32 %v2395, 0.015625
    %v2404 = vld [vmem:[%s4] sm:$0x1]
    %v2406 = vperm.slane %v2404, 0
    %v2408 = vadd.f32 %v2396, %v2406
    %v2409 = vadd.f32 %v2397, %v2406
    %v2410 = vadd.f32 %v2398, %v2406
    %v2411 = vadd.f32 %v2399, %v2406
    %v2412 = vadd.f32 %v2400, %v2406
    %v2413 = vadd.f32 %v2401, %v2406
    %v2414 = vadd.f32 %v2402, %v2406
    %v2415 = vadd.f32 %v2403, %v2406
    %v2416 = vpack.c.bf16 %v2408, %v2408
    %v2417 = vpack.c.bf16 %v2409, %v2409
    %v2418 = vpack.c.bf16 %v2410, %v2410
    %v2419 = vpack.c.bf16 %v2411, %v2411
    %v2420 = vpack.c.bf16 %v2412, %v2412
    %v2421 = vpack.c.bf16 %v2413, %v2413
    %v2422 = vpack.c.bf16 %v2414, %v2414
    %v2423 = vpack.c.bf16 %v2415, %v2415
    %v2424 = vld [vmem:[%s6] sm:$0xf]
    %v2425 = vld [vmem:[%s6 + $0x4] sm:$0xf]
    %v2426 = vld [vmem:[%s6 + $0x8] sm:$0xf]
    %v2427 = vld [vmem:[%s6 + $0xc] sm:$0xf]
    %v2428 = vld [vmem:[%s7] sm:$0x1]
    %v2430 = vperm.slane %v2428, 0
    %v2440 = vunpack.c.l.b16 %v2416
    %v2441 = vunpack.c.l.b16 %v2417
    %v2442 = vunpack.c.l.b16 %v2418
    %v2443 = vunpack.c.l.b16 %v2419
    %v2444 = vunpack.c.l.b16 %v2420
    %v2445 = vunpack.c.l.b16 %v2421
    %v2446 = vunpack.c.l.b16 %v2422
    %v2447 = vunpack.c.l.b16 %v2423
    %v2448 = vrot.slane %v2441, 7
    %vm2449 = vcmask 1041409
    %v2450 = vsel %vm2449, %v2448, %v2440
    %v2451 = vrot.slane %v2442, 6
    %vm2452 = vcmask 1042434
    %v2453 = vsel %vm2452, %v2451, %v2450
    %v2454 = vrot.slane %v2443, 5
    %vm2455 = vcmask 1043459
    %v2456 = vsel %vm2455, %v2454, %v2453
    %v2457 = vrot.slane %v2444, 4
    %vm2458 = vcmask 1044484
    %v2459 = vsel %vm2458, %v2457, %v2456
    %v2460 = vrot.slane %v2445, 3
    %vm2461 = vcmask 1045509
    %v2462 = vsel %vm2461, %v2460, %v2459
    %v2463 = vrot.slane %v2446, 2
    %vm2464 = vcmask 1046534
    %v2465 = vsel %vm2464, %v2463, %v2462
    %v2466 = vrot.slane %v2447, 1
    %vm2467 = vcmask 1047559
    %v2468 = vsel %vm2467, %v2466, %v2465
    %v2469 = vpack.c.b16 %v2468, %v2468
    %v2474 = vunpack.c.l.b16 %v2424
    %v2475 = vunpack.c.l.b16 %v2425
    %v2476 = vunpack.c.l.b16 %v2426
    %v2477 = vunpack.c.l.b16 %v2427
    %v2478 = vpack.c.b16 %v2475, %v2474
    %v2479 = vpack.c.b16 %v2477, %v2476
    %v2483 = vsel %vm179, %v2469, 0
    %2485 = vmatpush.bf16.msra.mxu0 0
    %2486 = vmatpush.bf16.msra.mxu0 0
    %2487 = vmatpush.bf16.msra.mxu0 0
    %2488 = vmatpush.bf16.msra.mxu0 0
    %2489 = vmatpush.bf16.msra.mxu0 0
    %2490 = vmatpush.bf16.msra.mxu0 0
    %2491 = vmatpush.bf16.msra.mxu0 %v2479
    %2492 = vmatpush.bf16.msra.mxu0 %v2478
    %2493 = vmatmul.bf16.gmra.mxu0 %v2483
    %v2494 = vpop.f32.mrf.mxu0
    %v2495 = vadd.f32 %v2430, %v2494
    %v2496 = vpop.f32.mrf.mxu0
    %2497 = vdwg.mxu0
    %v2498 = vld [vmem:[%s5] sm:$0xff]
    %v2499 = vld [vmem:[%s5 + $0x8] sm:$0xff]
    %v2500 = vld [vmem:[%s5 + $0x10] sm:$0xff]
    %v2501 = vld [vmem:[%s5 + $0x18] sm:$0xff]
    %v2502 = vld [vmem:[%s5 + $0x20] sm:$0xff]
    %v2503 = vld [vmem:[%s5 + $0x28] sm:$0xff]
    %v2504 = vld [vmem:[%s5 + $0x30] sm:$0xff]
    %v2505 = vld [vmem:[%s5 + $0x38] sm:$0xff]
    %v2506 = vadd.f32 %v2164, %v2498
    %v2507 = vadd.f32 %v2165, %v2499
    %v2508 = vadd.f32 %v2166, %v2500
    %v2509 = vadd.f32 %v2167, %v2501
    %v2510 = vadd.f32 %v2168, %v2502
    %v2511 = vadd.f32 %v2169, %v2503
    %v2512 = vadd.f32 %v2170, %v2504
    %v2513 = vadd.f32 %v2171, %v2505
    %v2514 = vadd.f32 %v2172, %v2498
    %v2515 = vadd.f32 %v2173, %v2499
    %v2516 = vadd.f32 %v2174, %v2500
    %v2517 = vadd.f32 %v2175, %v2501
    %v2518 = vadd.f32 %v2176, %v2502
    %v2519 = vadd.f32 %v2177, %v2503
    %v2520 = vadd.f32 %v2178, %v2504
    %v2521 = vadd.f32 %v2179, %v2505
    %v2522 = vadd.f32 %v2180, %v2498
    %v2523 = vadd.f32 %v2181, %v2499
    %v2524 = vadd.f32 %v2182, %v2500
    %v2525 = vadd.f32 %v2183, %v2501
    %v2526 = vadd.f32 %v2184, %v2502
    %v2527 = vadd.f32 %v2185, %v2503
    %v2528 = vadd.f32 %v2186, %v2504
    %v2529 = vadd.f32 %v2187, %v2505
    %v2530 = vadd.f32 %v2188, %v2498
    %v2531 = vadd.f32 %v2189, %v2499
    %v2532 = vadd.f32 %v2190, %v2500
    %v2533 = vadd.f32 %v2191, %v2501
    %v2534 = vadd.f32 %v2192, %v2502
    %v2535 = vadd.f32 %v2193, %v2503
    %v2536 = vadd.f32 %v2194, %v2504
    %v2537 = vadd.f32 %v2195, %v2505
    %v2538 = vadd.f32 %v2196, %v2498
    %v2539 = vadd.f32 %v2197, %v2499
    %v2540 = vadd.f32 %v2198, %v2500
    %v2541 = vadd.f32 %v2199, %v2501
    %v2542 = vadd.f32 %v2200, %v2502
    %v2543 = vadd.f32 %v2201, %v2503
    %v2544 = vadd.f32 %v2202, %v2504
    %v2545 = vadd.f32 %v2203, %v2505
    %v2546 = vadd.f32 %v2204, %v2498
    %v2547 = vadd.f32 %v2205, %v2499
    %v2548 = vadd.f32 %v2206, %v2500
    %v2549 = vadd.f32 %v2207, %v2501
    %v2550 = vadd.f32 %v2208, %v2502
    %v2551 = vadd.f32 %v2209, %v2503
    %v2552 = vadd.f32 %v2210, %v2504
    %v2553 = vadd.f32 %v2211, %v2505
    %v2554 = vadd.f32 %v2212, %v2498
    %v2555 = vadd.f32 %v2213, %v2499
    %v2556 = vadd.f32 %v2214, %v2500
    %v2557 = vadd.f32 %v2215, %v2501
    %v2558 = vadd.f32 %v2216, %v2502
    %v2559 = vadd.f32 %v2217, %v2503
    %v2560 = vadd.f32 %v2218, %v2504
    %v2561 = vadd.f32 %v2219, %v2505
    %v2562 = vadd.f32 %v2220, %v2498
    %v2563 = vadd.f32 %v2221, %v2499
    %v2564 = vadd.f32 %v2222, %v2500
    %v2565 = vadd.f32 %v2223, %v2501
    %v2566 = vadd.f32 %v2224, %v2502
    %v2567 = vadd.f32 %v2225, %v2503
    %v2568 = vadd.f32 %v2226, %v2504
    %v2569 = vadd.f32 %v2227, %v2505
    %v2570 = vpack.c.bf16 %v2507, %v2506
    %v2571 = vpack.c.bf16 %v2509, %v2508
    %v2572 = vpack.c.bf16 %v2511, %v2510
    %v2573 = vpack.c.bf16 %v2513, %v2512
    %v2574 = vpack.c.bf16 %v2515, %v2514
    %v2575 = vpack.c.bf16 %v2517, %v2516
    %v2576 = vpack.c.bf16 %v2519, %v2518
    %v2577 = vpack.c.bf16 %v2521, %v2520
    %v2578 = vpack.c.bf16 %v2523, %v2522
    %v2579 = vpack.c.bf16 %v2525, %v2524
    %v2580 = vpack.c.bf16 %v2527, %v2526
    %v2581 = vpack.c.bf16 %v2529, %v2528
    %v2582 = vpack.c.bf16 %v2531, %v2530
    %v2583 = vpack.c.bf16 %v2533, %v2532
    %v2584 = vpack.c.bf16 %v2535, %v2534
    %v2585 = vpack.c.bf16 %v2537, %v2536
    %v2586 = vpack.c.bf16 %v2539, %v2538
    %v2587 = vpack.c.bf16 %v2541, %v2540
    %v2588 = vpack.c.bf16 %v2543, %v2542
    %v2589 = vpack.c.bf16 %v2545, %v2544
    %v2590 = vpack.c.bf16 %v2547, %v2546
    %v2591 = vpack.c.bf16 %v2549, %v2548
    %v2592 = vpack.c.bf16 %v2551, %v2550
    %v2593 = vpack.c.bf16 %v2553, %v2552
    %v2594 = vpack.c.bf16 %v2555, %v2554
    %v2595 = vpack.c.bf16 %v2557, %v2556
    %v2596 = vpack.c.bf16 %v2559, %v2558
    %v2597 = vpack.c.bf16 %v2561, %v2560
    %v2598 = vpack.c.bf16 %v2563, %v2562
    %v2599 = vpack.c.bf16 %v2565, %v2564
    %v2600 = vpack.c.bf16 %v2567, %v2566
    %v2601 = vpack.c.bf16 %v2569, %v2568
    %v2602 = vld [vmem:[%s8] sm:$0xf]
    %v2603 = vld [vmem:[%s8 + $0x4] sm:$0xf]
    %v2604 = vld [vmem:[%s8 + $0x8] sm:$0xf]
    %v2605 = vld [vmem:[%s8 + $0xc] sm:$0xf]
    %v2606 = vld [vmem:[%s9] sm:$0x1]
    %v2608 = vperm.slane %v2606, 0
    %v2614 = vunpack.c.l.b16 %v2602
    %v2615 = vunpack.c.l.b16 %v2603
    %v2616 = vunpack.c.l.b16 %v2604
    %v2617 = vunpack.c.l.b16 %v2605
    %v2618 = vpack.c.b16 %v2615, %v2614
    %v2619 = vpack.c.b16 %v2617, %v2616
    %v2623 = vsel %vm179, %v2570, 0
    %v2626 = vsel %vm179, %v2571, 0
    %v2629 = vsel %vm179, %v2572, 0
    %v2632 = vsel %vm179, %v2573, 0
    %v2635 = vsel %vm179, %v2574, 0
    %v2638 = vsel %vm179, %v2575, 0
    %v2641 = vsel %vm179, %v2576, 0
    %v2644 = vsel %vm179, %v2577, 0
    %v2647 = vsel %vm179, %v2578, 0
    %v2650 = vsel %vm179, %v2579, 0
    %v2653 = vsel %vm179, %v2580, 0
    %v2656 = vsel %vm179, %v2581, 0
    %v2659 = vsel %vm179, %v2582, 0
    %v2662 = vsel %vm179, %v2583, 0
    %v2665 = vsel %vm179, %v2584, 0
    %v2668 = vsel %vm179, %v2585, 0
    %v2671 = vsel %vm179, %v2586, 0
    %v2674 = vsel %vm179, %v2587, 0
    %v2677 = vsel %vm179, %v2588, 0
    %v2680 = vsel %vm179, %v2589, 0
    %v2683 = vsel %vm179, %v2590, 0
    %v2686 = vsel %vm179, %v2591, 0
    %v2689 = vsel %vm179, %v2592, 0
    %v2692 = vsel %vm179, %v2593, 0
    %v2695 = vsel %vm179, %v2594, 0
    %v2698 = vsel %vm179, %v2595, 0
    %v2701 = vsel %vm179, %v2596, 0
    %v2704 = vsel %vm179, %v2597, 0
    %v2707 = vsel %vm179, %v2598, 0
    %v2710 = vsel %vm179, %v2599, 0
    %v2713 = vsel %vm179, %v2600, 0
    %v2716 = vsel %vm179, %v2601, 0
    %2718 = vmatpush.bf16.msra.mxu0 0
    %2719 = vmatpush.bf16.msra.mxu0 0
    %2720 = vmatpush.bf16.msra.mxu0 0
    %2721 = vmatpush.bf16.msra.mxu0 0
    %2722 = vmatpush.bf16.msra.mxu0 0
    %2723 = vmatpush.bf16.msra.mxu0 0
    %2724 = vmatpush.bf16.msra.mxu0 %v2619
    %2725 = vmatpush.bf16.msra.mxu0 %v2618
    %2726 = vmatmul.bf16.gmra.mxu0 %v2623
    %v2727 = vpop.f32.mrf.mxu0
    %v2728 = vadd.f32 %v2608, %v2727
    %v2729 = vpop.f32.mrf.mxu0
    %v2730 = vadd.f32 %v2608, %v2729
    %2731 = vmatmul.bf16.gmra.mxu0 %v2626
    %v2732 = vpop.f32.mrf.mxu0
    %v2733 = vadd.f32 %v2608, %v2732
    %v2734 = vpop.f32.mrf.mxu0
    %v2735 = vadd.f32 %v2608, %v2734
    %2736 = vmatmul.bf16.gmra.mxu0 %v2629
    %v2737 = vpop.f32.mrf.mxu0
    %v2738 = vadd.f32 %v2608, %v2737
    %v2739 = vpop.f32.mrf.mxu0
    %v2740 = vadd.f32 %v2608, %v2739
    %2741 = vmatmul.bf16.gmra.mxu0 %v2632
    %v2742 = vpop.f32.mrf.mxu0
    %v2743 = vadd.f32 %v2608, %v2742
    %v2744 = vpop.f32.mrf.mxu0
    %v2745 = vadd.f32 %v2608, %v2744
    %2746 = vmatmul.bf16.gmra.mxu0 %v2635
    %v2747 = vpop.f32.mrf.mxu0
    %v2748 = vadd.f32 %v2608, %v2747
    %v2749 = vpop.f32.mrf.mxu0
    %v2750 = vadd.f32 %v2608, %v2749
    %2751 = vmatmul.bf16.gmra.mxu0 %v2638
    %v2752 = vpop.f32.mrf.mxu0
    %v2753 = vadd.f32 %v2608, %v2752
    %v2754 = vpop.f32.mrf.mxu0
    %v2755 = vadd.f32 %v2608, %v2754
    %2756 = vmatmul.bf16.gmra.mxu0 %v2641
    %v2757 = vpop.f32.mrf.mxu0
    %v2758 = vadd.f32 %v2608, %v2757
    %v2759 = vpop.f32.mrf.mxu0
    %v2760 = vadd.f32 %v2608, %v2759
    %2761 = vmatmul.bf16.gmra.mxu0 %v2644
    %v2762 = vpop.f32.mrf.mxu0
    %v2763 = vadd.f32 %v2608, %v2762
    %v2764 = vpop.f32.mrf.mxu0
    %v2765 = vadd.f32 %v2608, %v2764
    %2766 = vmatmul.bf16.gmra.mxu0 %v2647
    %v2767 = vpop.f32.mrf.mxu0
    %v2768 = vadd.f32 %v2608, %v2767
    %v2769 = vpop.f32.mrf.mxu0
    %v2770 = vadd.f32 %v2608, %v2769
    %2771 = vmatmul.bf16.gmra.mxu0 %v2650
    %v2772 = vpop.f32.mrf.mxu0
    %v2773 = vadd.f32 %v2608, %v2772
    %v2774 = vpop.f32.mrf.mxu0
    %v2775 = vadd.f32 %v2608, %v2774
    %2776 = vmatmul.bf16.gmra.mxu0 %v2653
    %v2777 = vpop.f32.mrf.mxu0
    %v2778 = vadd.f32 %v2608, %v2777
    %v2779 = vpop.f32.mrf.mxu0
    %v2780 = vadd.f32 %v2608, %v2779
    %2781 = vmatmul.bf16.gmra.mxu0 %v2656
    %v2782 = vpop.f32.mrf.mxu0
    %v2783 = vadd.f32 %v2608, %v2782
    %v2784 = vpop.f32.mrf.mxu0
    %v2785 = vadd.f32 %v2608, %v2784
    %2786 = vmatmul.bf16.gmra.mxu0 %v2659
    %v2787 = vpop.f32.mrf.mxu0
    %v2788 = vadd.f32 %v2608, %v2787
    %v2789 = vpop.f32.mrf.mxu0
    %v2790 = vadd.f32 %v2608, %v2789
    %2791 = vmatmul.bf16.gmra.mxu0 %v2662
    %v2792 = vpop.f32.mrf.mxu0
    %v2793 = vadd.f32 %v2608, %v2792
    %v2794 = vpop.f32.mrf.mxu0
    %v2795 = vadd.f32 %v2608, %v2794
    %2796 = vmatmul.bf16.gmra.mxu0 %v2665
    %v2797 = vpop.f32.mrf.mxu0
    %v2798 = vadd.f32 %v2608, %v2797
    %v2799 = vpop.f32.mrf.mxu0
    %v2800 = vadd.f32 %v2608, %v2799
    %2801 = vmatmul.bf16.gmra.mxu0 %v2668
    %v2802 = vpop.f32.mrf.mxu0
    %v2803 = vadd.f32 %v2608, %v2802
    %v2804 = vpop.f32.mrf.mxu0
    %v2805 = vadd.f32 %v2608, %v2804
    %2806 = vmatmul.bf16.gmra.mxu0 %v2671
    %v2807 = vpop.f32.mrf.mxu0
    %v2808 = vadd.f32 %v2608, %v2807
    %v2809 = vpop.f32.mrf.mxu0
    %v2810 = vadd.f32 %v2608, %v2809
    %2811 = vmatmul.bf16.gmra.mxu0 %v2674
    %v2812 = vpop.f32.mrf.mxu0
    %v2813 = vadd.f32 %v2608, %v2812
    %v2814 = vpop.f32.mrf.mxu0
    %v2815 = vadd.f32 %v2608, %v2814
    %2816 = vmatmul.bf16.gmra.mxu0 %v2677
    %v2817 = vpop.f32.mrf.mxu0
    %v2818 = vadd.f32 %v2608, %v2817
    %v2819 = vpop.f32.mrf.mxu0
    %v2820 = vadd.f32 %v2608, %v2819
    %2821 = vmatmul.bf16.gmra.mxu0 %v2680
    %v2822 = vpop.f32.mrf.mxu0
    %v2823 = vadd.f32 %v2608, %v2822
    %v2824 = vpop.f32.mrf.mxu0
    %v2825 = vadd.f32 %v2608, %v2824
    %2826 = vmatmul.bf16.gmra.mxu0 %v2683
    %v2827 = vpop.f32.mrf.mxu0
    %v2828 = vadd.f32 %v2608, %v2827
    %v2829 = vpop.f32.mrf.mxu0
    %v2830 = vadd.f32 %v2608, %v2829
    %2831 = vmatmul.bf16.gmra.mxu0 %v2686
    %v2832 = vpop.f32.mrf.mxu0
    %v2833 = vadd.f32 %v2608, %v2832
    %v2834 = vpop.f32.mrf.mxu0
    %v2835 = vadd.f32 %v2608, %v2834
    %2836 = vmatmul.bf16.gmra.mxu0 %v2689
    %v2837 = vpop.f32.mrf.mxu0
    %v2838 = vadd.f32 %v2608, %v2837
    %v2839 = vpop.f32.mrf.mxu0
    %v2840 = vadd.f32 %v2608, %v2839
    %2841 = vmatmul.bf16.gmra.mxu0 %v2692
    %v2842 = vpop.f32.mrf.mxu0
    %v2843 = vadd.f32 %v2608, %v2842
    %v2844 = vpop.f32.mrf.mxu0
    %v2845 = vadd.f32 %v2608, %v2844
    %2846 = vmatmul.bf16.gmra.mxu0 %v2695
    %v2847 = vpop.f32.mrf.mxu0
    %v2848 = vadd.f32 %v2608, %v2847
    %v2849 = vpop.f32.mrf.mxu0
    %v2850 = vadd.f32 %v2608, %v2849
    %2851 = vmatmul.bf16.gmra.mxu0 %v2698
    %v2852 = vpop.f32.mrf.mxu0
    %v2853 = vadd.f32 %v2608, %v2852
    %v2854 = vpop.f32.mrf.mxu0
    %v2855 = vadd.f32 %v2608, %v2854
    %2856 = vmatmul.bf16.gmra.mxu0 %v2701
    %v2857 = vpop.f32.mrf.mxu0
    %v2858 = vadd.f32 %v2608, %v2857
    %v2859 = vpop.f32.mrf.mxu0
    %v2860 = vadd.f32 %v2608, %v2859
    %2861 = vmatmul.bf16.gmra.mxu0 %v2704
    %v2862 = vpop.f32.mrf.mxu0
    %v2863 = vadd.f32 %v2608, %v2862
    %v2864 = vpop.f32.mrf.mxu0
    %v2865 = vadd.f32 %v2608, %v2864
    %2866 = vmatmul.bf16.gmra.mxu0 %v2707
    %v2867 = vpop.f32.mrf.mxu0
    %v2868 = vadd.f32 %v2608, %v2867
    %v2869 = vpop.f32.mrf.mxu0
    %v2870 = vadd.f32 %v2608, %v2869
    %2871 = vmatmul.bf16.gmra.mxu0 %v2710
    %v2872 = vpop.f32.mrf.mxu0
    %v2873 = vadd.f32 %v2608, %v2872
    %v2874 = vpop.f32.mrf.mxu0
    %v2875 = vadd.f32 %v2608, %v2874
    %2876 = vmatmul.bf16.gmra.mxu0 %v2713
    %v2877 = vpop.f32.mrf.mxu0
    %v2878 = vadd.f32 %v2608, %v2877
    %v2879 = vpop.f32.mrf.mxu0
    %v2880 = vadd.f32 %v2608, %v2879
    %2881 = vmatmul.bf16.gmra.mxu0 %v2716
    %v2882 = vpop.f32.mrf.mxu0
    %v2883 = vadd.f32 %v2608, %v2882
    %v2884 = vpop.f32.mrf.mxu0
    %v2885 = vadd.f32 %v2608, %v2884
    %2886 = vdwg.mxu0
    %v2888 = vrot.slane %v2495, 1
    %v2889 = vrot.slane %v2495, 2
    %v2890 = vrot.slane %v2495, 3
    %v2891 = vrot.slane %v2495, 4
    %v2892 = vrot.slane %v2495, 5
    %v2893 = vrot.slane %v2495, 6
    %v2894 = vrot.slane %v2495, 7
    %v2895 = vperm.slane %v2495, 0
    %v2896 = vperm.slane %v2888, 0
    %v2897 = vperm.slane %v2889, 0
    %v2898 = vperm.slane %v2890, 0
    %v2899 = vperm.slane %v2891, 0
    %v2900 = vperm.slane %v2892, 0
    %v2901 = vperm.slane %v2893, 0
    %v2902 = vperm.slane %v2894, 0
    %v2911 = vmul.f32 %v2728, %v2895
    %v2912 = vmul.f32 %v2730, %v2895
    %v2913 = vmul.f32 %v2733, %v2895
    %v2914 = vmul.f32 %v2735, %v2895
    %v2915 = vmul.f32 %v2738, %v2895
    %v2916 = vmul.f32 %v2740, %v2895
    %v2917 = vmul.f32 %v2743, %v2895
    %v2918 = vmul.f32 %v2745, %v2895
    %v2919 = vmul.f32 %v2748, %v2896
    %v2920 = vmul.f32 %v2750, %v2896
    %v2921 = vmul.f32 %v2753, %v2896
    %v2922 = vmul.f32 %v2755, %v2896
    %v2923 = vmul.f32 %v2758, %v2896
    %v2924 = vmul.f32 %v2760, %v2896
    %v2925 = vmul.f32 %v2763, %v2896
    %v2926 = vmul.f32 %v2765, %v2896
    %v2927 = vmul.f32 %v2768, %v2897
    %v2928 = vmul.f32 %v2770, %v2897
    %v2929 = vmul.f32 %v2773, %v2897
    %v2930 = vmul.f32 %v2775, %v2897
    %v2931 = vmul.f32 %v2778, %v2897
    %v2932 = vmul.f32 %v2780, %v2897
    %v2933 = vmul.f32 %v2783, %v2897
    %v2934 = vmul.f32 %v2785, %v2897
    %v2935 = vmul.f32 %v2788, %v2898
    %v2936 = vmul.f32 %v2790, %v2898
    %v2937 = vmul.f32 %v2793, %v2898
    %v2938 = vmul.f32 %v2795, %v2898
    %v2939 = vmul.f32 %v2798, %v2898
    %v2940 = vmul.f32 %v2800, %v2898
    %v2941 = vmul.f32 %v2803, %v2898
    %v2942 = vmul.f32 %v2805, %v2898
    %v2943 = vmul.f32 %v2808, %v2899
    %v2944 = vmul.f32 %v2810, %v2899
    %v2945 = vmul.f32 %v2813, %v2899
    %v2946 = vmul.f32 %v2815, %v2899
    %v2947 = vmul.f32 %v2818, %v2899
    %v2948 = vmul.f32 %v2820, %v2899
    %v2949 = vmul.f32 %v2823, %v2899
    %v2950 = vmul.f32 %v2825, %v2899
    %v2951 = vmul.f32 %v2828, %v2900
    %v2952 = vmul.f32 %v2830, %v2900
    %v2953 = vmul.f32 %v2833, %v2900
    %v2954 = vmul.f32 %v2835, %v2900
    %v2955 = vmul.f32 %v2838, %v2900
    %v2956 = vmul.f32 %v2840, %v2900
    %v2957 = vmul.f32 %v2843, %v2900
    %v2958 = vmul.f32 %v2845, %v2900
    %v2959 = vmul.f32 %v2848, %v2901
    %v2960 = vmul.f32 %v2850, %v2901
    %v2961 = vmul.f32 %v2853, %v2901
    %v2962 = vmul.f32 %v2855, %v2901
    %v2963 = vmul.f32 %v2858, %v2901
    %v2964 = vmul.f32 %v2860, %v2901
    %v2965 = vmul.f32 %v2863, %v2901
    %v2966 = vmul.f32 %v2865, %v2901
    %v2967 = vmul.f32 %v2868, %v2902
    %v2968 = vmul.f32 %v2870, %v2902
    %v2969 = vmul.f32 %v2873, %v2902
    %v2970 = vmul.f32 %v2875, %v2902
    %v2971 = vmul.f32 %v2878, %v2902
    %v2972 = vmul.f32 %v2880, %v2902
    %v2973 = vmul.f32 %v2883, %v2902
    %v2974 = vmul.f32 %v2885, %v2902
    %v2975 = vld [vmem:[%s12] sm:$0xff]
    %v2976 = vld [vmem:[%s12 + $0x8] sm:$0xff]
    %v2977 = vld [vmem:[%s12 + $0x10] sm:$0xff]
    %v2978 = vld [vmem:[%s12 + $0x18] sm:$0xff]
    %v2980 = vsel %vm179, %v2911, 0
    %v2983 = vsel %vm179, %v2912, 0
    %v2986 = vsel %vm179, %v2913, 0
    %v2989 = vsel %vm179, %v2914, 0
    %v2992 = vsel %vm179, %v2915, 0
    %v2995 = vsel %vm179, %v2916, 0
    %v2998 = vsel %vm179, %v2917, 0
    %v3001 = vsel %vm179, %v2918, 0
    %v3004 = vsel %vm179, %v2919, 0
    %v3007 = vsel %vm179, %v2920, 0
    %v3010 = vsel %vm179, %v2921, 0
    %v3013 = vsel %vm179, %v2922, 0
    %v3016 = vsel %vm179, %v2923, 0
    %v3019 = vsel %vm179, %v2924, 0
    %v3022 = vsel %vm179, %v2925, 0
    %v3025 = vsel %vm179, %v2926, 0
    %v3028 = vsel %vm179, %v2927, 0
    %v3031 = vsel %vm179, %v2928, 0
    %v3034 = vsel %vm179, %v2929, 0
    %v3037 = vsel %vm179, %v2930, 0
    %v3040 = vsel %vm179, %v2931, 0
    %v3043 = vsel %vm179, %v2932, 0
    %v3046 = vsel %vm179, %v2933, 0
    %v3049 = vsel %vm179, %v2934, 0
    %v3052 = vsel %vm179, %v2935, 0
    %v3055 = vsel %vm179, %v2936, 0
    %v3058 = vsel %vm179, %v2937, 0
    %v3061 = vsel %vm179, %v2938, 0
    %v3064 = vsel %vm179, %v2939, 0
    %v3067 = vsel %vm179, %v2940, 0
    %v3070 = vsel %vm179, %v2941, 0
    %v3073 = vsel %vm179, %v2942, 0
    %v3076 = vsel %vm179, %v2943, 0
    %v3079 = vsel %vm179, %v2944, 0
    %v3082 = vsel %vm179, %v2945, 0
    %v3085 = vsel %vm179, %v2946, 0
    %v3088 = vsel %vm179, %v2947, 0
    %v3091 = vsel %vm179, %v2948, 0
    %v3094 = vsel %vm179, %v2949, 0
    %v3097 = vsel %vm179, %v2950, 0
    %v3100 = vsel %vm179, %v2951, 0
    %v3103 = vsel %vm179, %v2952, 0
    %v3106 = vsel %vm179, %v2953, 0
    %v3109 = vsel %vm179, %v2954, 0
    %v3112 = vsel %vm179, %v2955, 0
    %v3115 = vsel %vm179, %v2956, 0
    %v3118 = vsel %vm179, %v2957, 0
    %v3121 = vsel %vm179, %v2958, 0
    %v3124 = vsel %vm179, %v2959, 0
    %v3127 = vsel %vm179, %v2960, 0
    %v3130 = vsel %vm179, %v2961, 0
    %v3133 = vsel %vm179, %v2962, 0
    %v3136 = vsel %vm179, %v2963, 0
    %v3139 = vsel %vm179, %v2964, 0
    %v3142 = vsel %vm179, %v2965, 0
    %v3145 = vsel %vm179, %v2966, 0
    %v3148 = vsel %vm179, %v2967, 0
    %v3151 = vsel %vm179, %v2968, 0
    %v3154 = vsel %vm179, %v2969, 0
    %v3157 = vsel %vm179, %v2970, 0
    %v3160 = vsel %vm179, %v2971, 0
    %v3163 = vsel %vm179, %v2972, 0
    %v3166 = vsel %vm179, %v2973, 0
    %v3169 = vsel %vm179, %v2974, 0
    %3171 = vmatpush.msra.mxu0 0.0
    %3172 = vmatpush.msra.mxu0 0.0
    %3173 = vmatpush.msra.mxu0 0.0
    %3174 = vmatpush.msra.mxu0 0.0
    %3175 = vmatpush.msra.mxu0 0.0
    %3176 = vmatpush.msra.mxu0 0.0
    %3177 = vmatpush.msra.mxu0 0.0
    %3178 = vmatpush.msra.mxu0 0.0
    %3179 = vmatpush.msra.mxu0 0.0
    %3180 = vmatpush.msra.mxu0 0.0
    %3181 = vmatpush.msra.mxu0 0.0
    %3182 = vmatpush.msra.mxu0 0.0
    %3183 = vmatpush.msra.mxu0 %v2978
    %3184 = vmatpush.msra.mxu0 %v2977
    %3185 = vmatpush.msra.mxu0 %v2976
    %3186 = vmatpush.msra.mxu0 %v2975
    %3187 = vmatmul.f32.gmra.mxu0 %v2980
    %v3188 = vpop.f32.mrf.mxu0
    %v3189 = vadd.f32 0.0, %v3188
    %3190 = vmatmul.f32.gmra.mxu0 %v2983
    %v3191 = vpop.f32.mrf.mxu0
    %v3192 = vadd.f32 0.0, %v3191
    %3193 = vmatmul.f32.gmra.mxu0 %v2986
    %v3194 = vpop.f32.mrf.mxu0
    %v3195 = vadd.f32 0.0, %v3194
    %3196 = vmatmul.f32.gmra.mxu0 %v2989
    %v3197 = vpop.f32.mrf.mxu0
    %v3198 = vadd.f32 0.0, %v3197
    %3199 = vmatmul.f32.gmra.mxu0 %v2992
    %v3200 = vpop.f32.mrf.mxu0
    %v3201 = vadd.f32 0.0, %v3200
    %3202 = vmatmul.f32.gmra.mxu0 %v2995
    %v3203 = vpop.f32.mrf.mxu0
    %v3204 = vadd.f32 0.0, %v3203
    %3205 = vmatmul.f32.gmra.mxu0 %v2998
    %v3206 = vpop.f32.mrf.mxu0
    %v3207 = vadd.f32 0.0, %v3206
    %3208 = vmatmul.f32.gmra.mxu0 %v3001
    %v3209 = vpop.f32.mrf.mxu0
    %v3210 = vadd.f32 0.0, %v3209
    %3211 = vmatmul.f32.gmra.mxu0 %v3004
    %v3212 = vpop.f32.mrf.mxu0
    %v3213 = vadd.f32 0.0, %v3212
    %3214 = vmatmul.f32.gmra.mxu0 %v3007
    %v3215 = vpop.f32.mrf.mxu0
    %v3216 = vadd.f32 0.0, %v3215
    %3217 = vmatmul.f32.gmra.mxu0 %v3010
    %v3218 = vpop.f32.mrf.mxu0
    %v3219 = vadd.f32 0.0, %v3218
    %3220 = vmatmul.f32.gmra.mxu0 %v3013
    %v3221 = vpop.f32.mrf.mxu0
    %v3222 = vadd.f32 0.0, %v3221
    %3223 = vmatmul.f32.gmra.mxu0 %v3016
    %v3224 = vpop.f32.mrf.mxu0
    %v3225 = vadd.f32 0.0, %v3224
    %3226 = vmatmul.f32.gmra.mxu0 %v3019
    %v3227 = vpop.f32.mrf.mxu0
    %v3228 = vadd.f32 0.0, %v3227
    %3229 = vmatmul.f32.gmra.mxu0 %v3022
    %v3230 = vpop.f32.mrf.mxu0
    %v3231 = vadd.f32 0.0, %v3230
    %3232 = vmatmul.f32.gmra.mxu0 %v3025
    %v3233 = vpop.f32.mrf.mxu0
    %v3234 = vadd.f32 0.0, %v3233
    %3235 = vmatmul.f32.gmra.mxu0 %v3028
    %v3236 = vpop.f32.mrf.mxu0
    %v3237 = vadd.f32 0.0, %v3236
    %3238 = vmatmul.f32.gmra.mxu0 %v3031
    %v3239 = vpop.f32.mrf.mxu0
    %v3240 = vadd.f32 0.0, %v3239
    %3241 = vmatmul.f32.gmra.mxu0 %v3034
    %v3242 = vpop.f32.mrf.mxu0
    %v3243 = vadd.f32 0.0, %v3242
    %3244 = vmatmul.f32.gmra.mxu0 %v3037
    %v3245 = vpop.f32.mrf.mxu0
    %v3246 = vadd.f32 0.0, %v3245
    %3247 = vmatmul.f32.gmra.mxu0 %v3040
    %v3248 = vpop.f32.mrf.mxu0
    %v3249 = vadd.f32 0.0, %v3248
    %3250 = vmatmul.f32.gmra.mxu0 %v3043
    %v3251 = vpop.f32.mrf.mxu0
    %v3252 = vadd.f32 0.0, %v3251
    %3253 = vmatmul.f32.gmra.mxu0 %v3046
    %v3254 = vpop.f32.mrf.mxu0
    %v3255 = vadd.f32 0.0, %v3254
    %3256 = vmatmul.f32.gmra.mxu0 %v3049
    %v3257 = vpop.f32.mrf.mxu0
    %v3258 = vadd.f32 0.0, %v3257
    %3259 = vmatmul.f32.gmra.mxu0 %v3052
    %v3260 = vpop.f32.mrf.mxu0
    %v3261 = vadd.f32 0.0, %v3260
    %3262 = vmatmul.f32.gmra.mxu0 %v3055
    %v3263 = vpop.f32.mrf.mxu0
    %v3264 = vadd.f32 0.0, %v3263
    %3265 = vmatmul.f32.gmra.mxu0 %v3058
    %v3266 = vpop.f32.mrf.mxu0
    %v3267 = vadd.f32 0.0, %v3266
    %3268 = vmatmul.f32.gmra.mxu0 %v3061
    %v3269 = vpop.f32.mrf.mxu0
    %v3270 = vadd.f32 0.0, %v3269
    %3271 = vmatmul.f32.gmra.mxu0 %v3064
    %v3272 = vpop.f32.mrf.mxu0
    %v3273 = vadd.f32 0.0, %v3272
    %3274 = vmatmul.f32.gmra.mxu0 %v3067
    %v3275 = vpop.f32.mrf.mxu0
    %v3276 = vadd.f32 0.0, %v3275
    %3277 = vmatmul.f32.gmra.mxu0 %v3070
    %v3278 = vpop.f32.mrf.mxu0
    %v3279 = vadd.f32 0.0, %v3278
    %3280 = vmatmul.f32.gmra.mxu0 %v3073
    %v3281 = vpop.f32.mrf.mxu0
    %v3282 = vadd.f32 0.0, %v3281
    %3283 = vmatmul.f32.gmra.mxu0 %v3076
    %v3284 = vpop.f32.mrf.mxu0
    %v3285 = vadd.f32 0.0, %v3284
    %3286 = vmatmul.f32.gmra.mxu0 %v3079
    %v3287 = vpop.f32.mrf.mxu0
    %v3288 = vadd.f32 0.0, %v3287
    %3289 = vmatmul.f32.gmra.mxu0 %v3082
    %v3290 = vpop.f32.mrf.mxu0
    %v3291 = vadd.f32 0.0, %v3290
    %3292 = vmatmul.f32.gmra.mxu0 %v3085
    %v3293 = vpop.f32.mrf.mxu0
    %v3294 = vadd.f32 0.0, %v3293
    %3295 = vmatmul.f32.gmra.mxu0 %v3088
    %v3296 = vpop.f32.mrf.mxu0
    %v3297 = vadd.f32 0.0, %v3296
    %3298 = vmatmul.f32.gmra.mxu0 %v3091
    %v3299 = vpop.f32.mrf.mxu0
    %v3300 = vadd.f32 0.0, %v3299
    %3301 = vmatmul.f32.gmra.mxu0 %v3094
    %v3302 = vpop.f32.mrf.mxu0
    %v3303 = vadd.f32 0.0, %v3302
    %3304 = vmatmul.f32.gmra.mxu0 %v3097
    %v3305 = vpop.f32.mrf.mxu0
    %v3306 = vadd.f32 0.0, %v3305
    %3307 = vmatmul.f32.gmra.mxu0 %v3100
    %v3308 = vpop.f32.mrf.mxu0
    %v3309 = vadd.f32 0.0, %v3308
    %3310 = vmatmul.f32.gmra.mxu0 %v3103
    %v3311 = vpop.f32.mrf.mxu0
    %v3312 = vadd.f32 0.0, %v3311
    %3313 = vmatmul.f32.gmra.mxu0 %v3106
    %v3314 = vpop.f32.mrf.mxu0
    %v3315 = vadd.f32 0.0, %v3314
    %3316 = vmatmul.f32.gmra.mxu0 %v3109
    %v3317 = vpop.f32.mrf.mxu0
    %v3318 = vadd.f32 0.0, %v3317
    %3319 = vmatmul.f32.gmra.mxu0 %v3112
    %v3320 = vpop.f32.mrf.mxu0
    %v3321 = vadd.f32 0.0, %v3320
    %3322 = vmatmul.f32.gmra.mxu0 %v3115
    %v3323 = vpop.f32.mrf.mxu0
    %v3324 = vadd.f32 0.0, %v3323
    %3325 = vmatmul.f32.gmra.mxu0 %v3118
    %v3326 = vpop.f32.mrf.mxu0
    %v3327 = vadd.f32 0.0, %v3326
    %3328 = vmatmul.f32.gmra.mxu0 %v3121
    %v3329 = vpop.f32.mrf.mxu0
    %v3330 = vadd.f32 0.0, %v3329
    %3331 = vmatmul.f32.gmra.mxu0 %v3124
    %v3332 = vpop.f32.mrf.mxu0
    %v3333 = vadd.f32 0.0, %v3332
    %3334 = vmatmul.f32.gmra.mxu0 %v3127
    %v3335 = vpop.f32.mrf.mxu0
    %v3336 = vadd.f32 0.0, %v3335
    %3337 = vmatmul.f32.gmra.mxu0 %v3130
    %v3338 = vpop.f32.mrf.mxu0
    %v3339 = vadd.f32 0.0, %v3338
    %3340 = vmatmul.f32.gmra.mxu0 %v3133
    %v3341 = vpop.f32.mrf.mxu0
    %v3342 = vadd.f32 0.0, %v3341
    %3343 = vmatmul.f32.gmra.mxu0 %v3136
    %v3344 = vpop.f32.mrf.mxu0
    %v3345 = vadd.f32 0.0, %v3344
    %3346 = vmatmul.f32.gmra.mxu0 %v3139
    %v3347 = vpop.f32.mrf.mxu0
    %v3348 = vadd.f32 0.0, %v3347
    %3349 = vmatmul.f32.gmra.mxu0 %v3142
    %v3350 = vpop.f32.mrf.mxu0
    %v3351 = vadd.f32 0.0, %v3350
    %3352 = vmatmul.f32.gmra.mxu0 %v3145
    %v3353 = vpop.f32.mrf.mxu0
    %v3354 = vadd.f32 0.0, %v3353
    %3355 = vmatmul.f32.gmra.mxu0 %v3148
    %v3356 = vpop.f32.mrf.mxu0
    %v3357 = vadd.f32 0.0, %v3356
    %3358 = vmatmul.f32.gmra.mxu0 %v3151
    %v3359 = vpop.f32.mrf.mxu0
    %v3360 = vadd.f32 0.0, %v3359
    %3361 = vmatmul.f32.gmra.mxu0 %v3154
    %v3362 = vpop.f32.mrf.mxu0
    %v3363 = vadd.f32 0.0, %v3362
    %3364 = vmatmul.f32.gmra.mxu0 %v3157
    %v3365 = vpop.f32.mrf.mxu0
    %v3366 = vadd.f32 0.0, %v3365
    %3367 = vmatmul.f32.gmra.mxu0 %v3160
    %v3368 = vpop.f32.mrf.mxu0
    %v3369 = vadd.f32 0.0, %v3368
    %3370 = vmatmul.f32.gmra.mxu0 %v3163
    %v3371 = vpop.f32.mrf.mxu0
    %v3372 = vadd.f32 0.0, %v3371
    %3373 = vmatmul.f32.gmra.mxu0 %v3166
    %v3374 = vpop.f32.mrf.mxu0
    %v3375 = vadd.f32 0.0, %v3374
    %3376 = vmatmul.f32.gmra.mxu0 %v3169
    %v3377 = vpop.f32.mrf.mxu0
    %v3378 = vadd.f32 0.0, %v3377
    %3379 = vdwg.mxu0
    %3380 = vrot.lane.b32.xlu0 %v2495, 32
    %v3381 = vpop.permute.xlu0 %3380
    %v3383 = vmul.f32 %v2495, %v3381
    %3385 = vrot.lane.b32.xlu0 %v3383, 96
    %v3386 = vpop.permute.xlu0 %3385
    %v3387 = vsel %vm179, %v3386, 0
    %3389 = vmatpush.msra.mxu0 0.0
    %3390 = vmatpush.msra.mxu0 0.0
    %3391 = vmatpush.msra.mxu0 0.0
    %3392 = vmatpush.msra.mxu0 0.0
    %3393 = vmatpush.msra.mxu0 0.0
    %3394 = vmatpush.msra.mxu0 0.0
    %3395 = vmatpush.msra.mxu0 0.0
    %3396 = vmatpush.msra.mxu0 0.0
    %3397 = vmatpush.msra.mxu0 0.0
    %3398 = vmatpush.msra.mxu0 0.0
    %3399 = vmatpush.msra.mxu0 0.0
    %3400 = vmatpush.msra.mxu0 0.0
    %3401 = vmatpush.msra.mxu0 %v2978
    %3402 = vmatpush.msra.mxu0 %v2977
    %3403 = vmatpush.msra.mxu0 %v2976
    %3404 = vmatpush.msra.mxu0 %v2975
    %3405 = vmatmul.f32.gmra.mxu0 %v3387
    %v3406 = vpop.f32.mrf.mxu0
    %v3407 = vadd.f32 0.0, %v3406
    %3408 = vdwg.mxu0
    %vm3409 = vcmask 31744
    %v3410 = vsel %vm3409, %v3189, -inf
    %v3411 = vsel %vm3409, %v3192, -inf
    %v3412 = vmax.f32 %v3410, %v3411
    %v3413 = vsel %vm3409, %v3195, -inf
    %v3414 = vmax.f32 %v3412, %v3413
    %v3415 = vsel %vm3409, %v3198, -inf
    %v3416 = vmax.f32 %v3414, %v3415
    %v3417 = vsel %vm3409, %v3201, -inf
    %v3418 = vmax.f32 %v3416, %v3417
    %v3419 = vsel %vm3409, %v3204, -inf
    %v3420 = vmax.f32 %v3418, %v3419
    %v3421 = vsel %vm3409, %v3207, -inf
    %v3422 = vmax.f32 %v3420, %v3421
    %v3423 = vsel %vm3409, %v3210, -inf
    %v3424 = vmax.f32 %v3422, %v3423
    %v3425 = vrot.slane %v3424, 4
    %v3426 = vmax.f32 %v3424, %v3425
    %v3427 = vrot.slane %v3426, 2
    %v3428 = vmax.f32 %v3426, %v3427
    %v3429 = vrot.slane %v3428, 1
    %v3430 = vmax.f32 %v3428, %v3429
    %v3431 = vsel %vm3409, %v3213, -inf
    %v3432 = vsel %vm3409, %v3216, -inf
    %v3433 = vmax.f32 %v3431, %v3432
    %v3434 = vsel %vm3409, %v3219, -inf
    %v3435 = vmax.f32 %v3433, %v3434
    %v3436 = vsel %vm3409, %v3222, -inf
    %v3437 = vmax.f32 %v3435, %v3436
    %v3438 = vsel %vm3409, %v3225, -inf
    %v3439 = vmax.f32 %v3437, %v3438
    %v3440 = vsel %vm3409, %v3228, -inf
    %v3441 = vmax.f32 %v3439, %v3440
    %v3442 = vsel %vm3409, %v3231, -inf
    %v3443 = vmax.f32 %v3441, %v3442
    %v3444 = vsel %vm3409, %v3234, -inf
    %v3445 = vmax.f32 %v3443, %v3444
    %v3446 = vrot.slane %v3445, 4
    %v3447 = vmax.f32 %v3445, %v3446
    %v3448 = vrot.slane %v3447, 2
    %v3449 = vmax.f32 %v3447, %v3448
    %v3450 = vrot.slane %v3449, 1
    %v3451 = vmax.f32 %v3449, %v3450
    %v3452 = vsel %vm3409, %v3237, -inf
    %v3453 = vsel %vm3409, %v3240, -inf
    %v3454 = vmax.f32 %v3452, %v3453
    %v3455 = vsel %vm3409, %v3243, -inf
    %v3456 = vmax.f32 %v3454, %v3455
    %v3457 = vsel %vm3409, %v3246, -inf
    %v3458 = vmax.f32 %v3456, %v3457
    %v3459 = vsel %vm3409, %v3249, -inf
    %v3460 = vmax.f32 %v3458, %v3459
    %v3461 = vsel %vm3409, %v3252, -inf
    %v3462 = vmax.f32 %v3460, %v3461
    %v3463 = vsel %vm3409, %v3255, -inf
    %v3464 = vmax.f32 %v3462, %v3463
    %v3465 = vsel %vm3409, %v3258, -inf
    %v3466 = vmax.f32 %v3464, %v3465
    %v3467 = vrot.slane %v3466, 4
    %v3468 = vmax.f32 %v3466, %v3467
    %v3469 = vrot.slane %v3468, 2
    %v3470 = vmax.f32 %v3468, %v3469
    %v3471 = vrot.slane %v3470, 1
    %v3472 = vmax.f32 %v3470, %v3471
    %v3473 = vsel %vm3409, %v3261, -inf
    %v3474 = vsel %vm3409, %v3264, -inf
    %v3475 = vmax.f32 %v3473, %v3474
    %v3476 = vsel %vm3409, %v3267, -inf
    %v3477 = vmax.f32 %v3475, %v3476
    %v3478 = vsel %vm3409, %v3270, -inf
    %v3479 = vmax.f32 %v3477, %v3478
    %v3480 = vsel %vm3409, %v3273, -inf
    %v3481 = vmax.f32 %v3479, %v3480
    %v3482 = vsel %vm3409, %v3276, -inf
    %v3483 = vmax.f32 %v3481, %v3482
    %v3484 = vsel %vm3409, %v3279, -inf
    %v3485 = vmax.f32 %v3483, %v3484
    %v3486 = vsel %vm3409, %v3282, -inf
    %v3487 = vmax.f32 %v3485, %v3486
    %v3488 = vrot.slane %v3487, 4
    %v3489 = vmax.f32 %v3487, %v3488
    %v3490 = vrot.slane %v3489, 2
    %v3491 = vmax.f32 %v3489, %v3490
    %v3492 = vrot.slane %v3491, 1
    %v3493 = vmax.f32 %v3491, %v3492
    %v3494 = vsel %vm3409, %v3285, -inf
    %v3495 = vsel %vm3409, %v3288, -inf
    %v3496 = vmax.f32 %v3494, %v3495
    %v3497 = vsel %vm3409, %v3291, -inf
    %v3498 = vmax.f32 %v3496, %v3497
    %v3499 = vsel %vm3409, %v3294, -inf
    %v3500 = vmax.f32 %v3498, %v3499
    %v3501 = vsel %vm3409, %v3297, -inf
    %v3502 = vmax.f32 %v3500, %v3501
    %v3503 = vsel %vm3409, %v3300, -inf
    %v3504 = vmax.f32 %v3502, %v3503
    %v3505 = vsel %vm3409, %v3303, -inf
    %v3506 = vmax.f32 %v3504, %v3505
    %v3507 = vsel %vm3409, %v3306, -inf
    %v3508 = vmax.f32 %v3506, %v3507
    %v3509 = vrot.slane %v3508, 4
    %v3510 = vmax.f32 %v3508, %v3509
    %v3511 = vrot.slane %v3510, 2
    %v3512 = vmax.f32 %v3510, %v3511
    %v3513 = vrot.slane %v3512, 1
    %v3514 = vmax.f32 %v3512, %v3513
    %v3515 = vsel %vm3409, %v3309, -inf
    %v3516 = vsel %vm3409, %v3312, -inf
    %v3517 = vmax.f32 %v3515, %v3516
    %v3518 = vsel %vm3409, %v3315, -inf
    %v3519 = vmax.f32 %v3517, %v3518
    %v3520 = vsel %vm3409, %v3318, -inf
    %v3521 = vmax.f32 %v3519, %v3520
    %v3522 = vsel %vm3409, %v3321, -inf
    %v3523 = vmax.f32 %v3521, %v3522
    %v3524 = vsel %vm3409, %v3324, -inf
    %v3525 = vmax.f32 %v3523, %v3524
    %v3526 = vsel %vm3409, %v3327, -inf
    %v3527 = vmax.f32 %v3525, %v3526
    %v3528 = vsel %vm3409, %v3330, -inf
    %v3529 = vmax.f32 %v3527, %v3528
    %v3530 = vrot.slane %v3529, 4
    %v3531 = vmax.f32 %v3529, %v3530
    %v3532 = vrot.slane %v3531, 2
    %v3533 = vmax.f32 %v3531, %v3532
    %v3534 = vrot.slane %v3533, 1
    %v3535 = vmax.f32 %v3533, %v3534
    %v3536 = vsel %vm3409, %v3333, -inf
    %v3537 = vsel %vm3409, %v3336, -inf
    %v3538 = vmax.f32 %v3536, %v3537
    %v3539 = vsel %vm3409, %v3339, -inf
    %v3540 = vmax.f32 %v3538, %v3539
    %v3541 = vsel %vm3409, %v3342, -inf
    %v3542 = vmax.f32 %v3540, %v3541
    %v3543 = vsel %vm3409, %v3345, -inf
    %v3544 = vmax.f32 %v3542, %v3543
    %v3545 = vsel %vm3409, %v3348, -inf
    %v3546 = vmax.f32 %v3544, %v3545
    %v3547 = vsel %vm3409, %v3351, -inf
    %v3548 = vmax.f32 %v3546, %v3547
    %v3549 = vsel %vm3409, %v3354, -inf
    %v3550 = vmax.f32 %v3548, %v3549
    %v3551 = vrot.slane %v3550, 4
    %v3552 = vmax.f32 %v3550, %v3551
    %v3553 = vrot.slane %v3552, 2
    %v3554 = vmax.f32 %v3552, %v3553
    %v3555 = vrot.slane %v3554, 1
    %v3556 = vmax.f32 %v3554, %v3555
    %v3557 = vsel %vm3409, %v3357, -inf
    %v3558 = vsel %vm3409, %v3360, -inf
    %v3559 = vmax.f32 %v3557, %v3558
    %v3560 = vsel %vm3409, %v3363, -inf
    %v3561 = vmax.f32 %v3559, %v3560
    %v3562 = vsel %vm3409, %v3366, -inf
    %v3563 = vmax.f32 %v3561, %v3562
    %v3564 = vsel %vm3409, %v3369, -inf
    %v3565 = vmax.f32 %v3563, %v3564
    %v3566 = vsel %vm3409, %v3372, -inf
    %v3567 = vmax.f32 %v3565, %v3566
    %v3568 = vsel %vm3409, %v3375, -inf
    %v3569 = vmax.f32 %v3567, %v3568
    %v3570 = vsel %vm3409, %v3378, -inf
    %v3571 = vmax.f32 %v3569, %v3570
    %v3572 = vrot.slane %v3571, 4
    %v3573 = vmax.f32 %v3571, %v3572
    %v3574 = vrot.slane %v3573, 2
    %v3575 = vmax.f32 %v3573, %v3574
    %v3576 = vrot.slane %v3575, 1
    %v3577 = vmax.f32 %v3575, %v3576
    %v3579 = vrot.slane %v3407, 1
    %v3580 = vrot.slane %v3407, 2
    %v3581 = vrot.slane %v3407, 3
    %v3582 = vrot.slane %v3407, 4
    %v3583 = vrot.slane %v3407, 5
    %v3584 = vrot.slane %v3407, 6
    %v3585 = vrot.slane %v3407, 7
    %v3594 = vmax.f32 %v3430, %v3407
    %v3595 = vmax.f32 %v3451, %v3579
    %v3596 = vmax.f32 %v3472, %v3580
    %v3597 = vmax.f32 %v3493, %v3581
    %v3598 = vmax.f32 %v3514, %v3582
    %v3599 = vmax.f32 %v3535, %v3583
    %v3600 = vmax.f32 %v3556, %v3584
    %v3601 = vmax.f32 %v3577, %v3585
    %v3610 = vrot.slane %v3595, 7
    %v3611 = vsel %vm2449, %v3610, %v3594
    %v3612 = vrot.slane %v3596, 6
    %v3613 = vsel %vm2452, %v3612, %v3611
    %v3614 = vrot.slane %v3597, 5
    %v3615 = vsel %vm2455, %v3614, %v3613
    %v3616 = vrot.slane %v3598, 4
    %v3617 = vsel %vm2458, %v3616, %v3615
    %v3618 = vrot.slane %v3599, 3
    %v3619 = vsel %vm2461, %v3618, %v3617
    %v3620 = vrot.slane %v3600, 2
    %v3621 = vsel %vm2464, %v3620, %v3619
    %v3622 = vrot.slane %v3601, 1
    %v3623 = vsel %vm2467, %v3622, %v3621
    %v3625 = vsub.f32 %v3407, %v3623
    %v3626 = vmul.f32 %v3625, 1.442695
    %v3627 = vpow.pop %v3626
    %v3628 = vperm.slane %v3594, 0
    %v3629 = vperm.slane %v3595, 0
    %v3630 = vperm.slane %v3596, 0
    %v3631 = vperm.slane %v3597, 0
    %v3632 = vperm.slane %v3598, 0
    %v3633 = vperm.slane %v3599, 0
    %v3634 = vperm.slane %v3600, 0
    %v3635 = vperm.slane %v3601, 0
    %v3636 = vsub.f32 %v3189, %v3628
    %v3637 = vsub.f32 %v3192, %v3628
    %v3638 = vsub.f32 %v3195, %v3628
    %v3639 = vsub.f32 %v3198, %v3628
    %v3640 = vsub.f32 %v3201, %v3628
    %v3641 = vsub.f32 %v3204, %v3628
    %v3642 = vsub.f32 %v3207, %v3628
    %v3643 = vsub.f32 %v3210, %v3628
    %v3644 = vsub.f32 %v3213, %v3629
    %v3645 = vsub.f32 %v3216, %v3629
    %v3646 = vsub.f32 %v3219, %v3629
    %v3647 = vsub.f32 %v3222, %v3629
    %v3648 = vsub.f32 %v3225, %v3629
    %v3649 = vsub.f32 %v3228, %v3629
    %v3650 = vsub.f32 %v3231, %v3629
    %v3651 = vsub.f32 %v3234, %v3629
    %v3652 = vsub.f32 %v3237, %v3630
    %v3653 = vsub.f32 %v3240, %v3630
    %v3654 = vsub.f32 %v3243, %v3630
    %v3655 = vsub.f32 %v3246, %v3630
    %v3656 = vsub.f32 %v3249, %v3630
    %v3657 = vsub.f32 %v3252, %v3630
    %v3658 = vsub.f32 %v3255, %v3630
    %v3659 = vsub.f32 %v3258, %v3630
    %v3660 = vsub.f32 %v3261, %v3631
    %v3661 = vsub.f32 %v3264, %v3631
    %v3662 = vsub.f32 %v3267, %v3631
    %v3663 = vsub.f32 %v3270, %v3631
    %v3664 = vsub.f32 %v3273, %v3631
    %v3665 = vsub.f32 %v3276, %v3631
    %v3666 = vsub.f32 %v3279, %v3631
    %v3667 = vsub.f32 %v3282, %v3631
    %v3668 = vsub.f32 %v3285, %v3632
    %v3669 = vsub.f32 %v3288, %v3632
    %v3670 = vsub.f32 %v3291, %v3632
    %v3671 = vsub.f32 %v3294, %v3632
    %v3672 = vsub.f32 %v3297, %v3632
    %v3673 = vsub.f32 %v3300, %v3632
    %v3674 = vsub.f32 %v3303, %v3632
    %v3675 = vsub.f32 %v3306, %v3632
    %v3676 = vsub.f32 %v3309, %v3633
    %v3677 = vsub.f32 %v3312, %v3633
    %v3678 = vsub.f32 %v3315, %v3633
    %v3679 = vsub.f32 %v3318, %v3633
    %v3680 = vsub.f32 %v3321, %v3633
    %v3681 = vsub.f32 %v3324, %v3633
    %v3682 = vsub.f32 %v3327, %v3633
    %v3683 = vsub.f32 %v3330, %v3633
    %v3684 = vsub.f32 %v3333, %v3634
    %v3685 = vsub.f32 %v3336, %v3634
    %v3686 = vsub.f32 %v3339, %v3634
    %v3687 = vsub.f32 %v3342, %v3634
    %v3688 = vsub.f32 %v3345, %v3634
    %v3689 = vsub.f32 %v3348, %v3634
    %v3690 = vsub.f32 %v3351, %v3634
    %v3691 = vsub.f32 %v3354, %v3634
    %v3692 = vsub.f32 %v3357, %v3635
    %v3693 = vsub.f32 %v3360, %v3635
    %v3694 = vsub.f32 %v3363, %v3635
    %v3695 = vsub.f32 %v3366, %v3635
    %v3696 = vsub.f32 %v3369, %v3635
    %v3697 = vsub.f32 %v3372, %v3635
    %v3698 = vsub.f32 %v3375, %v3635
    %v3699 = vsub.f32 %v3378, %v3635
    %v3700 = vmul.f32 %v3636, 1.442695
    %v3701 = vpow.pop %v3700
    %v3702 = vmul.f32 %v3637, 1.442695
    %v3703 = vpow.pop %v3702
    %v3704 = vmul.f32 %v3638, 1.442695
    %v3705 = vpow.pop %v3704
    %v3706 = vmul.f32 %v3639, 1.442695
    %v3707 = vpow.pop %v3706
    %v3708 = vmul.f32 %v3640, 1.442695
    %v3709 = vpow.pop %v3708
    %v3710 = vmul.f32 %v3641, 1.442695
    %v3711 = vpow.pop %v3710
    %v3712 = vmul.f32 %v3642, 1.442695
    %v3713 = vpow.pop %v3712
    %v3714 = vmul.f32 %v3643, 1.442695
    %v3715 = vpow.pop %v3714
    %v3716 = vmul.f32 %v3644, 1.442695
    %v3717 = vpow.pop %v3716
    %v3718 = vmul.f32 %v3645, 1.442695
    %v3719 = vpow.pop %v3718
    %v3720 = vmul.f32 %v3646, 1.442695
    %v3721 = vpow.pop %v3720
    %v3722 = vmul.f32 %v3647, 1.442695
    %v3723 = vpow.pop %v3722
    %v3724 = vmul.f32 %v3648, 1.442695
    %v3725 = vpow.pop %v3724
    %v3726 = vmul.f32 %v3649, 1.442695
    %v3727 = vpow.pop %v3726
    %v3728 = vmul.f32 %v3650, 1.442695
    %v3729 = vpow.pop %v3728
    %v3730 = vmul.f32 %v3651, 1.442695
    %v3731 = vpow.pop %v3730
    %v3732 = vmul.f32 %v3652, 1.442695
    %v3733 = vpow.pop %v3732
    %v3734 = vmul.f32 %v3653, 1.442695
    %v3735 = vpow.pop %v3734
    %v3736 = vmul.f32 %v3654, 1.442695
    %v3737 = vpow.pop %v3736
    %v3738 = vmul.f32 %v3655, 1.442695
    %v3739 = vpow.pop %v3738
    %v3740 = vmul.f32 %v3656, 1.442695
    %v3741 = vpow.pop %v3740
    %v3742 = vmul.f32 %v3657, 1.442695
    %v3743 = vpow.pop %v3742
    %v3744 = vmul.f32 %v3658, 1.442695
    %v3745 = vpow.pop %v3744
    %v3746 = vmul.f32 %v3659, 1.442695
    %v3747 = vpow.pop %v3746
    %v3748 = vmul.f32 %v3660, 1.442695
    %v3749 = vpow.pop %v3748
    %v3750 = vmul.f32 %v3661, 1.442695
    %v3751 = vpow.pop %v3750
    %v3752 = vmul.f32 %v3662, 1.442695
    %v3753 = vpow.pop %v3752
    %v3754 = vmul.f32 %v3663, 1.442695
    %v3755 = vpow.pop %v3754
    %v3756 = vmul.f32 %v3664, 1.442695
    %v3757 = vpow.pop %v3756
    %v3758 = vmul.f32 %v3665, 1.442695
    %v3759 = vpow.pop %v3758
    %v3760 = vmul.f32 %v3666, 1.442695
    %v3761 = vpow.pop %v3760
    %v3762 = vmul.f32 %v3667, 1.442695
    %v3763 = vpow.pop %v3762
    %v3764 = vmul.f32 %v3668, 1.442695
    %v3765 = vpow.pop %v3764
    %v3766 = vmul.f32 %v3669, 1.442695
    %v3767 = vpow.pop %v3766
    %v3768 = vmul.f32 %v3670, 1.442695
    %v3769 = vpow.pop %v3768
    %v3770 = vmul.f32 %v3671, 1.442695
    %v3771 = vpow.pop %v3770
    %v3772 = vmul.f32 %v3672, 1.442695
    %v3773 = vpow.pop %v3772
    %v3774 = vmul.f32 %v3673, 1.442695
    %v3775 = vpow.pop %v3774
    %v3776 = vmul.f32 %v3674, 1.442695
    %v3777 = vpow.pop %v3776
    %v3778 = vmul.f32 %v3675, 1.442695
    %v3779 = vpow.pop %v3778
    %v3780 = vmul.f32 %v3676, 1.442695
    %v3781 = vpow.pop %v3780
    %v3782 = vmul.f32 %v3677, 1.442695
    %v3783 = vpow.pop %v3782
    %v3784 = vmul.f32 %v3678, 1.442695
    %v3785 = vpow.pop %v3784
    %v3786 = vmul.f32 %v3679, 1.442695
    %v3787 = vpow.pop %v3786
    %v3788 = vmul.f32 %v3680, 1.442695
    %v3789 = vpow.pop %v3788
    %v3790 = vmul.f32 %v3681, 1.442695
    %v3791 = vpow.pop %v3790
    %v3792 = vmul.f32 %v3682, 1.442695
    %v3793 = vpow.pop %v3792
    %v3794 = vmul.f32 %v3683, 1.442695
    %v3795 = vpow.pop %v3794
    %v3796 = vmul.f32 %v3684, 1.442695
    %v3797 = vpow.pop %v3796
    %v3798 = vmul.f32 %v3685, 1.442695
    %v3799 = vpow.pop %v3798
    %v3800 = vmul.f32 %v3686, 1.442695
    %v3801 = vpow.pop %v3800
    %v3802 = vmul.f32 %v3687, 1.442695
    %v3803 = vpow.pop %v3802
    %v3804 = vmul.f32 %v3688, 1.442695
    %v3805 = vpow.pop %v3804
    %v3806 = vmul.f32 %v3689, 1.442695
    %v3807 = vpow.pop %v3806
    %v3808 = vmul.f32 %v3690, 1.442695
    %v3809 = vpow.pop %v3808
    %v3810 = vmul.f32 %v3691, 1.442695
    %v3811 = vpow.pop %v3810
    %v3812 = vmul.f32 %v3692, 1.442695
    %v3813 = vpow.pop %v3812
    %v3814 = vmul.f32 %v3693, 1.442695
    %v3815 = vpow.pop %v3814
    %v3816 = vmul.f32 %v3694, 1.442695
    %v3817 = vpow.pop %v3816
    %v3818 = vmul.f32 %v3695, 1.442695
    %v3819 = vpow.pop %v3818
    %v3820 = vmul.f32 %v3696, 1.442695
    %v3821 = vpow.pop %v3820
    %v3822 = vmul.f32 %v3697, 1.442695
    %v3823 = vpow.pop %v3822
    %v3824 = vmul.f32 %v3698, 1.442695
    %v3825 = vpow.pop %v3824
    %v3826 = vmul.f32 %v3699, 1.442695
    %v3827 = vpow.pop %v3826
    %v3828 = vsel %vm3409, %v3701, 0.0
    %v3829 = vsel %vm3409, %v3703, 0.0
    %v3830 = vadd.f32 %v3828, %v3829
    %v3831 = vsel %vm3409, %v3705, 0.0
    %v3832 = vadd.f32 %v3830, %v3831
    %v3833 = vsel %vm3409, %v3707, 0.0
    %v3834 = vadd.f32 %v3832, %v3833
    %v3835 = vsel %vm3409, %v3709, 0.0
    %v3836 = vadd.f32 %v3834, %v3835
    %v3837 = vsel %vm3409, %v3711, 0.0
    %v3838 = vadd.f32 %v3836, %v3837
    %v3839 = vsel %vm3409, %v3713, 0.0
    %v3840 = vadd.f32 %v3838, %v3839
    %v3841 = vsel %vm3409, %v3715, 0.0
    %v3842 = vadd.f32 %v3840, %v3841
    %v3843 = vrot.slane %v3842, 4
    %v3844 = vadd.f32 %v3842, %v3843
    %v3845 = vrot.slane %v3844, 2
    %v3846 = vadd.f32 %v3844, %v3845
    %v3847 = vrot.slane %v3846, 1
    %v3848 = vadd.f32 %v3846, %v3847
    %v3849 = vsel %vm3409, %v3717, 0.0
    %v3850 = vsel %vm3409, %v3719, 0.0
    %v3851 = vadd.f32 %v3849, %v3850
    %v3852 = vsel %vm3409, %v3721, 0.0
    %v3853 = vadd.f32 %v3851, %v3852
    %v3854 = vsel %vm3409, %v3723, 0.0
    %v3855 = vadd.f32 %v3853, %v3854
    %v3856 = vsel %vm3409, %v3725, 0.0
    %v3857 = vadd.f32 %v3855, %v3856
    %v3858 = vsel %vm3409, %v3727, 0.0
    %v3859 = vadd.f32 %v3857, %v3858
    %v3860 = vsel %vm3409, %v3729, 0.0
    %v3861 = vadd.f32 %v3859, %v3860
    %v3862 = vsel %vm3409, %v3731, 0.0
    %v3863 = vadd.f32 %v3861, %v3862
    %v3864 = vrot.slane %v3863, 4
    %v3865 = vadd.f32 %v3863, %v3864
    %v3866 = vrot.slane %v3865, 2
    %v3867 = vadd.f32 %v3865, %v3866
    %v3868 = vrot.slane %v3867, 1
    %v3869 = vadd.f32 %v3867, %v3868
    %v3870 = vsel %vm3409, %v3733, 0.0
    %v3871 = vsel %vm3409, %v3735, 0.0
    %v3872 = vadd.f32 %v3870, %v3871
    %v3873 = vsel %vm3409, %v3737, 0.0
    %v3874 = vadd.f32 %v3872, %v3873
    %v3875 = vsel %vm3409, %v3739, 0.0
    %v3876 = vadd.f32 %v3874, %v3875
    %v3877 = vsel %vm3409, %v3741, 0.0
    %v3878 = vadd.f32 %v3876, %v3877
    %v3879 = vsel %vm3409, %v3743, 0.0
    %v3880 = vadd.f32 %v3878, %v3879
    %v3881 = vsel %vm3409, %v3745, 0.0
    %v3882 = vadd.f32 %v3880, %v3881
    %v3883 = vsel %vm3409, %v3747, 0.0
    %v3884 = vadd.f32 %v3882, %v3883
    %v3885 = vrot.slane %v3884, 4
    %v3886 = vadd.f32 %v3884, %v3885
    %v3887 = vrot.slane %v3886, 2
    %v3888 = vadd.f32 %v3886, %v3887
    %v3889 = vrot.slane %v3888, 1
    %v3890 = vadd.f32 %v3888, %v3889
    %v3891 = vsel %vm3409, %v3749, 0.0
    %v3892 = vsel %vm3409, %v3751, 0.0
    %v3893 = vadd.f32 %v3891, %v3892
    %v3894 = vsel %vm3409, %v3753, 0.0
    %v3895 = vadd.f32 %v3893, %v3894
    %v3896 = vsel %vm3409, %v3755, 0.0
    %v3897 = vadd.f32 %v3895, %v3896
    %v3898 = vsel %vm3409, %v3757, 0.0
    %v3899 = vadd.f32 %v3897, %v3898
    %v3900 = vsel %vm3409, %v3759, 0.0
    %v3901 = vadd.f32 %v3899, %v3900
    %v3902 = vsel %vm3409, %v3761, 0.0
    %v3903 = vadd.f32 %v3901, %v3902
    %v3904 = vsel %vm3409, %v3763, 0.0
    %v3905 = vadd.f32 %v3903, %v3904
    %v3906 = vrot.slane %v3905, 4
    %v3907 = vadd.f32 %v3905, %v3906
    %v3908 = vrot.slane %v3907, 2
    %v3909 = vadd.f32 %v3907, %v3908
    %v3910 = vrot.slane %v3909, 1
    %v3911 = vadd.f32 %v3909, %v3910
    %v3912 = vsel %vm3409, %v3765, 0.0
    %v3913 = vsel %vm3409, %v3767, 0.0
    %v3914 = vadd.f32 %v3912, %v3913
    %v3915 = vsel %vm3409, %v3769, 0.0
    %v3916 = vadd.f32 %v3914, %v3915
    %v3917 = vsel %vm3409, %v3771, 0.0
    %v3918 = vadd.f32 %v3916, %v3917
    %v3919 = vsel %vm3409, %v3773, 0.0
    %v3920 = vadd.f32 %v3918, %v3919
    %v3921 = vsel %vm3409, %v3775, 0.0
    %v3922 = vadd.f32 %v3920, %v3921
    %v3923 = vsel %vm3409, %v3777, 0.0
    %v3924 = vadd.f32 %v3922, %v3923
    %v3925 = vsel %vm3409, %v3779, 0.0
    %v3926 = vadd.f32 %v3924, %v3925
    %v3927 = vrot.slane %v3926, 4
    %v3928 = vadd.f32 %v3926, %v3927
    %v3929 = vrot.slane %v3928, 2
    %v3930 = vadd.f32 %v3928, %v3929
    %v3931 = vrot.slane %v3930, 1
    %v3932 = vadd.f32 %v3930, %v3931
    %v3933 = vsel %vm3409, %v3781, 0.0
    %v3934 = vsel %vm3409, %v3783, 0.0
    %v3935 = vadd.f32 %v3933, %v3934
    %v3936 = vsel %vm3409, %v3785, 0.0
    %v3937 = vadd.f32 %v3935, %v3936
    %v3938 = vsel %vm3409, %v3787, 0.0
    %v3939 = vadd.f32 %v3937, %v3938
    %v3940 = vsel %vm3409, %v3789, 0.0
    %v3941 = vadd.f32 %v3939, %v3940
    %v3942 = vsel %vm3409, %v3791, 0.0
    %v3943 = vadd.f32 %v3941, %v3942
    %v3944 = vsel %vm3409, %v3793, 0.0
    %v3945 = vadd.f32 %v3943, %v3944
    %v3946 = vsel %vm3409, %v3795, 0.0
    %v3947 = vadd.f32 %v3945, %v3946
    %v3948 = vrot.slane %v3947, 4
    %v3949 = vadd.f32 %v3947, %v3948
    %v3950 = vrot.slane %v3949, 2
    %v3951 = vadd.f32 %v3949, %v3950
    %v3952 = vrot.slane %v3951, 1
    %v3953 = vadd.f32 %v3951, %v3952
    %v3954 = vsel %vm3409, %v3797, 0.0
    %v3955 = vsel %vm3409, %v3799, 0.0
    %v3956 = vadd.f32 %v3954, %v3955
    %v3957 = vsel %vm3409, %v3801, 0.0
    %v3958 = vadd.f32 %v3956, %v3957
    %v3959 = vsel %vm3409, %v3803, 0.0
    %v3960 = vadd.f32 %v3958, %v3959
    %v3961 = vsel %vm3409, %v3805, 0.0
    %v3962 = vadd.f32 %v3960, %v3961
    %v3963 = vsel %vm3409, %v3807, 0.0
    %v3964 = vadd.f32 %v3962, %v3963
    %v3965 = vsel %vm3409, %v3809, 0.0
    %v3966 = vadd.f32 %v3964, %v3965
    %v3967 = vsel %vm3409, %v3811, 0.0
    %v3968 = vadd.f32 %v3966, %v3967
    %v3969 = vrot.slane %v3968, 4
    %v3970 = vadd.f32 %v3968, %v3969
    %v3971 = vrot.slane %v3970, 2
    %v3972 = vadd.f32 %v3970, %v3971
    %v3973 = vrot.slane %v3972, 1
    %v3974 = vadd.f32 %v3972, %v3973
    %v3975 = vsel %vm3409, %v3813, 0.0
    %v3976 = vsel %vm3409, %v3815, 0.0
    %v3977 = vadd.f32 %v3975, %v3976
    %v3978 = vsel %vm3409, %v3817, 0.0
    %v3979 = vadd.f32 %v3977, %v3978
    %v3980 = vsel %vm3409, %v3819, 0.0
    %v3981 = vadd.f32 %v3979, %v3980
    %v3982 = vsel %vm3409, %v3821, 0.0
    %v3983 = vadd.f32 %v3981, %v3982
    %v3984 = vsel %vm3409, %v3823, 0.0
    %v3985 = vadd.f32 %v3983, %v3984
    %v3986 = vsel %vm3409, %v3825, 0.0
    %v3987 = vadd.f32 %v3985, %v3986
    %v3988 = vsel %vm3409, %v3827, 0.0
    %v3989 = vadd.f32 %v3987, %v3988
    %v3990 = vrot.slane %v3989, 4
    %v3991 = vadd.f32 %v3989, %v3990
    %v3992 = vrot.slane %v3991, 2
    %v3993 = vadd.f32 %v3991, %v3992
    %v3994 = vrot.slane %v3993, 1
    %v3995 = vadd.f32 %v3993, %v3994
    %v4004 = vsel %vm2449, %v3869, %v3848
    %v4005 = vsel %vm2452, %v3890, %v4004
    %v4006 = vsel %vm2455, %v3911, %v4005
    %v4007 = vsel %vm2458, %v3932, %v4006
    %v4008 = vsel %vm2461, %v3953, %v4007
    %v4009 = vsel %vm2464, %v3974, %v4008
    %v4010 = vsel %vm2467, %v3995, %v4009
    %v4012 = vadd.f32 %v3627, %v4010
    %v4013 = vrcp.pop %v4012
    %v4014 = vld [vmem:[%s13] sm:$0xf]
    %v4016 = vsel %vm3409, %v3701, 0
    %v4019 = vsel %vm3409, %v3703, 0
    %v4022 = vsel %vm3409, %v3705, 0
    %v4025 = vsel %vm3409, %v3707, 0
    %v4028 = vsel %vm3409, %v3709, 0
    %v4031 = vsel %vm3409, %v3711, 0
    %v4034 = vsel %vm3409, %v3713, 0
    %v4037 = vsel %vm3409, %v3715, 0
    %v4040 = vsel %vm3409, %v3717, 0
    %v4043 = vsel %vm3409, %v3719, 0
    %v4046 = vsel %vm3409, %v3721, 0
    %v4049 = vsel %vm3409, %v3723, 0
    %v4052 = vsel %vm3409, %v3725, 0
    %v4055 = vsel %vm3409, %v3727, 0
    %v4058 = vsel %vm3409, %v3729, 0
    %v4061 = vsel %vm3409, %v3731, 0
    %v4064 = vsel %vm3409, %v3733, 0
    %v4067 = vsel %vm3409, %v3735, 0
    %v4070 = vsel %vm3409, %v3737, 0
    %v4073 = vsel %vm3409, %v3739, 0
    %v4076 = vsel %vm3409, %v3741, 0
    %v4079 = vsel %vm3409, %v3743, 0
    %v4082 = vsel %vm3409, %v3745, 0
    %v4085 = vsel %vm3409, %v3747, 0
    %v4088 = vsel %vm3409, %v3749, 0
    %v4091 = vsel %vm3409, %v3751, 0
    %v4094 = vsel %vm3409, %v3753, 0
    %v4097 = vsel %vm3409, %v3755, 0
    %v4100 = vsel %vm3409, %v3757, 0
    %v4103 = vsel %vm3409, %v3759, 0
    %v4106 = vsel %vm3409, %v3761, 0
    %v4109 = vsel %vm3409, %v3763, 0
    %v4112 = vsel %vm3409, %v3765, 0
    %v4115 = vsel %vm3409, %v3767, 0
    %v4118 = vsel %vm3409, %v3769, 0
    %v4121 = vsel %vm3409, %v3771, 0
    %v4124 = vsel %vm3409, %v3773, 0
    %v4127 = vsel %vm3409, %v3775, 0
    %v4130 = vsel %vm3409, %v3777, 0
    %v4133 = vsel %vm3409, %v3779, 0
    %v4136 = vsel %vm3409, %v3781, 0
    %v4139 = vsel %vm3409, %v3783, 0
    %v4142 = vsel %vm3409, %v3785, 0
    %v4145 = vsel %vm3409, %v3787, 0
    %v4148 = vsel %vm3409, %v3789, 0
    %v4151 = vsel %vm3409, %v3791, 0
    %v4154 = vsel %vm3409, %v3793, 0
    %v4157 = vsel %vm3409, %v3795, 0
    %v4160 = vsel %vm3409, %v3797, 0
    %v4163 = vsel %vm3409, %v3799, 0
    %v4166 = vsel %vm3409, %v3801, 0
    %v4169 = vsel %vm3409, %v3803, 0
    %v4172 = vsel %vm3409, %v3805, 0
    %v4175 = vsel %vm3409, %v3807, 0
    %v4178 = vsel %vm3409, %v3809, 0
    %v4181 = vsel %vm3409, %v3811, 0
    %v4184 = vsel %vm3409, %v3813, 0
    %v4187 = vsel %vm3409, %v3815, 0
    %v4190 = vsel %vm3409, %v3817, 0
    %v4193 = vsel %vm3409, %v3819, 0
    %v4196 = vsel %vm3409, %v3821, 0
    %v4199 = vsel %vm3409, %v3823, 0
    %v4202 = vsel %vm3409, %v3825, 0
    %v4205 = vsel %vm3409, %v3827, 0
    %vm4207 = vcmask 1043456
    %v4209 = vsel %vm4207, %v4014, 0
    %4211 = vmatpush.msra.mxu0 0.0
    %4212 = vmatpush.msra.mxu0 0.0
    %4213 = vmatpush.msra.mxu0 0.0
    %4214 = vmatpush.msra.mxu0 0.0
    %4215 = vmatpush.msra.mxu0 0.0
    %4216 = vmatpush.msra.mxu0 0.0
    %4217 = vmatpush.msra.mxu0 0.0
    %4218 = vmatpush.msra.mxu0 0.0
    %4219 = vmatpush.msra.mxu0 0.0
    %4220 = vmatpush.msra.mxu0 0.0
    %4221 = vmatpush.msra.mxu0 0.0
    %4222 = vmatpush.msra.mxu0 0.0
    %4223 = vmatpush.msra.mxu0 0.0
    %4224 = vmatpush.msra.mxu0 0.0
    %4225 = vmatpush.msra.mxu0 0.0
    %4226 = vmatpush.msra.mxu0 %v4209
    %4227 = vmatmul.f32.gmra.mxu0 %v4016
    %v4228 = vpop.f32.mrf.mxu0
    %v4229 = vadd.f32 0.0, %v4228
    %4230 = vmatmul.f32.gmra.mxu0 %v4019
    %v4231 = vpop.f32.mrf.mxu0
    %v4232 = vadd.f32 0.0, %v4231
    %4233 = vmatmul.f32.gmra.mxu0 %v4022
    %v4234 = vpop.f32.mrf.mxu0
    %v4235 = vadd.f32 0.0, %v4234
    %4236 = vmatmul.f32.gmra.mxu0 %v4025
    %v4237 = vpop.f32.mrf.mxu0
    %v4238 = vadd.f32 0.0, %v4237
    %4239 = vmatmul.f32.gmra.mxu0 %v4028
    %v4240 = vpop.f32.mrf.mxu0
    %v4241 = vadd.f32 0.0, %v4240
    %4242 = vmatmul.f32.gmra.mxu0 %v4031
    %v4243 = vpop.f32.mrf.mxu0
    %v4244 = vadd.f32 0.0, %v4243
    %4245 = vmatmul.f32.gmra.mxu0 %v4034
    %v4246 = vpop.f32.mrf.mxu0
    %v4247 = vadd.f32 0.0, %v4246
    %4248 = vmatmul.f32.gmra.mxu0 %v4037
    %v4249 = vpop.f32.mrf.mxu0
    %v4250 = vadd.f32 0.0, %v4249
    %4251 = vmatmul.f32.gmra.mxu0 %v4040
    %v4252 = vpop.f32.mrf.mxu0
    %v4253 = vadd.f32 0.0, %v4252
    %4254 = vmatmul.f32.gmra.mxu0 %v4043
    %v4255 = vpop.f32.mrf.mxu0
    %v4256 = vadd.f32 0.0, %v4255
    %4257 = vmatmul.f32.gmra.mxu0 %v4046
    %v4258 = vpop.f32.mrf.mxu0
    %v4259 = vadd.f32 0.0, %v4258
    %4260 = vmatmul.f32.gmra.mxu0 %v4049
    %v4261 = vpop.f32.mrf.mxu0
    %v4262 = vadd.f32 0.0, %v4261
    %4263 = vmatmul.f32.gmra.mxu0 %v4052
    %v4264 = vpop.f32.mrf.mxu0
    %v4265 = vadd.f32 0.0, %v4264
    %4266 = vmatmul.f32.gmra.mxu0 %v4055
    %v4267 = vpop.f32.mrf.mxu0
    %v4268 = vadd.f32 0.0, %v4267
    %4269 = vmatmul.f32.gmra.mxu0 %v4058
    %v4270 = vpop.f32.mrf.mxu0
    %v4271 = vadd.f32 0.0, %v4270
    %4272 = vmatmul.f32.gmra.mxu0 %v4061
    %v4273 = vpop.f32.mrf.mxu0
    %v4274 = vadd.f32 0.0, %v4273
    %4275 = vmatmul.f32.gmra.mxu0 %v4064
    %v4276 = vpop.f32.mrf.mxu0
    %v4277 = vadd.f32 0.0, %v4276
    %4278 = vmatmul.f32.gmra.mxu0 %v4067
    %v4279 = vpop.f32.mrf.mxu0
    %v4280 = vadd.f32 0.0, %v4279
    %4281 = vmatmul.f32.gmra.mxu0 %v4070
    %v4282 = vpop.f32.mrf.mxu0
    %v4283 = vadd.f32 0.0, %v4282
    %4284 = vmatmul.f32.gmra.mxu0 %v4073
    %v4285 = vpop.f32.mrf.mxu0
    %v4286 = vadd.f32 0.0, %v4285
    %4287 = vmatmul.f32.gmra.mxu0 %v4076
    %v4288 = vpop.f32.mrf.mxu0
    %v4289 = vadd.f32 0.0, %v4288
    %4290 = vmatmul.f32.gmra.mxu0 %v4079
    %v4291 = vpop.f32.mrf.mxu0
    %v4292 = vadd.f32 0.0, %v4291
    %4293 = vmatmul.f32.gmra.mxu0 %v4082
    %v4294 = vpop.f32.mrf.mxu0
    %v4295 = vadd.f32 0.0, %v4294
    %4296 = vmatmul.f32.gmra.mxu0 %v4085
    %v4297 = vpop.f32.mrf.mxu0
    %v4298 = vadd.f32 0.0, %v4297
    %4299 = vmatmul.f32.gmra.mxu0 %v4088
    %v4300 = vpop.f32.mrf.mxu0
    %v4301 = vadd.f32 0.0, %v4300
    %4302 = vmatmul.f32.gmra.mxu0 %v4091
    %v4303 = vpop.f32.mrf.mxu0
    %v4304 = vadd.f32 0.0, %v4303
    %4305 = vmatmul.f32.gmra.mxu0 %v4094
    %v4306 = vpop.f32.mrf.mxu0
    %v4307 = vadd.f32 0.0, %v4306
    %4308 = vmatmul.f32.gmra.mxu0 %v4097
    %v4309 = vpop.f32.mrf.mxu0
    %v4310 = vadd.f32 0.0, %v4309
    %4311 = vmatmul.f32.gmra.mxu0 %v4100
    %v4312 = vpop.f32.mrf.mxu0
    %v4313 = vadd.f32 0.0, %v4312
    %4314 = vmatmul.f32.gmra.mxu0 %v4103
    %v4315 = vpop.f32.mrf.mxu0
    %v4316 = vadd.f32 0.0, %v4315
    %4317 = vmatmul.f32.gmra.mxu0 %v4106
    %v4318 = vpop.f32.mrf.mxu0
    %v4319 = vadd.f32 0.0, %v4318
    %4320 = vmatmul.f32.gmra.mxu0 %v4109
    %v4321 = vpop.f32.mrf.mxu0
    %v4322 = vadd.f32 0.0, %v4321
    %4323 = vmatmul.f32.gmra.mxu0 %v4112
    %v4324 = vpop.f32.mrf.mxu0
    %v4325 = vadd.f32 0.0, %v4324
    %4326 = vmatmul.f32.gmra.mxu0 %v4115
    %v4327 = vpop.f32.mrf.mxu0
    %v4328 = vadd.f32 0.0, %v4327
    %4329 = vmatmul.f32.gmra.mxu0 %v4118
    %v4330 = vpop.f32.mrf.mxu0
    %v4331 = vadd.f32 0.0, %v4330
    %4332 = vmatmul.f32.gmra.mxu0 %v4121
    %v4333 = vpop.f32.mrf.mxu0
    %v4334 = vadd.f32 0.0, %v4333
    %4335 = vmatmul.f32.gmra.mxu0 %v4124
    %v4336 = vpop.f32.mrf.mxu0
    %v4337 = vadd.f32 0.0, %v4336
    %4338 = vmatmul.f32.gmra.mxu0 %v4127
    %v4339 = vpop.f32.mrf.mxu0
    %v4340 = vadd.f32 0.0, %v4339
    %4341 = vmatmul.f32.gmra.mxu0 %v4130
    %v4342 = vpop.f32.mrf.mxu0
    %v4343 = vadd.f32 0.0, %v4342
    %4344 = vmatmul.f32.gmra.mxu0 %v4133
    %v4345 = vpop.f32.mrf.mxu0
    %v4346 = vadd.f32 0.0, %v4345
    %4347 = vmatmul.f32.gmra.mxu0 %v4136
    %v4348 = vpop.f32.mrf.mxu0
    %v4349 = vadd.f32 0.0, %v4348
    %4350 = vmatmul.f32.gmra.mxu0 %v4139
    %v4351 = vpop.f32.mrf.mxu0
    %v4352 = vadd.f32 0.0, %v4351
    %4353 = vmatmul.f32.gmra.mxu0 %v4142
    %v4354 = vpop.f32.mrf.mxu0
    %v4355 = vadd.f32 0.0, %v4354
    %4356 = vmatmul.f32.gmra.mxu0 %v4145
    %v4357 = vpop.f32.mrf.mxu0
    %v4358 = vadd.f32 0.0, %v4357
    %4359 = vmatmul.f32.gmra.mxu0 %v4148
    %v4360 = vpop.f32.mrf.mxu0
    %v4361 = vadd.f32 0.0, %v4360
    %4362 = vmatmul.f32.gmra.mxu0 %v4151
    %v4363 = vpop.f32.mrf.mxu0
    %v4364 = vadd.f32 0.0, %v4363
    %4365 = vmatmul.f32.gmra.mxu0 %v4154
    %v4366 = vpop.f32.mrf.mxu0
    %v4367 = vadd.f32 0.0, %v4366
    %4368 = vmatmul.f32.gmra.mxu0 %v4157
    %v4369 = vpop.f32.mrf.mxu0
    %v4370 = vadd.f32 0.0, %v4369
    %4371 = vmatmul.f32.gmra.mxu0 %v4160
    %v4372 = vpop.f32.mrf.mxu0
    %v4373 = vadd.f32 0.0, %v4372
    %4374 = vmatmul.f32.gmra.mxu0 %v4163
    %v4375 = vpop.f32.mrf.mxu0
    %v4376 = vadd.f32 0.0, %v4375
    %4377 = vmatmul.f32.gmra.mxu0 %v4166
    %v4378 = vpop.f32.mrf.mxu0
    %v4379 = vadd.f32 0.0, %v4378
    %4380 = vmatmul.f32.gmra.mxu0 %v4169
    %v4381 = vpop.f32.mrf.mxu0
    %v4382 = vadd.f32 0.0, %v4381
    %4383 = vmatmul.f32.gmra.mxu0 %v4172
    %v4384 = vpop.f32.mrf.mxu0
    %v4385 = vadd.f32 0.0, %v4384
    %4386 = vmatmul.f32.gmra.mxu0 %v4175
    %v4387 = vpop.f32.mrf.mxu0
    %v4388 = vadd.f32 0.0, %v4387
    %4389 = vmatmul.f32.gmra.mxu0 %v4178
    %v4390 = vpop.f32.mrf.mxu0
    %v4391 = vadd.f32 0.0, %v4390
    %4392 = vmatmul.f32.gmra.mxu0 %v4181
    %v4393 = vpop.f32.mrf.mxu0
    %v4394 = vadd.f32 0.0, %v4393
    %4395 = vmatmul.f32.gmra.mxu0 %v4184
    %v4396 = vpop.f32.mrf.mxu0
    %v4397 = vadd.f32 0.0, %v4396
    %4398 = vmatmul.f32.gmra.mxu0 %v4187
    %v4399 = vpop.f32.mrf.mxu0
    %v4400 = vadd.f32 0.0, %v4399
    %4401 = vmatmul.f32.gmra.mxu0 %v4190
    %v4402 = vpop.f32.mrf.mxu0
    %v4403 = vadd.f32 0.0, %v4402
    %4404 = vmatmul.f32.gmra.mxu0 %v4193
    %v4405 = vpop.f32.mrf.mxu0
    %v4406 = vadd.f32 0.0, %v4405
    %4407 = vmatmul.f32.gmra.mxu0 %v4196
    %v4408 = vpop.f32.mrf.mxu0
    %v4409 = vadd.f32 0.0, %v4408
    %4410 = vmatmul.f32.gmra.mxu0 %v4199
    %v4411 = vpop.f32.mrf.mxu0
    %v4412 = vadd.f32 0.0, %v4411
    %4413 = vmatmul.f32.gmra.mxu0 %v4202
    %v4414 = vpop.f32.mrf.mxu0
    %v4415 = vadd.f32 0.0, %v4414
    %4416 = vmatmul.f32.gmra.mxu0 %v4205
    %v4417 = vpop.f32.mrf.mxu0
    %v4418 = vadd.f32 0.0, %v4417
    %4419 = vdwg.mxu0
    %v4421 = vsel %vm3409, %v3627, 0
    %4423 = vmatpush.msra.mxu0 0.0
    %4424 = vmatpush.msra.mxu0 0.0
    %4425 = vmatpush.msra.mxu0 0.0
    %4426 = vmatpush.msra.mxu0 0.0
    %4427 = vmatpush.msra.mxu0 0.0
    %4428 = vmatpush.msra.mxu0 0.0
    %4429 = vmatpush.msra.mxu0 0.0
    %4430 = vmatpush.msra.mxu0 0.0
    %4431 = vmatpush.msra.mxu0 0.0
    %4432 = vmatpush.msra.mxu0 0.0
    %4433 = vmatpush.msra.mxu0 0.0
    %4434 = vmatpush.msra.mxu0 0.0
    %4435 = vmatpush.msra.mxu0 0.0
    %4436 = vmatpush.msra.mxu0 0.0
    %4437 = vmatpush.msra.mxu0 0.0
    %4438 = vmatpush.msra.mxu0 %v4209
    %4439 = vmatmul.f32.gmra.mxu0 %v4421
    %v4440 = vpop.f32.mrf.mxu0
    %v4441 = vadd.f32 0.0, %v4440
    %4442 = vdwg.mxu0
    %v4444 = vsel %vm3409, %v4013, 0
    %4446 = vmatpush.msra.mxu0 0.0
    %4447 = vmatpush.msra.mxu0 0.0
    %4448 = vmatpush.msra.mxu0 0.0
    %4449 = vmatpush.msra.mxu0 0.0
    %4450 = vmatpush.msra.mxu0 0.0
    %4451 = vmatpush.msra.mxu0 0.0
    %4452 = vmatpush.msra.mxu0 0.0
    %4453 = vmatpush.msra.mxu0 0.0
    %4454 = vmatpush.msra.mxu0 0.0
    %4455 = vmatpush.msra.mxu0 0.0
    %4456 = vmatpush.msra.mxu0 0.0
    %4457 = vmatpush.msra.mxu0 0.0
    %4458 = vmatpush.msra.mxu0 0.0
    %4459 = vmatpush.msra.mxu0 0.0
    %4460 = vmatpush.msra.mxu0 0.0
    %4461 = vmatpush.msra.mxu0 %v4209
    %4462 = vmatmul.f32.gmra.mxu0 %v4444
    %v4463 = vpop.f32.mrf.mxu0
    %v4464 = vadd.f32 0.0, %v4463
    %4465 = vdwg.mxu0
    %4466 = vrot.lane.b32.xlu0 %v2495, 64
    %v4467 = vpop.permute.xlu0 %4466
    %v4469 = vmul.f32 %v4441, %v4467
    %4534 = vrot.lane.b32.xlu0 %v2728, 96
    %v4535 = vpop.permute.xlu0 %4534
    %4536 = vrot.lane.b32.xlu0 %v2730, 96
    %v4537 = vpop.permute.xlu0 %4536
    %4538 = vrot.lane.b32.xlu0 %v2733, 96
    %v4539 = vpop.permute.xlu0 %4538
    %4540 = vrot.lane.b32.xlu0 %v2735, 96
    %v4541 = vpop.permute.xlu0 %4540
    %4542 = vrot.lane.b32.xlu0 %v2738, 96
    %v4543 = vpop.permute.xlu0 %4542
    %4544 = vrot.lane.b32.xlu0 %v2740, 96
    %v4545 = vpop.permute.xlu0 %4544
    %4546 = vrot.lane.b32.xlu0 %v2743, 96
    %v4547 = vpop.permute.xlu0 %4546
    %4548 = vrot.lane.b32.xlu0 %v2745, 96
    %v4549 = vpop.permute.xlu0 %4548
    %4550 = vrot.lane.b32.xlu0 %v2748, 96
    %v4551 = vpop.permute.xlu0 %4550
    %4552 = vrot.lane.b32.xlu0 %v2750, 96
    %v4553 = vpop.permute.xlu0 %4552
    %4554 = vrot.lane.b32.xlu0 %v2753, 96
    %v4555 = vpop.permute.xlu0 %4554
    %4556 = vrot.lane.b32.xlu0 %v2755, 96
    %v4557 = vpop.permute.xlu0 %4556
    %4558 = vrot.lane.b32.xlu0 %v2758, 96
    %v4559 = vpop.permute.xlu0 %4558
    %4560 = vrot.lane.b32.xlu0 %v2760, 96
    %v4561 = vpop.permute.xlu0 %4560
    %4562 = vrot.lane.b32.xlu0 %v2763, 96
    %v4563 = vpop.permute.xlu0 %4562
    %4564 = vrot.lane.b32.xlu0 %v2765, 96
    %v4565 = vpop.permute.xlu0 %4564
    %4566 = vrot.lane.b32.xlu0 %v2768, 96
    %v4567 = vpop.permute.xlu0 %4566
    %4568 = vrot.lane.b32.xlu0 %v2770, 96
    %v4569 = vpop.permute.xlu0 %4568
    %4570 = vrot.lane.b32.xlu0 %v2773, 96
    %v4571 = vpop.permute.xlu0 %4570
    %4572 = vrot.lane.b32.xlu0 %v2775, 96
    %v4573 = vpop.permute.xlu0 %4572
    %4574 = vrot.lane.b32.xlu0 %v2778, 96
    %v4575 = vpop.permute.xlu0 %4574
    %4576 = vrot.lane.b32.xlu0 %v2780, 96
    %v4577 = vpop.permute.xlu0 %4576
    %4578 = vrot.lane.b32.xlu0 %v2783, 96
    %v4579 = vpop.permute.xlu0 %4578
    %4580 = vrot.lane.b32.xlu0 %v2785, 96
    %v4581 = vpop.permute.xlu0 %4580
    %4582 = vrot.lane.b32.xlu0 %v2788, 96
    %v4583 = vpop.permute.xlu0 %4582
    %4584 = vrot.lane.b32.xlu0 %v2790, 96
    %v4585 = vpop.permute.xlu0 %4584
    %4586 = vrot.lane.b32.xlu0 %v2793, 96
    %v4587 = vpop.permute.xlu0 %4586
    %4588 = vrot.lane.b32.xlu0 %v2795, 96
    %v4589 = vpop.permute.xlu0 %4588
    %4590 = vrot.lane.b32.xlu0 %v2798, 96
    %v4591 = vpop.permute.xlu0 %4590
    %4592 = vrot.lane.b32.xlu0 %v2800, 96
    %v4593 = vpop.permute.xlu0 %4592
    %4594 = vrot.lane.b32.xlu0 %v2803, 96
    %v4595 = vpop.permute.xlu0 %4594
    %4596 = vrot.lane.b32.xlu0 %v2805, 96
    %v4597 = vpop.permute.xlu0 %4596
    %4598 = vrot.lane.b32.xlu0 %v2808, 96
    %v4599 = vpop.permute.xlu0 %4598
    %4600 = vrot.lane.b32.xlu0 %v2810, 96
    %v4601 = vpop.permute.xlu0 %4600
    %4602 = vrot.lane.b32.xlu0 %v2813, 96
    %v4603 = vpop.permute.xlu0 %4602
    %4604 = vrot.lane.b32.xlu0 %v2815, 96
    %v4605 = vpop.permute.xlu0 %4604
    %4606 = vrot.lane.b32.xlu0 %v2818, 96
    %v4607 = vpop.permute.xlu0 %4606
    %4608 = vrot.lane.b32.xlu0 %v2820, 96
    %v4609 = vpop.permute.xlu0 %4608
    %4610 = vrot.lane.b32.xlu0 %v2823, 96
    %v4611 = vpop.permute.xlu0 %4610
    %4612 = vrot.lane.b32.xlu0 %v2825, 96
    %v4613 = vpop.permute.xlu0 %4612
    %4614 = vrot.lane.b32.xlu0 %v2828, 96
    %v4615 = vpop.permute.xlu0 %4614
    %4616 = vrot.lane.b32.xlu0 %v2830, 96
    %v4617 = vpop.permute.xlu0 %4616
    %4618 = vrot.lane.b32.xlu0 %v2833, 96
    %v4619 = vpop.permute.xlu0 %4618
    %4620 = vrot.lane.b32.xlu0 %v2835, 96
    %v4621 = vpop.permute.xlu0 %4620
    %4622 = vrot.lane.b32.xlu0 %v2838, 96
    %v4623 = vpop.permute.xlu0 %4622
    %4624 = vrot.lane.b32.xlu0 %v2840, 96
    %v4625 = vpop.permute.xlu0 %4624
    %4626 = vrot.lane.b32.xlu0 %v2843, 96
    %v4627 = vpop.permute.xlu0 %4626
    %4628 = vrot.lane.b32.xlu0 %v2845, 96
    %v4629 = vpop.permute.xlu0 %4628
    %4630 = vrot.lane.b32.xlu0 %v2848, 96
    %v4631 = vpop.permute.xlu0 %4630
    %4632 = vrot.lane.b32.xlu0 %v2850, 96
    %v4633 = vpop.permute.xlu0 %4632
    %4634 = vrot.lane.b32.xlu0 %v2853, 96
    %v4635 = vpop.permute.xlu0 %4634
    %4636 = vrot.lane.b32.xlu0 %v2855, 96
    %v4637 = vpop.permute.xlu0 %4636
    %4638 = vrot.lane.b32.xlu0 %v2858, 96
    %v4639 = vpop.permute.xlu0 %4638
    %4640 = vrot.lane.b32.xlu0 %v2860, 96
    %v4641 = vpop.permute.xlu0 %4640
    %4642 = vrot.lane.b32.xlu0 %v2863, 96
    %v4643 = vpop.permute.xlu0 %4642
    %4644 = vrot.lane.b32.xlu0 %v2865, 96
    %v4645 = vpop.permute.xlu0 %4644
    %4646 = vrot.lane.b32.xlu0 %v2868, 96
    %v4647 = vpop.permute.xlu0 %4646
    %4648 = vrot.lane.b32.xlu0 %v2870, 96
    %v4649 = vpop.permute.xlu0 %4648
    %4650 = vrot.lane.b32.xlu0 %v2873, 96
    %v4651 = vpop.permute.xlu0 %4650
    %4652 = vrot.lane.b32.xlu0 %v2875, 96
    %v4653 = vpop.permute.xlu0 %4652
    %4654 = vrot.lane.b32.xlu0 %v2878, 96
    %v4655 = vpop.permute.xlu0 %4654
    %4656 = vrot.lane.b32.xlu0 %v2880, 96
    %v4657 = vpop.permute.xlu0 %4656
    %4658 = vrot.lane.b32.xlu0 %v2883, 96
    %v4659 = vpop.permute.xlu0 %4658
    %4660 = vrot.lane.b32.xlu0 %v2885, 96
    %v4661 = vpop.permute.xlu0 %4660
    %v4726 = vmul.f32 %v4229, %v4535
    %v4727 = vmul.f32 %v4232, %v4537
    %v4728 = vmul.f32 %v4235, %v4539
    %v4729 = vmul.f32 %v4238, %v4541
    %v4730 = vmul.f32 %v4241, %v4543
    %v4731 = vmul.f32 %v4244, %v4545
    %v4732 = vmul.f32 %v4247, %v4547
    %v4733 = vmul.f32 %v4250, %v4549
    %v4734 = vmul.f32 %v4253, %v4551
    %v4735 = vmul.f32 %v4256, %v4553
    %v4736 = vmul.f32 %v4259, %v4555
    %v4737 = vmul.f32 %v4262, %v4557
    %v4738 = vmul.f32 %v4265, %v4559
    %v4739 = vmul.f32 %v4268, %v4561
    %v4740 = vmul.f32 %v4271, %v4563
    %v4741 = vmul.f32 %v4274, %v4565
    %v4742 = vmul.f32 %v4277, %v4567
    %v4743 = vmul.f32 %v4280, %v4569
    %v4744 = vmul.f32 %v4283, %v4571
    %v4745 = vmul.f32 %v4286, %v4573
    %v4746 = vmul.f32 %v4289, %v4575
    %v4747 = vmul.f32 %v4292, %v4577
    %v4748 = vmul.f32 %v4295, %v4579
    %v4749 = vmul.f32 %v4298, %v4581
    %v4750 = vmul.f32 %v4301, %v4583
    %v4751 = vmul.f32 %v4304, %v4585
    %v4752 = vmul.f32 %v4307, %v4587
    %v4753 = vmul.f32 %v4310, %v4589
    %v4754 = vmul.f32 %v4313, %v4591
    %v4755 = vmul.f32 %v4316, %v4593
    %v4756 = vmul.f32 %v4319, %v4595
    %v4757 = vmul.f32 %v4322, %v4597
    %v4758 = vmul.f32 %v4325, %v4599
    %v4759 = vmul.f32 %v4328, %v4601
    %v4760 = vmul.f32 %v4331, %v4603
    %v4761 = vmul.f32 %v4334, %v4605
    %v4762 = vmul.f32 %v4337, %v4607
    %v4763 = vmul.f32 %v4340, %v4609
    %v4764 = vmul.f32 %v4343, %v4611
    %v4765 = vmul.f32 %v4346, %v4613
    %v4766 = vmul.f32 %v4349, %v4615
    %v4767 = vmul.f32 %v4352, %v4617
    %v4768 = vmul.f32 %v4355, %v4619
    %v4769 = vmul.f32 %v4358, %v4621
    %v4770 = vmul.f32 %v4361, %v4623
    %v4771 = vmul.f32 %v4364, %v4625
    %v4772 = vmul.f32 %v4367, %v4627
    %v4773 = vmul.f32 %v4370, %v4629
    %v4774 = vmul.f32 %v4373, %v4631
    %v4775 = vmul.f32 %v4376, %v4633
    %v4776 = vmul.f32 %v4379, %v4635
    %v4777 = vmul.f32 %v4382, %v4637
    %v4778 = vmul.f32 %v4385, %v4639
    %v4779 = vmul.f32 %v4388, %v4641
    %v4780 = vmul.f32 %v4391, %v4643
    %v4781 = vmul.f32 %v4394, %v4645
    %v4782 = vmul.f32 %v4397, %v4647
    %v4783 = vmul.f32 %v4400, %v4649
    %v4784 = vmul.f32 %v4403, %v4651
    %v4785 = vmul.f32 %v4406, %v4653
    %v4786 = vmul.f32 %v4409, %v4655
    %v4787 = vmul.f32 %v4412, %v4657
    %v4788 = vmul.f32 %v4415, %v4659
    %v4789 = vmul.f32 %v4418, %v4661
    %v4790 = vsel %vm179, %v4726, 0.0
    %v4791 = vsel %vm179, %v4727, 0.0
    %v4792 = vadd.f32 %v4790, %v4791
    %v4793 = vsel %vm179, %v4728, 0.0
    %v4794 = vadd.f32 %v4792, %v4793
    %v4795 = vsel %vm179, %v4729, 0.0
    %v4796 = vadd.f32 %v4794, %v4795
    %v4797 = vsel %vm179, %v4730, 0.0
    %v4798 = vadd.f32 %v4796, %v4797
    %v4799 = vsel %vm179, %v4731, 0.0
    %v4800 = vadd.f32 %v4798, %v4799
    %v4801 = vsel %vm179, %v4732, 0.0
    %v4802 = vadd.f32 %v4800, %v4801
    %v4803 = vsel %vm179, %v4733, 0.0
    %v4804 = vadd.f32 %v4802, %v4803
    %v4805 = vrot.slane %v4804, 4
    %v4806 = vadd.f32 %v4804, %v4805
    %v4807 = vrot.slane %v4806, 2
    %v4808 = vadd.f32 %v4806, %v4807
    %v4809 = vrot.slane %v4808, 1
    %v4810 = vadd.f32 %v4808, %v4809
    %v4811 = vsel %vm179, %v4734, 0.0
    %v4812 = vsel %vm179, %v4735, 0.0
    %v4813 = vadd.f32 %v4811, %v4812
    %v4814 = vsel %vm179, %v4736, 0.0
    %v4815 = vadd.f32 %v4813, %v4814
    %v4816 = vsel %vm179, %v4737, 0.0
    %v4817 = vadd.f32 %v4815, %v4816
    %v4818 = vsel %vm179, %v4738, 0.0
    %v4819 = vadd.f32 %v4817, %v4818
    %v4820 = vsel %vm179, %v4739, 0.0
    %v4821 = vadd.f32 %v4819, %v4820
    %v4822 = vsel %vm179, %v4740, 0.0
    %v4823 = vadd.f32 %v4821, %v4822
    %v4824 = vsel %vm179, %v4741, 0.0
    %v4825 = vadd.f32 %v4823, %v4824
    %v4826 = vrot.slane %v4825, 4
    %v4827 = vadd.f32 %v4825, %v4826
    %v4828 = vrot.slane %v4827, 2
    %v4829 = vadd.f32 %v4827, %v4828
    %v4830 = vrot.slane %v4829, 1
    %v4831 = vadd.f32 %v4829, %v4830
    %v4832 = vsel %vm179, %v4742, 0.0
    %v4833 = vsel %vm179, %v4743, 0.0
    %v4834 = vadd.f32 %v4832, %v4833
    %v4835 = vsel %vm179, %v4744, 0.0
    %v4836 = vadd.f32 %v4834, %v4835
    %v4837 = vsel %vm179, %v4745, 0.0
    %v4838 = vadd.f32 %v4836, %v4837
    %v4839 = vsel %vm179, %v4746, 0.0
    %v4840 = vadd.f32 %v4838, %v4839
    %v4841 = vsel %vm179, %v4747, 0.0
    %v4842 = vadd.f32 %v4840, %v4841
    %v4843 = vsel %vm179, %v4748, 0.0
    %v4844 = vadd.f32 %v4842, %v4843
    %v4845 = vsel %vm179, %v4749, 0.0
    %v4846 = vadd.f32 %v4844, %v4845
    %v4847 = vrot.slane %v4846, 4
    %v4848 = vadd.f32 %v4846, %v4847
    %v4849 = vrot.slane %v4848, 2
    %v4850 = vadd.f32 %v4848, %v4849
    %v4851 = vrot.slane %v4850, 1
    %v4852 = vadd.f32 %v4850, %v4851
    %v4853 = vsel %vm179, %v4750, 0.0
    %v4854 = vsel %vm179, %v4751, 0.0
    %v4855 = vadd.f32 %v4853, %v4854
    %v4856 = vsel %vm179, %v4752, 0.0
    %v4857 = vadd.f32 %v4855, %v4856
    %v4858 = vsel %vm179, %v4753, 0.0
    %v4859 = vadd.f32 %v4857, %v4858
    %v4860 = vsel %vm179, %v4754, 0.0
    %v4861 = vadd.f32 %v4859, %v4860
    %v4862 = vsel %vm179, %v4755, 0.0
    %v4863 = vadd.f32 %v4861, %v4862
    %v4864 = vsel %vm179, %v4756, 0.0
    %v4865 = vadd.f32 %v4863, %v4864
    %v4866 = vsel %vm179, %v4757, 0.0
    %v4867 = vadd.f32 %v4865, %v4866
    %v4868 = vrot.slane %v4867, 4
    %v4869 = vadd.f32 %v4867, %v4868
    %v4870 = vrot.slane %v4869, 2
    %v4871 = vadd.f32 %v4869, %v4870
    %v4872 = vrot.slane %v4871, 1
    %v4873 = vadd.f32 %v4871, %v4872
    %v4874 = vsel %vm179, %v4758, 0.0
    %v4875 = vsel %vm179, %v4759, 0.0
    %v4876 = vadd.f32 %v4874, %v4875
    %v4877 = vsel %vm179, %v4760, 0.0
    %v4878 = vadd.f32 %v4876, %v4877
    %v4879 = vsel %vm179, %v4761, 0.0
    %v4880 = vadd.f32 %v4878, %v4879
    %v4881 = vsel %vm179, %v4762, 0.0
    %v4882 = vadd.f32 %v4880, %v4881
    %v4883 = vsel %vm179, %v4763, 0.0
    %v4884 = vadd.f32 %v4882, %v4883
    %v4885 = vsel %vm179, %v4764, 0.0
    %v4886 = vadd.f32 %v4884, %v4885
    %v4887 = vsel %vm179, %v4765, 0.0
    %v4888 = vadd.f32 %v4886, %v4887
    %v4889 = vrot.slane %v4888, 4
    %v4890 = vadd.f32 %v4888, %v4889
    %v4891 = vrot.slane %v4890, 2
    %v4892 = vadd.f32 %v4890, %v4891
    %v4893 = vrot.slane %v4892, 1
    %v4894 = vadd.f32 %v4892, %v4893
    %v4895 = vsel %vm179, %v4766, 0.0
    %v4896 = vsel %vm179, %v4767, 0.0
    %v4897 = vadd.f32 %v4895, %v4896
    %v4898 = vsel %vm179, %v4768, 0.0
    %v4899 = vadd.f32 %v4897, %v4898
    %v4900 = vsel %vm179, %v4769, 0.0
    %v4901 = vadd.f32 %v4899, %v4900
    %v4902 = vsel %vm179, %v4770, 0.0
    %v4903 = vadd.f32 %v4901, %v4902
    %v4904 = vsel %vm179, %v4771, 0.0
    %v4905 = vadd.f32 %v4903, %v4904
    %v4906 = vsel %vm179, %v4772, 0.0
    %v4907 = vadd.f32 %v4905, %v4906
    %v4908 = vsel %vm179, %v4773, 0.0
    %v4909 = vadd.f32 %v4907, %v4908
    %v4910 = vrot.slane %v4909, 4
    %v4911 = vadd.f32 %v4909, %v4910
    %v4912 = vrot.slane %v4911, 2
    %v4913 = vadd.f32 %v4911, %v4912
    %v4914 = vrot.slane %v4913, 1
    %v4915 = vadd.f32 %v4913, %v4914
    %v4916 = vsel %vm179, %v4774, 0.0
    %v4917 = vsel %vm179, %v4775, 0.0
    %v4918 = vadd.f32 %v4916, %v4917
    %v4919 = vsel %vm179, %v4776, 0.0
    %v4920 = vadd.f32 %v4918, %v4919
    %v4921 = vsel %vm179, %v4777, 0.0
    %v4922 = vadd.f32 %v4920, %v4921
    %v4923 = vsel %vm179, %v4778, 0.0
    %v4924 = vadd.f32 %v4922, %v4923
    %v4925 = vsel %vm179, %v4779, 0.0
    %v4926 = vadd.f32 %v4924, %v4925
    %v4927 = vsel %vm179, %v4780, 0.0
    %v4928 = vadd.f32 %v4926, %v4927
    %v4929 = vsel %vm179, %v4781, 0.0
    %v4930 = vadd.f32 %v4928, %v4929
    %v4931 = vrot.slane %v4930, 4
    %v4932 = vadd.f32 %v4930, %v4931
    %v4933 = vrot.slane %v4932, 2
    %v4934 = vadd.f32 %v4932, %v4933
    %v4935 = vrot.slane %v4934, 1
    %v4936 = vadd.f32 %v4934, %v4935
    %v4937 = vsel %vm179, %v4782, 0.0
    %v4938 = vsel %vm179, %v4783, 0.0
    %v4939 = vadd.f32 %v4937, %v4938
    %v4940 = vsel %vm179, %v4784, 0.0
    %v4941 = vadd.f32 %v4939, %v4940
    %v4942 = vsel %vm179, %v4785, 0.0
    %v4943 = vadd.f32 %v4941, %v4942
    %v4944 = vsel %vm179, %v4786, 0.0
    %v4945 = vadd.f32 %v4943, %v4944
    %v4946 = vsel %vm179, %v4787, 0.0
    %v4947 = vadd.f32 %v4945, %v4946
    %v4948 = vsel %vm179, %v4788, 0.0
    %v4949 = vadd.f32 %v4947, %v4948
    %v4950 = vsel %vm179, %v4789, 0.0
    %v4951 = vadd.f32 %v4949, %v4950
    %v4952 = vrot.slane %v4951, 4
    %v4953 = vadd.f32 %v4951, %v4952
    %v4954 = vrot.slane %v4953, 2
    %v4955 = vadd.f32 %v4953, %v4954
    %v4956 = vrot.slane %v4955, 1
    %v4957 = vadd.f32 %v4955, %v4956
    %v4966 = vsel %vm2449, %v4831, %v4810
    %v4967 = vsel %vm2452, %v4852, %v4966
    %v4968 = vsel %vm2455, %v4873, %v4967
    %v4969 = vsel %vm2458, %v4894, %v4968
    %v4970 = vsel %vm2461, %v4915, %v4969
    %v4971 = vsel %vm2464, %v4936, %v4970
    %v4972 = vsel %vm2467, %v4957, %v4971
    %v4974 = vadd.f32 %v4469, %v4972
    %v4975 = vmul.f32 %v4974, %v4464
    %v4976 = vld [vmem:[%s10] sm:$0xff]
    %v4977 = vld [vmem:[%s10 + $0x8] sm:$0xff]
    %v4978 = vld [vmem:[%s10 + $0x10] sm:$0xff]
    %v4979 = vld [vmem:[%s10 + $0x18] sm:$0xff]
    %v4980 = vld [vmem:[%s11] sm:$0x1]
    %v4982 = vperm.slane %v4980, 0
    %v4985 = vsel %vm179, %v4975, 0
    %4987 = vmatpush.msra.mxu0 0.0
    %4988 = vmatpush.msra.mxu0 0.0
    %4989 = vmatpush.msra.mxu0 0.0
    %4990 = vmatpush.msra.mxu0 0.0
    %4991 = vmatpush.msra.mxu0 0.0
    %4992 = vmatpush.msra.mxu0 0.0
    %4993 = vmatpush.msra.mxu0 0.0
    %4994 = vmatpush.msra.mxu0 0.0
    %4995 = vmatpush.msra.mxu0 0.0
    %4996 = vmatpush.msra.mxu0 0.0
    %4997 = vmatpush.msra.mxu0 0.0
    %4998 = vmatpush.msra.mxu0 0.0
    %4999 = vmatpush.msra.mxu0 %v4979
    %5000 = vmatpush.msra.mxu0 %v4978
    %5001 = vmatpush.msra.mxu0 %v4977
    %5002 = vmatpush.msra.mxu0 %v4976
    %5003 = vmatmul.f32.gmra.mxu0 %v4985
    %v5004 = vpop.f32.mrf.mxu0
    %v5005 = vadd.f32 %v4982, %v5004
    %5006 = vdwg.mxu0
    %vm5007 = vcmask 64512
    %5008 = vst.msk [vmem:[#allocation3] sm:$0xff] %vm5007, %v5005
    // Predicated region
    $region58: #{tpu_custom_call.1} parent=1 // pred_check
      _
    $region59: #{tpu_custom_call.1} parent=1 // pred_check_branch
      %5010 = sbr.rel (0) target = $region61
    $region60: #{tpu_custom_call.1} parent=1 // pred_region
      %5012 = vsyncadd [#allocation4], 0
      %s5014 = sshll.u32 [#allocation3], 4
      %s5015 = int_to_ptr.vmem [resolvable:$true] %s5014
      %s5016 = sshll.u32 %s14, 4
      %s5017 = int_to_ptr.hbm [resolvable:$true] %s5016
      %5019 = dma.vmem_to_hbm [thread:$0]  %s5015, 128, %s5017, [#allocation4]
    $region61: #{tpu_custom_call.1} parent=1 // pred_fallthru
      _
    // Predicated region
    $region62: #{tpu_custom_call.1} parent=1 // pred_check
      _
    $region63: #{tpu_custom_call.1} parent=1 // pred_check_branch
      %5021 = sbr.rel (0) target = $region65
    $region64: #{tpu_custom_call.1} parent=1 // pred_region
      %5023 = dma.done [#allocation4], 128
    $region65: #{tpu_custom_call.1} parent=1 // pred_fallthru
      _
    %5024 = vsyncpa [#allocation4], 1

</llo_original>
